<compile_context>
chip_gen: v7x
topology: tpu7x:2x2x1
jax: 0.10.0
libtpu: 0.0.40
codegen_flags: <defaults>
</compile_context>

<pallas_src>
import numpy as np
import jax
import jax.numpy as jnp
from jax.experimental import pallas as pl
from jax.experimental.pallas import tpu as pltpu


LANES = 128   # lane width: channel dims are padded to a multiple of this
PADL = 8      # left pad of the W axis in the padded scratches -> sublane-aligned interior


def _round_up(n, m):
    return (n + m - 1) // m * m


def _row_tile(n, target=8):
    """Largest divisor of n that is <= target (keeps live strip accumulators small)."""
    for t in range(min(target, n), 0, -1):
        if n % t == 0:
            return t
    return n


def _make_wide_basic_kernel(H, W, Cinp, Cmidp, stride, identity_shortcut,
                            RT1, RT2, Wp):
    # PyTorch conv output size with kernel 3, padding 1: floor((H - 1)/stride) + 1
    Ho = (H - 1) // stride + 1
    Wo = (W - 1) // stride + 1
    S = stride
    n1 = H // RT1       # conv1 row strips
    n2 = Ho // RT2      # conv2 / output row strips

    def strided(ref, row0, col0, nrows, ncols):
        # (nrows, ncols, C) window starting at (row0, col0) with the conv stride
        if S == 1:
            return ref[row0:row0 + nrows, col0:col0 + ncols, :]
        return ref[pl.ds(row0, nrows, S), pl.ds(col0, ncols, S), :]

    def kernel(x_ref, s1_ref, t1_ref, w1_ref, b1_ref,
               s2_ref, t2_ref, w2_ref, b2_ref,
               wsc_ref, bsc_ref, out_ref,
               xpad_ref, zpad_ref):
        f32 = jnp.float32
        bf16 = jnp.bfloat16

        # ---- zero only the 1-pixel conv border of the persistent scratches -------
        # Interiors are fully overwritten every grid step; re-zeroing the thin border
        # per step stays correct when the batch axis is sharded across TensorCores.
        xpad_ref[0] = jnp.zeros((Wp, Cinp), f32)
        xpad_ref[H + 1] = jnp.zeros((Wp, Cinp), f32)
        xpad_ref[:, PADL - 1:PADL, :] = jnp.zeros((H + 2, 1, Cinp), f32)
        xpad_ref[:, PADL + W:PADL + W + 1, :] = jnp.zeros((H + 2, 1, Cinp), f32)
        zpad_ref[0] = jnp.zeros((Wp, Cmidp), f32)
        zpad_ref[H + 1] = jnp.zeros((Wp, Cmidp), f32)
        zpad_ref[:, PADL - 1:PADL, :] = jnp.zeros((H + 2, 1, Cmidp), f32)
        zpad_ref[:, PADL + W:PADL + W + 1, :] = jnp.zeros((H + 2, 1, Cmidp), f32)

        # ---- bn1 (folded) + relu1, written straight into the padded interior -----
        x = x_ref[0].astype(f32)                                  # (H, W, Cinp)
        xpad_ref[1:H + 1, PADL:PADL + W, :] = jnp.maximum(
            x * s1_ref[...] + t1_ref[...], 0.0)

        # ---- conv1: 3x3, stride 1, pad 1 — one im2col matmul per row strip -------
        w1 = w1_ref[...]                                          # (9*Cinp, Cmidp) bf16
        for t1i in range(n1):
            r0 = t1i * RT1                                        # static strip start
            taps = []
            for ky in range(3):
                for kx in range(3):
                    p = xpad_ref[r0 + ky:r0 + ky + RT1,
                                 PADL - 1 + kx:PADL - 1 + kx + W, :]
                    taps.append(p.astype(bf16))
            slab = jnp.concatenate(taps, axis=-1).reshape(RT1 * W, 9 * Cinp)
            y = jnp.dot(slab, w1, preferred_element_type=f32)     # MXU, f32 acc
            y = y.reshape(RT1, W, Cmidp) + b1_ref[...]
            # bn2 (folded) + relu2 ; dropout == identity at inference
            z = jnp.maximum(y * s2_ref[...] + t2_ref[...], 0.0)
            zpad_ref[1 + r0:1 + r0 + RT1, PADL:PADL + W, :] = z

        # ---- conv2 (3x3, stride S, pad 1) + shortcut, per output row strip -------
        w2 = w2_ref[...]                                          # (9*Cmidp, Cmidp) bf16
        if not identity_shortcut:
            wsc = wsc_ref[...]                                    # (Cinp, Cmidp) bf16
        for t2i in range(n2):
            ro = t2i * RT2                                        # static strip start
            taps = []
            for ky in range(3):
                for kx in range(3):
                    p = strided(zpad_ref, S * ro + ky, PADL - 1 + kx, RT2, Wo)
                    taps.append(p.astype(bf16))
            slab = jnp.concatenate(taps, axis=-1).reshape(RT2 * Wo, 9 * Cmidp)
            o = jnp.dot(slab, w2, preferred_element_type=f32)
            o = o.reshape(RT2, Wo, Cmidp) + b2_ref[...]

            # shortcut branch (applied to x_n, exactly as in the PyTorch module)
            if identity_shortcut:                                 # S == 1, Cinp == Cmidp
                sc = xpad_ref[1 + ro:1 + ro + RT2, PADL:PADL + W, :]
            else:                                                 # 1x1 conv, stride S
                xs = strided(xpad_ref, S * ro + 1, PADL, RT2, Wo)
                sc = (jnp.dot(xs.reshape(RT2 * Wo, Cinp).astype(bf16), wsc,
                              preferred_element_type=f32)
                      .reshape(RT2, Wo, Cmidp) + bsc_ref[...])

            out_ref[0, ro:ro + RT2, :, :] = (o + sc).astype(out_ref.dtype)

    return kernel


def wide_basic_forward(x_nchw, params, stride):
    """Pallas forward. x_nchw: (N, Cin, H, W) float32 -> (N, Cmid, Ho, Wo)."""
    N, Cin, H, W = x_nchw.shape
    Cmid = params["w1"].shape[-1]
    identity_shortcut = (stride == 1 and Cin == Cmid)

    Cinp = _round_up(Cin, LANES)
    Cmidp = _round_up(Cmid, LANES)
    Wp = _round_up(PADL + W + 1, 8)
    Ho = (H - 1) // stride + 1
    Wo = (W - 1) // stride + 1
    RT1 = _row_tile(H, 8)
    RT2 = _row_tile(Ho, 8)

    kernel = _make_wide_basic_kernel(H, W, Cinp, Cmidp, stride,
                                     identity_shortcut, RT1, RT2, Wp)

    # NCHW -> NHWC (channels on the 128-lane minor dim), zero-pad channels to 128x.
    # TODO(synk): callers that keep activations NHWC end-to-end should skip this
    #             transpose (it is a full HBM round-trip outside the kernel).
    x = jnp.transpose(x_nchw, (0, 2, 3, 1)).astype(jnp.float32)
    x = jnp.pad(x, ((0, 0), (0, 0), (0, 0), (0, Cinp - Cin)))

    eps = 1e-5
    s1v = params["bn1_gamma"] / jnp.sqrt(params["bn1_var"] + eps)
    t1v = params["bn1_beta"] - params["bn1_mean"] * s1v
    s2v = params["bn2_gamma"] / jnp.sqrt(params["bn2_var"] + eps)
    t2v = params["bn2_beta"] - params["bn2_mean"] * s2v

    def vec(v, C):
        return jnp.pad(v, (0, C - v.shape[0])).reshape(1, C).astype(jnp.float32)

    s1, t1 = vec(s1v, Cinp), vec(t1v, Cinp)
    s2, t2 = vec(s2v, Cmidp), vec(t2v, Cmidp)
    b1, b2 = vec(params["b1"], Cmidp), vec(params["b2"], Cmidp)
    bsc = vec(params["bsc"], Cmidp)

    # Weights: HWIO, channels zero-padded, 3x3 taps folded into the matmul K dim,
    # staged as bf16 MXU operands (f32 accumulation inside the kernel).
    w1 = jnp.pad(params["w1"], ((0, 0), (0, 0), (0, Cinp - Cin), (0, Cmidp - Cmid))
                 ).reshape(9 * Cinp, Cmidp).astype(jnp.bfloat16)
    w2 = jnp.pad(params["w2"], ((0, 0), (0, 0), (0, Cmidp - Cmid), (0, Cmidp - Cmid))
                 ).reshape(9 * Cmidp, Cmidp).astype(jnp.bfloat16)
    wsc = jnp.pad(params["wsc"], ((0, Cinp - Cin), (0, Cmidp - Cmid))
                  ).astype(jnp.bfloat16)

    def full(shape):
        nd = len(shape)
        return pl.BlockSpec(shape, lambda n, _nd=nd: (0,) * _nd)

    # Explicit VMEM budget sized to the actual footprint; stays within v7x's
    # 64 MiB physical VMEM while lifting v5e/v6e's small scoped defaults if needed.
    fp32, bfp = 4, 2
    est = (2 * H * W * Cinp * fp32                              # input block (x2 buffers)
           + 2 * Ho * Wo * Cmidp * fp32                         # output block (x2 buffers)
           + 2 * (9 * Cinp + 9 * Cmidp + Cinp) * Cmidp * bfp    # bf16 weights (x2 buffers)
           + 2 * 7 * max(Cinp, Cmidp) * fp32                    # scale/shift/bias vectors
           + (H + 2) * Wp * (Cinp + Cmidp) * fp32               # padded scratches
           + RT1 * W * 9 * Cinp * bfp                           # conv1 im2col slab
           + RT2 * Wo * 9 * Cmidp * bfp                         # conv2 im2col slab
           + (RT1 * W + 2 * RT2 * Wo) * Cmidp * fp32)           # strip accumulators
    vmem_limit = int(min(56 * 2**20, max(2 * est + (4 << 20), 16 << 20)))

    out_nhwc = pl.pallas_call(
        kernel,
        out_shape=jax.ShapeDtypeStruct((N, Ho, Wo, Cmidp), jnp.float32),
        grid_spec=pltpu.PrefetchScalarGridSpec(
            num_scalar_prefetch=0,
            grid=(N,),                                          # one image per grid step
            in_specs=[
                pl.BlockSpec((1, H, W, Cinp), lambda n: (n, 0, 0, 0)),
                full((1, Cinp)), full((1, Cinp)),
                full((9 * Cinp, Cmidp)), full((1, Cmidp)),
                full((1, Cmidp)), full((1, Cmidp)),
                full((9 * Cmidp, Cmidp)), full((1, Cmidp)),
                full((Cinp, Cmidp)), full((1, Cmidp)),
            ],
            out_specs=pl.BlockSpec((1, Ho, Wo, Cmidp), lambda n: (n, 0, 0, 0)),
            scratch_shapes=[
                pltpu.VMEM((H + 2, Wp, Cinp), jnp.float32),     # padded relu(bn1(x))
                pltpu.VMEM((H + 2, Wp, Cmidp), jnp.float32),    # padded relu(bn2(conv1))
            ],
        ),
        compiler_params=pltpu.CompilerParams(
            dimension_semantics=("parallel",),                  # batch axis -> 2 TCs on v7x
            vmem_limit_bytes=vmem_limit),
    )(x, s1, t1, w1, b1, s2, t2, w2, b2, wsc, bsc)

    # drop channel padding, NHWC -> NCHW
    return jnp.transpose(out_nhwc[..., :Cmid], (0, 3, 1, 2))


def wide_basic_reference(x_nchw, params, stride):
    """Plain-JAX reference (f32 lax convs) for correctness checking."""
    eps = 1e-5
    x = jnp.transpose(x_nchw, (0, 2, 3, 1)).astype(jnp.float32)
    Cin = x.shape[-1]
    Cmid = params["w1"].shape[-1]
    dn = ("NHWC", "HWIO", "NHWC")

    s1 = params["bn1_gamma"] / jnp.sqrt(params["bn1_var"] + eps)
    t1 = params["bn1_beta"] - params["bn1_mean"] * s1
    x_n = jnp.maximum(x * s1 + t1, 0.0)

    y = jax.lax.conv_general_dilated(x_n, params["w1"], (1, 1), ((1, 1), (1, 1)),
                                     dimension_numbers=dn) + params["b1"]
    s2 = params["bn2_gamma"] / jnp.sqrt(params["bn2_var"] + eps)
    t2 = params["bn2_beta"] - params["bn2_mean"] * s2
    z = jnp.maximum(y * s2 + t2, 0.0)

    out = jax.lax.conv_general_dilated(z, params["w2"], (stride, stride),
                                       ((1, 1), (1, 1)),
                                       dimension_numbers=dn) + params["b2"]
    if stride == 1 and Cin == Cmid:
        sc = x_n
    else:
        wsc = params["wsc"].reshape(1, 1, Cin, Cmid)
        sc = jax.lax.conv_general_dilated(x_n, wsc, (stride, stride),
                                          ((0, 0), (0, 0)),
                                          dimension_numbers=dn) + params["bsc"]
    return jnp.transpose(out + sc, (0, 3, 1, 2))


def init_params(key, in_planes, planes):
    ks = jax.random.split(key, 14)
    f32 = jnp.float32
    return {
        "bn1_gamma": 1.0 + 0.1 * jax.random.normal(ks[0], (in_planes,), f32),
        "bn1_beta": 0.1 * jax.random.normal(ks[1], (in_planes,), f32),
        "bn1_mean": 0.1 * jax.random.normal(ks[2], (in_planes,), f32),
        "bn1_var": jnp.abs(1.0 + 0.1 * jax.random.normal(ks[3], (in_planes,), f32)),
        "w1": 0.2 * jax.random.normal(ks[4], (3, 3, in_planes, planes), f32),
        "b1": 0.05 * jax.random.normal(ks[5], (planes,), f32),
        "bn2_gamma": 1.0 + 0.1 * jax.random.normal(ks[6], (planes,), f32),
        "bn2_beta": 0.1 * jax.random.normal(ks[7], (planes,), f32),
        "bn2_mean": 0.1 * jax.random.normal(ks[8], (planes,), f32),
        "bn2_var": jnp.abs(1.0 + 0.1 * jax.random.normal(ks[9], (planes,), f32)),
        "w2": 0.2 * jax.random.normal(ks[10], (3, 3, planes, planes), f32),
        "b2": 0.05 * jax.random.normal(ks[11], (planes,), f32),
        "wsc": 0.2 * jax.random.normal(ks[12], (in_planes, planes), f32),
        "bsc": 0.05 * jax.random.normal(ks[13], (planes,), f32),
    }


if __name__ == "__main__":
    key = jax.random.PRNGKey(0)
    kx1, kp1, kx2, kp2 = jax.random.split(key, 4)

    # bf16 MXU operands with f32 accumulation -> loosen tolerance vs the f32 reference
    RTOL = ATOL = 5e-2

    # Case 1: downsampling block (stride=2, in_planes != planes) -> 1x1 conv shortcut
    N, in_planes, planes, H, W, stride = 2, 4, 8, 16, 16, 2
    x = jax.random.normal(kx1, (N, in_planes, H, W), jnp.float32)
    params = init_params(kp1, in_planes, planes)
    out = jax.block_until_ready(wide_basic_forward(x, params, stride))
    ref = wide_basic_reference(x, params, stride)
    assert out.shape == (N, planes, H // 2, W // 2)
    np.testing.assert_allclose(np.asarray(out), np.asarray(ref), rtol=RTOL, atol=ATOL)

    # Case 2: identity-shortcut block (stride=1, in_planes == planes)
    x2 = jax.random.normal(kx2, (N, planes, H, W), jnp.float32)
    params2 = init_params(kp2, planes, planes)
    out2 = jax.block_until_ready(wide_basic_forward(x2, params2, 1))
    ref2 = wide_basic_reference(x2, params2, 1)
    assert out2.shape == (N, planes, H, W)
    np.testing.assert_allclose(np.asarray(out2), np.asarray(ref2), rtol=RTOL, atol=ATOL)

    print("KERNEL_OK")
</pallas_src>

<mosaic_0001>
module attributes {stable_mosaic.version = 11 : i64} {
  func.func @kernel(%arg0: i32, %arg1: memref<1x16x16x128xf32, #tpu.memory_space<vmem>>, %arg2: memref<1x128xf32, #tpu.memory_space<vmem>>, %arg3: memref<1x128xf32, #tpu.memory_space<vmem>>, %arg4: memref<1152x128xbf16, #tpu.memory_space<vmem>>, %arg5: memref<1x128xf32, #tpu.memory_space<vmem>>, %arg6: memref<1x128xf32, #tpu.memory_space<vmem>>, %arg7: memref<1x128xf32, #tpu.memory_space<vmem>>, %arg8: memref<1152x128xbf16, #tpu.memory_space<vmem>>, %arg9: memref<1x128xf32, #tpu.memory_space<vmem>>, %arg10: memref<128x128xbf16, #tpu.memory_space<vmem>>, %arg11: memref<1x128xf32, #tpu.memory_space<vmem>>, %arg12: memref<1x8x8x128xf32, #tpu.memory_space<vmem>>, %arg13: memref<18x32x128xf32, #tpu.memory_space<vmem>>, %arg14: memref<18x32x128xf32, #tpu.memory_space<vmem>>) attributes {dimension_semantics = [#tpu.dimension_semantics<parallel>], iteration_bounds = array<i64: 2>, scalar_prefetch = 0 : i64, scratch_operands = 2 : i64, tpu.core_type = #tpu.core_type<tc>, window_params = [{transform_indices = @transform_0, window_bounds = array<i64: 1, 16, 16, 128>}, {pipeline_mode = #tpu.pipeline_mode<synchronous>, transform_indices = @transform_1, window_bounds = array<i64: 1, 128>}, {pipeline_mode = #tpu.pipeline_mode<synchronous>, transform_indices = @transform_2, window_bounds = array<i64: 1, 128>}, {pipeline_mode = #tpu.pipeline_mode<synchronous>, transform_indices = @transform_3, window_bounds = array<i64: 1152, 128>}, {pipeline_mode = #tpu.pipeline_mode<synchronous>, transform_indices = @transform_4, window_bounds = array<i64: 1, 128>}, {pipeline_mode = #tpu.pipeline_mode<synchronous>, transform_indices = @transform_5, window_bounds = array<i64: 1, 128>}, {pipeline_mode = #tpu.pipeline_mode<synchronous>, transform_indices = @transform_6, window_bounds = array<i64: 1, 128>}, {pipeline_mode = #tpu.pipeline_mode<synchronous>, transform_indices = @transform_7, window_bounds = array<i64: 1152, 128>}, {pipeline_mode = #tpu.pipeline_mode<synchronous>, transform_indices = @transform_8, window_bounds = array<i64: 1, 128>}, {pipeline_mode = #tpu.pipeline_mode<synchronous>, transform_indices = @transform_9, window_bounds = array<i64: 128, 128>}, {pipeline_mode = #tpu.pipeline_mode<synchronous>, transform_indices = @transform_10, window_bounds = array<i64: 1, 128>}, {transform_indices = @transform_11, window_bounds = array<i64: 1, 8, 8, 128>}]} {
    %cst = arith.constant 0.000000e+00 : f32
    %0 = vector.broadcast %cst : f32 to vector<32x128xf32>
    %c0 = arith.constant 0 : index
    %c0_0 = arith.constant 0 : index
    %c0_1 = arith.constant 0 : index
    %1 = vector.load %arg13[%c0, %c0_0, %c0_1] : memref<18x32x128xf32, #tpu.memory_space<vmem>>, vector<1x32x128xf32>
    %2 = vector.shape_cast %1 : vector<1x32x128xf32> to vector<32x128xf32>
    %3 = vector.shape_cast %0 : vector<32x128xf32> to vector<1x32x128xf32>
    tpu.vector_store %arg13[%c0, %c0_0, %c0_1], %3 {strides = array<i32>} : memref<18x32x128xf32, #tpu.memory_space<vmem>>, vector<1x32x128xf32>,
    %cst_2 = arith.constant 0.000000e+00 : f32
    %4 = vector.broadcast %cst_2 : f32 to vector<32x128xf32>
    %c17 = arith.constant 17 : index
    %c0_3 = arith.constant 0 : index
    %c0_4 = arith.constant 0 : index
    %5 = vector.load %arg13[%c17, %c0_3, %c0_4] : memref<18x32x128xf32, #tpu.memory_space<vmem>>, vector<1x32x128xf32>
    %6 = vector.shape_cast %5 : vector<1x32x128xf32> to vector<32x128xf32>
    %7 = vector.shape_cast %4 : vector<32x128xf32> to vector<1x32x128xf32>
    tpu.vector_store %arg13[%c17, %c0_3, %c0_4], %7 {strides = array<i32>} : memref<18x32x128xf32, #tpu.memory_space<vmem>>, vector<1x32x128xf32>,
    %cst_5 = arith.constant 0.000000e+00 : f32
    %8 = vector.broadcast %cst_5 : f32 to vector<18x1x128xf32>
    %c0_6 = arith.constant 0 : index
    %c7 = arith.constant 7 : index
    %c0_7 = arith.constant 0 : index
    %9 = vector.load %arg13[%c0_6, %c7, %c0_7] : memref<18x32x128xf32, #tpu.memory_space<vmem>>, vector<18x1x128xf32>
    tpu.vector_store %arg13[%c0_6, %c7, %c0_7], %8 {strides = array<i32>} : memref<18x32x128xf32, #tpu.memory_space<vmem>>, vector<18x1x128xf32>,
    %cst_8 = arith.constant 0.000000e+00 : f32
    %10 = vector.broadcast %cst_8 : f32 to vector<18x1x128xf32>
    %c0_9 = arith.constant 0 : index
    %c24 = arith.constant 24 : index
    %c0_10 = arith.constant 0 : index
    %11 = vector.load %arg13[%c0_9, %c24, %c0_10] : memref<18x32x128xf32, #tpu.memory_space<vmem>>, vector<18x1x128xf32>
    tpu.vector_store %arg13[%c0_9, %c24, %c0_10], %10 {strides = array<i32>} : memref<18x32x128xf32, #tpu.memory_space<vmem>>, vector<18x1x128xf32>,
    %cst_11 = arith.constant 0.000000e+00 : f32
    %12 = vector.broadcast %cst_11 : f32 to vector<32x128xf32>
    %c0_12 = arith.constant 0 : index
    %c0_13 = arith.constant 0 : index
    %c0_14 = arith.constant 0 : index
    %13 = vector.load %arg14[%c0_12, %c0_13, %c0_14] : memref<18x32x128xf32, #tpu.memory_space<vmem>>, vector<1x32x128xf32>
    %14 = vector.shape_cast %13 : vector<1x32x128xf32> to vector<32x128xf32>
    %15 = vector.shape_cast %12 : vector<32x128xf32> to vector<1x32x128xf32>
    tpu.vector_store %arg14[%c0_12, %c0_13, %c0_14], %15 {strides = array<i32>} : memref<18x32x128xf32, #tpu.memory_space<vmem>>, vector<1x32x128xf32>,
    %cst_15 = arith.constant 0.000000e+00 : f32
    %16 = vector.broadcast %cst_15 : f32 to vector<32x128xf32>
    %c17_16 = arith.constant 17 : index
    %c0_17 = arith.constant 0 : index
    %c0_18 = arith.constant 0 : index
    %17 = vector.load %arg14[%c17_16, %c0_17, %c0_18] : memref<18x32x128xf32, #tpu.memory_space<vmem>>, vector<1x32x128xf32>
    %18 = vector.shape_cast %17 : vector<1x32x128xf32> to vector<32x128xf32>
    %19 = vector.shape_cast %16 : vector<32x128xf32> to vector<1x32x128xf32>
    tpu.vector_store %arg14[%c17_16, %c0_17, %c0_18], %19 {strides = array<i32>} : memref<18x32x128xf32, #tpu.memory_space<vmem>>, vector<1x32x128xf32>,
    %cst_19 = arith.constant 0.000000e+00 : f32
    %20 = vector.broadcast %cst_19 : f32 to vector<18x1x128xf32>
    %c0_20 = arith.constant 0 : index
    %c7_21 = arith.constant 7 : index
    %c0_22 = arith.constant 0 : index
    %21 = vector.load %arg14[%c0_20, %c7_21, %c0_22] : memref<18x32x128xf32, #tpu.memory_space<vmem>>, vector<18x1x128xf32>
    tpu.vector_store %arg14[%c0_20, %c7_21, %c0_22], %20 {strides = array<i32>} : memref<18x32x128xf32, #tpu.memory_space<vmem>>, vector<18x1x128xf32>,
    %cst_23 = arith.constant 0.000000e+00 : f32
    %22 = vector.broadcast %cst_23 : f32 to vector<18x1x128xf32>
    %c0_24 = arith.constant 0 : index
    %c24_25 = arith.constant 24 : index
    %c0_26 = arith.constant 0 : index
    %23 = vector.load %arg14[%c0_24, %c24_25, %c0_26] : memref<18x32x128xf32, #tpu.memory_space<vmem>>, vector<18x1x128xf32>
    tpu.vector_store %arg14[%c0_24, %c24_25, %c0_26], %22 {strides = array<i32>} : memref<18x32x128xf32, #tpu.memory_space<vmem>>, vector<18x1x128xf32>,
    %c0_27 = arith.constant 0 : index
    %c0_28 = arith.constant 0 : index
    %c0_29 = arith.constant 0 : index
    %c0_30 = arith.constant 0 : index
    %24 = vector.load %arg1[%c0_27, %c0_28, %c0_29, %c0_30] : memref<1x16x16x128xf32, #tpu.memory_space<vmem>>, vector<1x16x16x128xf32>
    %25 = vector.shape_cast %24 : vector<1x16x16x128xf32> to vector<16x16x128xf32>
    %c0_31 = arith.constant 0 : index
    %c0_32 = arith.constant 0 : index
    %26 = vector.load %arg2[%c0_31, %c0_32] : memref<1x128xf32, #tpu.memory_space<vmem>>, vector<1x128xf32>
    %27 = vector.shape_cast %26 : vector<1x128xf32> to vector<1x1x128xf32>
    %28 = vector.broadcast %27 : vector<1x1x128xf32> to vector<16x16x128xf32>
    %29 = arith.mulf %25, %28 : vector<16x16x128xf32>
    %c0_33 = arith.constant 0 : index
    %c0_34 = arith.constant 0 : index
    %30 = vector.load %arg3[%c0_33, %c0_34] : memref<1x128xf32, #tpu.memory_space<vmem>>, vector<1x128xf32>
    %31 = vector.shape_cast %30 : vector<1x128xf32> to vector<1x1x128xf32>
    %32 = vector.broadcast %31 : vector<1x1x128xf32> to vector<16x16x128xf32>
    %33 = arith.addf %29, %32 : vector<16x16x128xf32>
    %cst_35 = arith.constant 0.000000e+00 : f32
    %34 = vector.broadcast %cst_35 : f32 to vector<16x16x128xf32>
    %35 = arith.maximumf %33, %34 : vector<16x16x128xf32>
    %c1 = arith.constant 1 : index
    %c8 = arith.constant 8 : index
    %c0_36 = arith.constant 0 : index
    %36 = vector.load %arg13[%c1, %c8, %c0_36] : memref<18x32x128xf32, #tpu.memory_space<vmem>>, vector<16x16x128xf32>
    tpu.vector_store %arg13[%c1, %c8, %c0_36], %35 {strides = array<i32>} : memref<18x32x128xf32, #tpu.memory_space<vmem>>, vector<16x16x128xf32>,
    %c0_37 = arith.constant 0 : index
    %c0_38 = arith.constant 0 : index
    %37 = vector.load %arg4[%c0_37, %c0_38] : memref<1152x128xbf16, #tpu.memory_space<vmem>>, vector<1152x128xbf16>
    %c0_39 = arith.constant 0 : index
    %c7_40 = arith.constant 7 : index
    %c0_41 = arith.constant 0 : index
    %38 = vector.load %arg13[%c0_39, %c7_40, %c0_41] : memref<18x32x128xf32, #tpu.memory_space<vmem>>, vector<8x16x128xf32>
    %39 = arith.truncf %38 : vector<8x16x128xf32> to vector<8x16x128xbf16>
    %c0_42 = arith.constant 0 : index
    %c8_43 = arith.constant 8 : index
    %c0_44 = arith.constant 0 : index
    %40 = vector.load %arg13[%c0_42, %c8_43, %c0_44] : memref<18x32x128xf32, #tpu.memory_space<vmem>>, vector<8x16x128xf32>
    %41 = arith.truncf %40 : vector<8x16x128xf32> to vector<8x16x128xbf16>
    %c0_45 = arith.constant 0 : index
    %c9 = arith.constant 9 : index
    %c0_46 = arith.constant 0 : index
    %42 = vector.load %arg13[%c0_45, %c9, %c0_46] : memref<18x32x128xf32, #tpu.memory_space<vmem>>, vector<8x16x128xf32>
    %43 = arith.truncf %42 : vector<8x16x128xf32> to vector<8x16x128xbf16>
    %c1_47 = arith.constant 1 : index
    %c7_48 = arith.constant 7 : index
    %c0_49 = arith.constant 0 : index
    %44 = vector.load %arg13[%c1_47, %c7_48, %c0_49] : memref<18x32x128xf32, #tpu.memory_space<vmem>>, vector<8x16x128xf32>
    %45 = arith.truncf %44 : vector<8x16x128xf32> to vector<8x16x128xbf16>
    %c1_50 = arith.constant 1 : index
    %c8_51 = arith.constant 8 : index
    %c0_52 = arith.constant 0 : index
    %46 = vector.load %arg13[%c1_50, %c8_51, %c0_52] : memref<18x32x128xf32, #tpu.memory_space<vmem>>, vector<8x16x128xf32>
    %47 = arith.truncf %46 : vector<8x16x128xf32> to vector<8x16x128xbf16>
    %c1_53 = arith.constant 1 : index
    %c9_54 = arith.constant 9 : index
    %c0_55 = arith.constant 0 : index
    %48 = vector.load %arg13[%c1_53, %c9_54, %c0_55] : memref<18x32x128xf32, #tpu.memory_space<vmem>>, vector<8x16x128xf32>
    %49 = arith.truncf %48 : vector<8x16x128xf32> to vector<8x16x128xbf16>
    %c2 = arith.constant 2 : index
    %c7_56 = arith.constant 7 : index
    %c0_57 = arith.constant 0 : index
    %50 = vector.load %arg13[%c2, %c7_56, %c0_57] : memref<18x32x128xf32, #tpu.memory_space<vmem>>, vector<8x16x128xf32>
    %51 = arith.truncf %50 : vector<8x16x128xf32> to vector<8x16x128xbf16>
    %c2_58 = arith.constant 2 : index
    %c8_59 = arith.constant 8 : index
    %c0_60 = arith.constant 0 : index
    %52 = vector.load %arg13[%c2_58, %c8_59, %c0_60] : memref<18x32x128xf32, #tpu.memory_space<vmem>>, vector<8x16x128xf32>
    %53 = arith.truncf %52 : vector<8x16x128xf32> to vector<8x16x128xbf16>
    %c2_61 = arith.constant 2 : index
    %c9_62 = arith.constant 9 : index
    %c0_63 = arith.constant 0 : index
    %54 = vector.load %arg13[%c2_61, %c9_62, %c0_63] : memref<18x32x128xf32, #tpu.memory_space<vmem>>, vector<8x16x128xf32>
    %55 = arith.truncf %54 : vector<8x16x128xf32> to vector<8x16x128xbf16>
    %56 = tpu.concatenate %39, %41, %43, %45, %47, %49, %51, %53, %55 in 2 : vector<8x16x128xbf16>, vector<8x16x128xbf16>, vector<8x16x128xbf16>, vector<8x16x128xbf16>, vector<8x16x128xbf16>, vector<8x16x128xbf16>, vector<8x16x128xbf16>, vector<8x16x128xbf16>, vector<8x16x128xbf16> -> vector<8x16x1152xbf16>
    %57 = vector.shape_cast %56 : vector<8x16x1152xbf16> to vector<128x1152xbf16>
    %cst_64 = arith.constant dense<0.000000e+00> : vector<128x128xf32>
    %58 = tpu.matmul %57, %37, %cst_64 {dimension_numbers = #tpu.dot_dimension_numbers<[1], [0], [0], [1], [0, 0, 1, 1], [], []>} : vector<128x1152xbf16>, vector<1152x128xbf16>, vector<128x128xf32> -> vector<128x128xf32>
    %59 = vector.shape_cast %58 : vector<128x128xf32> to vector<8x16x128xf32>
    %c0_65 = arith.constant 0 : index
    %c0_66 = arith.constant 0 : index
    %60 = vector.load %arg5[%c0_65, %c0_66] : memref<1x128xf32, #tpu.memory_space<vmem>>, vector<1x128xf32>
    %61 = vector.shape_cast %60 : vector<1x128xf32> to vector<1x1x128xf32>
    %62 = vector.broadcast %61 : vector<1x1x128xf32> to vector<8x16x128xf32>
    %63 = arith.addf %59, %62 : vector<8x16x128xf32>
    %c0_67 = arith.constant 0 : index
    %c0_68 = arith.constant 0 : index
    %64 = vector.load %arg6[%c0_67, %c0_68] : memref<1x128xf32, #tpu.memory_space<vmem>>, vector<1x128xf32>
    %65 = vector.shape_cast %64 : vector<1x128xf32> to vector<1x1x128xf32>
    %66 = vector.broadcast %65 : vector<1x1x128xf32> to vector<8x16x128xf32>
    %67 = arith.mulf %63, %66 : vector<8x16x128xf32>
    %c0_69 = arith.constant 0 : index
    %c0_70 = arith.constant 0 : index
    %68 = vector.load %arg7[%c0_69, %c0_70] : memref<1x128xf32, #tpu.memory_space<vmem>>, vector<1x128xf32>
    %69 = vector.shape_cast %68 : vector<1x128xf32> to vector<1x1x128xf32>
    %70 = vector.broadcast %69 : vector<1x1x128xf32> to vector<8x16x128xf32>
    %71 = arith.addf %67, %70 : vector<8x16x128xf32>
    %cst_71 = arith.constant 0.000000e+00 : f32
    %72 = vector.broadcast %cst_71 : f32 to vector<8x16x128xf32>
    %73 = arith.maximumf %71, %72 : vector<8x16x128xf32>
    %c1_72 = arith.constant 1 : index
    %c8_73 = arith.constant 8 : index
    %c0_74 = arith.constant 0 : index
    %74 = vector.load %arg14[%c1_72, %c8_73, %c0_74] : memref<18x32x128xf32, #tpu.memory_space<vmem>>, vector<8x16x128xf32>
    tpu.vector_store %arg14[%c1_72, %c8_73, %c0_74], %73 {strides = array<i32>} : memref<18x32x128xf32, #tpu.memory_space<vmem>>, vector<8x16x128xf32>,
    %c8_75 = arith.constant 8 : index
    %c7_76 = arith.constant 7 : index
    %c0_77 = arith.constant 0 : index
    %75 = vector.load %arg13[%c8_75, %c7_76, %c0_77] : memref<18x32x128xf32, #tpu.memory_space<vmem>>, vector<8x16x128xf32>
    %76 = arith.truncf %75 : vector<8x16x128xf32> to vector<8x16x128xbf16>
    %c8_78 = arith.constant 8 : index
    %c8_79 = arith.constant 8 : index
    %c0_80 = arith.constant 0 : index
    %77 = vector.load %arg13[%c8_78, %c8_79, %c0_80] : memref<18x32x128xf32, #tpu.memory_space<vmem>>, vector<8x16x128xf32>
    %78 = arith.truncf %77 : vector<8x16x128xf32> to vector<8x16x128xbf16>
    %c8_81 = arith.constant 8 : index
    %c9_82 = arith.constant 9 : index
    %c0_83 = arith.constant 0 : index
    %79 = vector.load %arg13[%c8_81, %c9_82, %c0_83] : memref<18x32x128xf32, #tpu.memory_space<vmem>>, vector<8x16x128xf32>
    %80 = arith.truncf %79 : vector<8x16x128xf32> to vector<8x16x128xbf16>
    %c9_84 = arith.constant 9 : index
    %c7_85 = arith.constant 7 : index
    %c0_86 = arith.constant 0 : index
    %81 = vector.load %arg13[%c9_84, %c7_85, %c0_86] : memref<18x32x128xf32, #tpu.memory_space<vmem>>, vector<8x16x128xf32>
    %82 = arith.truncf %81 : vector<8x16x128xf32> to vector<8x16x128xbf16>
    %c9_87 = arith.constant 9 : index
    %c8_88 = arith.constant 8 : index
    %c0_89 = arith.constant 0 : index
    %83 = vector.load %arg13[%c9_87, %c8_88, %c0_89] : memref<18x32x128xf32, #tpu.memory_space<vmem>>, vector<8x16x128xf32>
    %84 = arith.truncf %83 : vector<8x16x128xf32> to vector<8x16x128xbf16>
    %c9_90 = arith.constant 9 : index
    %c9_91 = arith.constant 9 : index
    %c0_92 = arith.constant 0 : index
    %85 = vector.load %arg13[%c9_90, %c9_91, %c0_92] : memref<18x32x128xf32, #tpu.memory_space<vmem>>, vector<8x16x128xf32>
    %86 = arith.truncf %85 : vector<8x16x128xf32> to vector<8x16x128xbf16>
    %c10 = arith.constant 10 : index
    %c7_93 = arith.constant 7 : index
    %c0_94 = arith.constant 0 : index
    %87 = vector.load %arg13[%c10, %c7_93, %c0_94] : memref<18x32x128xf32, #tpu.memory_space<vmem>>, vector<8x16x128xf32>
    %88 = arith.truncf %87 : vector<8x16x128xf32> to vector<8x16x128xbf16>
    %c10_95 = arith.constant 10 : index
    %c8_96 = arith.constant 8 : index
    %c0_97 = arith.constant 0 : index
    %89 = vector.load %arg13[%c10_95, %c8_96, %c0_97] : memref<18x32x128xf32, #tpu.memory_space<vmem>>, vector<8x16x128xf32>
    %90 = arith.truncf %89 : vector<8x16x128xf32> to vector<8x16x128xbf16>
    %c10_98 = arith.constant 10 : index
    %c9_99 = arith.constant 9 : index
    %c0_100 = arith.constant 0 : index
    %91 = vector.load %arg13[%c10_98, %c9_99, %c0_100] : memref<18x32x128xf32, #tpu.memory_space<vmem>>, vector<8x16x128xf32>
    %92 = arith.truncf %91 : vector<8x16x128xf32> to vector<8x16x128xbf16>
    %93 = tpu.concatenate %76, %78, %80, %82, %84, %86, %88, %90, %92 in 2 : vector<8x16x128xbf16>, vector<8x16x128xbf16>, vector<8x16x128xbf16>, vector<8x16x128xbf16>, vector<8x16x128xbf16>, vector<8x16x128xbf16>, vector<8x16x128xbf16>, vector<8x16x128xbf16>, vector<8x16x128xbf16> -> vector<8x16x1152xbf16>
    %94 = vector.shape_cast %93 : vector<8x16x1152xbf16> to vector<128x1152xbf16>
    %cst_101 = arith.constant dense<0.000000e+00> : vector<128x128xf32>
    %95 = tpu.matmul %94, %37, %cst_101 {dimension_numbers = #tpu.dot_dimension_numbers<[1], [0], [0], [1], [0, 0, 1, 1], [], []>} : vector<128x1152xbf16>, vector<1152x128xbf16>, vector<128x128xf32> -> vector<128x128xf32>
    %96 = vector.shape_cast %95 : vector<128x128xf32> to vector<8x16x128xf32>
    %c0_102 = arith.constant 0 : index
    %c0_103 = arith.constant 0 : index
    %97 = vector.load %arg5[%c0_102, %c0_103] : memref<1x128xf32, #tpu.memory_space<vmem>>, vector<1x128xf32>
    %98 = vector.shape_cast %97 : vector<1x128xf32> to vector<1x1x128xf32>
    %99 = vector.broadcast %98 : vector<1x1x128xf32> to vector<8x16x128xf32>
    %100 = arith.addf %96, %99 : vector<8x16x128xf32>
    %c0_104 = arith.constant 0 : index
    %c0_105 = arith.constant 0 : index
    %101 = vector.load %arg6[%c0_104, %c0_105] : memref<1x128xf32, #tpu.memory_space<vmem>>, vector<1x128xf32>
    %102 = vector.shape_cast %101 : vector<1x128xf32> to vector<1x1x128xf32>
    %103 = vector.broadcast %102 : vector<1x1x128xf32> to vector<8x16x128xf32>
    %104 = arith.mulf %100, %103 : vector<8x16x128xf32>
    %c0_106 = arith.constant 0 : index
    %c0_107 = arith.constant 0 : index
    %105 = vector.load %arg7[%c0_106, %c0_107] : memref<1x128xf32, #tpu.memory_space<vmem>>, vector<1x128xf32>
    %106 = vector.shape_cast %105 : vector<1x128xf32> to vector<1x1x128xf32>
    %107 = vector.broadcast %106 : vector<1x1x128xf32> to vector<8x16x128xf32>
    %108 = arith.addf %104, %107 : vector<8x16x128xf32>
    %cst_108 = arith.constant 0.000000e+00 : f32
    %109 = vector.broadcast %cst_108 : f32 to vector<8x16x128xf32>
    %110 = arith.maximumf %108, %109 : vector<8x16x128xf32>
    %c9_109 = arith.constant 9 : index
    %c8_110 = arith.constant 8 : index
    %c0_111 = arith.constant 0 : index
    %111 = vector.load %arg14[%c9_109, %c8_110, %c0_111] : memref<18x32x128xf32, #tpu.memory_space<vmem>>, vector<8x16x128xf32>
    tpu.vector_store %arg14[%c9_109, %c8_110, %c0_111], %110 {strides = array<i32>} : memref<18x32x128xf32, #tpu.memory_space<vmem>>, vector<8x16x128xf32>,
    %c0_112 = arith.constant 0 : index
    %c0_113 = arith.constant 0 : index
    %112 = vector.load %arg8[%c0_112, %c0_113] : memref<1152x128xbf16, #tpu.memory_space<vmem>>, vector<1152x128xbf16>
    %c0_114 = arith.constant 0 : index
    %c0_115 = arith.constant 0 : index
    %113 = vector.load %arg10[%c0_114, %c0_115] : memref<128x128xbf16, #tpu.memory_space<vmem>>, vector<128x128xbf16>
    %c0_116 = arith.constant 0 : index
    %c7_117 = arith.constant 7 : index
    %c0_118 = arith.constant 0 : index
    %114 = tpu.strided_load %arg14[%c0_116, %c7_117, %c0_118] {strides = array<i32: 2, 2, 1>} : memref<18x32x128xf32, #tpu.memory_space<vmem>>, vector<8x8x128xf32>
    %115 = arith.truncf %114 : vector<8x8x128xf32> to vector<8x8x128xbf16>
    %c0_119 = arith.constant 0 : index
    %c8_120 = arith.constant 8 : index
    %c0_121 = arith.constant 0 : index
    %116 = tpu.strided_load %arg14[%c0_119, %c8_120, %c0_121] {strides = array<i32: 2, 2, 1>} : memref<18x32x128xf32, #tpu.memory_space<vmem>>, vector<8x8x128xf32>
    %117 = arith.truncf %116 : vector<8x8x128xf32> to vector<8x8x128xbf16>
    %c0_122 = arith.constant 0 : index
    %c9_123 = arith.constant 9 : index
    %c0_124 = arith.constant 0 : index
    %118 = tpu.strided_load %arg14[%c0_122, %c9_123, %c0_124] {strides = array<i32: 2, 2, 1>} : memref<18x32x128xf32, #tpu.memory_space<vmem>>, vector<8x8x128xf32>
    %119 = arith.truncf %118 : vector<8x8x128xf32> to vector<8x8x128xbf16>
    %c1_125 = arith.constant 1 : index
    %c7_126 = arith.constant 7 : index
    %c0_127 = arith.constant 0 : index
    %120 = tpu.strided_load %arg14[%c1_125, %c7_126, %c0_127] {strides = array<i32: 2, 2, 1>} : memref<18x32x128xf32, #tpu.memory_space<vmem>>, vector<8x8x128xf32>
    %121 = arith.truncf %120 : vector<8x8x128xf32> to vector<8x8x128xbf16>
    %c1_128 = arith.constant 1 : index
    %c8_129 = arith.constant 8 : index
    %c0_130 = arith.constant 0 : index
    %122 = tpu.strided_load %arg14[%c1_128, %c8_129, %c0_130] {strides = array<i32: 2, 2, 1>} : memref<18x32x128xf32, #tpu.memory_space<vmem>>, vector<8x8x128xf32>
    %123 = arith.truncf %122 : vector<8x8x128xf32> to vector<8x8x128xbf16>
    %c1_131 = arith.constant 1 : index
    %c9_132 = arith.constant 9 : index
    %c0_133 = arith.constant 0 : index
    %124 = tpu.strided_load %arg14[%c1_131, %c9_132, %c0_133] {strides = array<i32: 2, 2, 1>} : memref<18x32x128xf32, #tpu.memory_space<vmem>>, vector<8x8x128xf32>
    %125 = arith.truncf %124 : vector<8x8x128xf32> to vector<8x8x128xbf16>
    %c2_134 = arith.constant 2 : index
    %c7_135 = arith.constant 7 : index
    %c0_136 = arith.constant 0 : index
    %126 = tpu.strided_load %arg14[%c2_134, %c7_135, %c0_136] {strides = array<i32: 2, 2, 1>} : memref<18x32x128xf32, #tpu.memory_space<vmem>>, vector<8x8x128xf32>
    %127 = arith.truncf %126 : vector<8x8x128xf32> to vector<8x8x128xbf16>
    %c2_137 = arith.constant 2 : index
    %c8_138 = arith.constant 8 : index
    %c0_139 = arith.constant 0 : index
    %128 = tpu.strided_load %arg14[%c2_137, %c8_138, %c0_139] {strides = array<i32: 2, 2, 1>} : memref<18x32x128xf32, #tpu.memory_space<vmem>>, vector<8x8x128xf32>
    %129 = arith.truncf %128 : vector<8x8x128xf32> to vector<8x8x128xbf16>
    %c2_140 = arith.constant 2 : index
    %c9_141 = arith.constant 9 : index
    %c0_142 = arith.constant 0 : index
    %130 = tpu.strided_load %arg14[%c2_140, %c9_141, %c0_142] {strides = array<i32: 2, 2, 1>} : memref<18x32x128xf32, #tpu.memory_space<vmem>>, vector<8x8x128xf32>
    %131 = arith.truncf %130 : vector<8x8x128xf32> to vector<8x8x128xbf16>
    %132 = tpu.concatenate %115, %117, %119, %121, %123, %125, %127, %129, %131 in 2 : vector<8x8x128xbf16>, vector<8x8x128xbf16>, vector<8x8x128xbf16>, vector<8x8x128xbf16>, vector<8x8x128xbf16>, vector<8x8x128xbf16>, vector<8x8x128xbf16>, vector<8x8x128xbf16>, vector<8x8x128xbf16> -> vector<8x8x1152xbf16>
    %133 = vector.shape_cast %132 : vector<8x8x1152xbf16> to vector<64x1152xbf16>
    %cst_143 = arith.constant dense<0.000000e+00> : vector<64x128xf32>
    %134 = tpu.matmul %133, %112, %cst_143 {dimension_numbers = #tpu.dot_dimension_numbers<[1], [0], [0], [1], [0, 0, 1, 1], [], []>} : vector<64x1152xbf16>, vector<1152x128xbf16>, vector<64x128xf32> -> vector<64x128xf32>
    %135 = vector.shape_cast %134 : vector<64x128xf32> to vector<8x8x128xf32>
    %c0_144 = arith.constant 0 : index
    %c0_145 = arith.constant 0 : index
    %136 = vector.load %arg9[%c0_144, %c0_145] : memref<1x128xf32, #tpu.memory_space<vmem>>, vector<1x128xf32>
    %137 = vector.shape_cast %136 : vector<1x128xf32> to vector<1x1x128xf32>
    %138 = vector.broadcast %137 : vector<1x1x128xf32> to vector<8x8x128xf32>
    %139 = arith.addf %135, %138 : vector<8x8x128xf32>
    %c1_146 = arith.constant 1 : index
    %c8_147 = arith.constant 8 : index
    %c0_148 = arith.constant 0 : index
    %140 = tpu.strided_load %arg13[%c1_146, %c8_147, %c0_148] {strides = array<i32: 2, 2, 1>} : memref<18x32x128xf32, #tpu.memory_space<vmem>>, vector<8x8x128xf32>
    %141 = vector.shape_cast %140 : vector<8x8x128xf32> to vector<64x128xf32>
    %142 = arith.truncf %141 : vector<64x128xf32> to vector<64x128xbf16>
    %cst_149 = arith.constant dense<0.000000e+00> : vector<64x128xf32>
    %143 = tpu.matmul %142, %113, %cst_149 {dimension_numbers = #tpu.dot_dimension_numbers<[1], [0], [0], [1], [0, 0, 1, 1], [], []>} : vector<64x128xbf16>, vector<128x128xbf16>, vector<64x128xf32> -> vector<64x128xf32>
    %144 = vector.shape_cast %143 : vector<64x128xf32> to vector<8x8x128xf32>
    %c0_150 = arith.constant 0 : index
    %c0_151 = arith.constant 0 : index
    %145 = vector.load %arg11[%c0_150, %c0_151] : memref<1x128xf32, #tpu.memory_space<vmem>>, vector<1x128xf32>
    %146 = vector.shape_cast %145 : vector<1x128xf32> to vector<1x1x128xf32>
    %147 = vector.broadcast %146 : vector<1x1x128xf32> to vector<8x8x128xf32>
    %148 = arith.addf %144, %147 : vector<8x8x128xf32>
    %149 = arith.addf %139, %148 : vector<8x8x128xf32>
    %c0_152 = arith.constant 0 : index
    %c0_153 = arith.constant 0 : index
    %c0_154 = arith.constant 0 : index
    %c0_155 = arith.constant 0 : index
    %150 = vector.load %arg12[%c0_152, %c0_153, %c0_154, %c0_155] : memref<1x8x8x128xf32, #tpu.memory_space<vmem>>, vector<1x8x8x128xf32>
    %151 = vector.shape_cast %150 : vector<1x8x8x128xf32> to vector<8x8x128xf32>
    %152 = vector.shape_cast %149 : vector<8x8x128xf32> to vector<1x8x8x128xf32>
    tpu.vector_store %arg12[%c0_152, %c0_153, %c0_154, %c0_155], %152 {strides = array<i32>} : memref<1x8x8x128xf32, #tpu.memory_space<vmem>>, vector<1x8x8x128xf32>,
    return
  }
  func.func @transform_0(%arg0: i32) -> (i32, i32, i32, i32) {
    %c0_i32 = arith.constant 0 : i32
    %c0_i32_0 = arith.constant 0 : i32
    %c0_i32_1 = arith.constant 0 : i32
    %c0_i32_2 = arith.constant 0 : i32
    return %arg0, %c0_i32, %c0_i32_0, %c0_i32_1 : i32, i32, i32, i32
  }
  func.func @transform_1(%arg0: i32) -> (i32, i32) {
    %c0_i32 = arith.constant 0 : i32
    %c0_i32_0 = arith.constant 0 : i32
    %c0_i32_1 = arith.constant 0 : i32
    return %c0_i32, %c0_i32_0 : i32, i32
  }
  func.func @transform_2(%arg0: i32) -> (i32, i32) {
    %c0_i32 = arith.constant 0 : i32
    %c0_i32_0 = arith.constant 0 : i32
    %c0_i32_1 = arith.constant 0 : i32
    return %c0_i32, %c0_i32_0 : i32, i32
  }
  func.func @transform_3(%arg0: i32) -> (i32, i32) {
    %c0_i32 = arith.constant 0 : i32
    %c0_i32_0 = arith.constant 0 : i32
    %c0_i32_1 = arith.constant 0 : i32
    return %c0_i32, %c0_i32_0 : i32, i32
  }
  func.func @transform_4(%arg0: i32) -> (i32, i32) {
    %c0_i32 = arith.constant 0 : i32
    %c0_i32_0 = arith.constant 0 : i32
    %c0_i32_1 = arith.constant 0 : i32
    return %c0_i32, %c0_i32_0 : i32, i32
  }
  func.func @transform_5(%arg0: i32) -> (i32, i32) {
    %c0_i32 = arith.constant 0 : i32
    %c0_i32_0 = arith.constant 0 : i32
    %c0_i32_1 = arith.constant 0 : i32
    return %c0_i32, %c0_i32_0 : i32, i32
  }
  func.func @transform_6(%arg0: i32) -> (i32, i32) {
    %c0_i32 = arith.constant 0 : i32
    %c0_i32_0 = arith.constant 0 : i32
    %c0_i32_1 = arith.constant 0 : i32
    return %c0_i32, %c0_i32_0 : i32, i32
  }
  func.func @transform_7(%arg0: i32) -> (i32, i32) {
    %c0_i32 = arith.constant 0 : i32
    %c0_i32_0 = arith.constant 0 : i32
    %c0_i32_1 = arith.constant 0 : i32
    return %c0_i32, %c0_i32_0 : i32, i32
  }
  func.func @transform_8(%arg0: i32) -> (i32, i32) {
    %c0_i32 = arith.constant 0 : i32
    %c0_i32_0 = arith.constant 0 : i32
    %c0_i32_1 = arith.constant 0 : i32
    return %c0_i32, %c0_i32_0 : i32, i32
  }
  func.func @transform_9(%arg0: i32) -> (i32, i32) {
    %c0_i32 = arith.constant 0 : i32
    %c0_i32_0 = arith.constant 0 : i32
    %c0_i32_1 = arith.constant 0 : i32
    return %c0_i32, %c0_i32_0 : i32, i32
  }
  func.func @transform_10(%arg0: i32) -> (i32, i32) {
    %c0_i32 = arith.constant 0 : i32
    %c0_i32_0 = arith.constant 0 : i32
    %c0_i32_1 = arith.constant 0 : i32
    return %c0_i32, %c0_i32_0 : i32, i32
  }
  func.func @transform_11(%arg0: i32) -> (i32, i32, i32, i32) {
    %c0_i32 = arith.constant 0 : i32
    %c0_i32_0 = arith.constant 0 : i32
    %c0_i32_1 = arith.constant 0 : i32
    %c0_i32_2 = arith.constant 0 : i32
    return %arg0, %c0_i32, %c0_i32_0, %c0_i32_1 : i32, i32, i32, i32
  }
}

</mosaic_0001>

<llo_original>
// kernel: tpu_custom_call.1
$region0: #{tpu_custom_call.1}
  #allocation0 [shape = 'u32[]', space=smem, size = 0x4, offset = 0x4, fixed_abs, tag = 'smem constant byte address 0x4 - core index']
  #allocation1 [shape = 'u32[144,128]{1,0:T(1,128)}', space=vmem, size = 0x12000, scoped, tag = 'internal scratch']
  #allocation2 [shape = 'f32[18,32,128]{2,1,0:T(8,128)}', space=vmem, size = 0x48000, scoped, tag = 'scratch operand']
  #allocation3 [shape = 'f32[18,32,128]{2,1,0:T(8,128)}', space=vmem, size = 0x48000, scoped, tag = 'scratch operand']
  %s0 = inlined_call_operand.hbm [shape: f32[2,16,16,128], index: 0, kind: input, shape index: {}]
  %s1 = inlined_call_operand.vmem [shape: f32[1,128], index: 1, kind: input, shape index: {}]
  %s2 = inlined_call_operand.vmem [shape: f32[1,128], index: 2, kind: input, shape index: {}]
  %s3 = inlined_call_operand.hbm [shape: bf16[1152,128], index: 3, kind: input, shape index: {}]
  %s4 = inlined_call_operand.vmem [shape: f32[1,128], index: 4, kind: input, shape index: {}]
  %s5 = inlined_call_operand.vmem [shape: f32[1,128], index: 5, kind: input, shape index: {}]
  %s6 = inlined_call_operand.vmem [shape: f32[1,128], index: 6, kind: input, shape index: {}]
  %s7 = inlined_call_operand.hbm [shape: bf16[1152,128], index: 7, kind: input, shape index: {}]
  %s8 = inlined_call_operand.vmem [shape: f32[1,128], index: 8, kind: input, shape index: {}]
  %s9 = inlined_call_operand.hbm [shape: bf16[128,128], index: 9, kind: input, shape index: {}]
  %s10 = inlined_call_operand.vmem [shape: f32[1,128], index: 10, kind: input, shape index: {}]
  %s11 = inlined_call_operand.hbm [shape: f32[2,8,8,128], index: 11, kind: output, shape index: {}]
  %s12 = sld [smem:[#allocation0]]
  $region93: #{tpu_custom_call.1} parent=0
    _
  %s14 = ssub.s32 1, %s12
  %s15 = scalar_select 0, %s14, %s12
  $region1: #{tpu_custom_call.1} parent=0
    #allocation4 [shape = 'u8[262144]{0}', space=vmem, size = 0x40000, scoped, tag = 'input window, operand 0']
    #allocation5 [shape = 's32[2]{0}', space=sflag, size = 0x8, scoped, tag = 'scoped memory for tpu_custom_call.1']
    #allocation6 [shape = 's32[2]{0}', space=sflag, size = 0x8, scoped, tag = 'scoped memory for tpu_custom_call.1']
    #allocation7 [shape = 'u8[294912]{0}', space=vmem, size = 0x48000, scoped, tag = 'input window, operand 3, single buffered']
    #allocation8 [shape = 's32[1]{0}', space=sflag, size = 0x4, scoped, tag = 'scoped memory for tpu_custom_call.1']
    #allocation9 [shape = 'u8[294912]{0}', space=vmem, size = 0x48000, scoped, tag = 'input window, operand 7, single buffered']
    #allocation10 [shape = 'u8[32768]{0}', space=vmem, size = 0x8000, scoped, tag = 'input window, operand 9, single buffered']
    #allocation11 [shape = 's32[1]{0}', space=sflag, size = 0x4, scoped, tag = 'scoped memory for tpu_custom_call.1']
    #allocation12 [shape = 'u8[65536]{0}', space=vmem, size = 0x10000, scoped, tag = 'output window, operand 0']
    %16 = vsyncpa [#allocation5], 0
    %s17 = scalar_lea.sflag [#allocation5], 1
    %18 = vsyncpa %s17, 0
    %19 = vsyncpa [#allocation8], 0
    %20 = vsyncpa [#allocation11], 0
    %21 = vsyncpa [#allocation6], 0
    %s22 = scalar_lea.sflag [#allocation6], 1
    %23 = vsyncpa %s22, 0
    loop: start=0, step=1, limit=4
    $region2: #{tpu_custom_call.1} parent=1 // loop_pre_header
      _
    $region3: #{tpu_custom_call.1} parent=1 // loop_header
      %s25 = sphi 0, %s29
      %p26 = scmp.ge.s32.totalorder %s25, 4
      %s35 = sphi 0, %s37
      %s38 = sphi 0, %s35
      %s39 = sphi 0, %s38
      %s55 = sphi 0, %s39
      %s59 = sphi 0, %s59
      %s61 = sphi 0, %s59
      %s62 = sphi 0, %s61
      %s76 = sphi 0, %s62
      %s80 = sphi 0, %s80
      %s82 = sphi 0, %s80
      %s83 = sphi 0, %s82
      %s97 = sphi 0, %s83
      %s101 = sphi 0, %s101
      %s103 = sphi 0, %s101
      %s104 = sphi 0, %s103
      %s118 = sphi 0, %s104
      %s122 = sphi 0, %s122
      %s124 = sphi 0, %s122
      %s125 = sphi 0, %s124
      %s139 = sphi 0, %s125
      %s143 = sphi 0, %s143
      %s145 = sphi 0, %s143
      %s146 = sphi 0, %s145
      %s160 = sphi 0, %s146
      %s164 = sphi 0, %s164
      %s166 = sphi 0, %s164
      %s167 = sphi 0, %s166
      %s181 = sphi 0, %s167
      %s185 = sphi 0, %s185
      %s187 = sphi 0, %s185
      %s188 = sphi 0, %s187
      %s202 = sphi 0, %s188
      %s206 = sphi 0, %s206
      %s208 = sphi 0, %s206
      %s209 = sphi 0, %s208
      %s223 = sphi 0, %s209
      %s227 = sphi 0, %s227
      %s229 = sphi 0, %s227
      %s230 = sphi 0, %s229
      %s244 = sphi 0, %s230
      %s248 = sphi 0, %s248
      %s250 = sphi 0, %s248
      %s251 = sphi 0, %s250
      %s265 = sphi 0, %s251
      %s271 = sphi 0, %s273
      %s274 = sphi 0, %s271
      %s275 = sphi 0, %s274
      %s291 = sphi 0, %s275
    $region4: #{tpu_custom_call.1} parent=1 // loop_header_branch
      %28 = sbr.rel (%p26) target = $region8
    $region5: #{tpu_custom_call.1} parent=1 // loop_body
      %s30 = ssub.s32 %s25, 1
      %s31 = ssub.s32 %s25, 2
      %s32 = sadd.s32 %s25, 1
      %s33 = ssub.s32 %s25, %s32
      %p34 = scmp.eq.s32.totalorder %s33, 0
      %s36 = sadd.s32 %s35, 1
      %s37 = scalar_select %p34, %s35, %s36
      %p40 = pneg %p34
      %p41 = scmp.eq.s32.totalorder %s25, 1
      %p42 = por %p40, %p41
      %p43 = scmp.ne.s32.totalorder %s35, %s38
      %p44 = scmp.eq.s32.totalorder %s25, 0
      %p45 = por %p43, %p44
      %p46 = scmp.ne.s32.totalorder %s35, %s38
      %p47 = scmp.eq.s32.totalorder %s30, 1
      %p48 = por %p46, %p47
      %p49 = scmp.ne.s32.totalorder %s38, %s39
      %p50 = scmp.eq.s32.totalorder %s30, 0
      %p51 = por %p49, %p50
      %p52 = scmp.ne.s32.totalorder %s38, %s39
      %p53 = scmp.eq.s32.totalorder %s31, 1
      %p54 = por %p52, %p53
      %p56 = scmp.ne.s32.totalorder %s39, %s55
      %p57 = scmp.eq.s32.totalorder %s31, 0
      %p58 = por %p56, %p57
      %s60 = sadd.s32 %s59, 1
      %p63 = scmp.eq.s32.totalorder %s25, 1
      %p64 = scmp.ne.s32.totalorder %s59, %s61
      %p65 = scmp.eq.s32.totalorder %s25, 0
      %p66 = por %p64, %p65
      %p67 = scmp.ne.s32.totalorder %s59, %s61
      %p68 = scmp.eq.s32.totalorder %s30, 1
      %p69 = por %p67, %p68
      %p70 = scmp.ne.s32.totalorder %s61, %s62
      %p71 = scmp.eq.s32.totalorder %s30, 0
      %p72 = por %p70, %p71
      %p73 = scmp.ne.s32.totalorder %s61, %s62
      %p74 = scmp.eq.s32.totalorder %s31, 1
      %p75 = por %p73, %p74
      %p77 = scmp.ne.s32.totalorder %s62, %s76
      %p78 = scmp.eq.s32.totalorder %s31, 0
      %p79 = por %p77, %p78
      %s81 = sadd.s32 %s80, 1
      %p84 = scmp.eq.s32.totalorder %s25, 1
      %p85 = scmp.ne.s32.totalorder %s80, %s82
      %p86 = scmp.eq.s32.totalorder %s25, 0
      %p87 = por %p85, %p86
      %p88 = scmp.ne.s32.totalorder %s80, %s82
      %p89 = scmp.eq.s32.totalorder %s30, 1
      %p90 = por %p88, %p89
      %p91 = scmp.ne.s32.totalorder %s82, %s83
      %p92 = scmp.eq.s32.totalorder %s30, 0
      %p93 = por %p91, %p92
      %p94 = scmp.ne.s32.totalorder %s82, %s83
      %p95 = scmp.eq.s32.totalorder %s31, 1
      %p96 = por %p94, %p95
      %p98 = scmp.ne.s32.totalorder %s83, %s97
      %p99 = scmp.eq.s32.totalorder %s31, 0
      %p100 = por %p98, %p99
      %s102 = sadd.s32 %s101, 1
      %p105 = scmp.eq.s32.totalorder %s25, 1
      %p106 = scmp.ne.s32.totalorder %s101, %s103
      %p107 = scmp.eq.s32.totalorder %s25, 0
      %p108 = por %p106, %p107
      %p109 = scmp.ne.s32.totalorder %s101, %s103
      %p110 = scmp.eq.s32.totalorder %s30, 1
      %p111 = por %p109, %p110
      %p112 = scmp.ne.s32.totalorder %s103, %s104
      %p113 = scmp.eq.s32.totalorder %s30, 0
      %p114 = por %p112, %p113
      %p115 = scmp.ne.s32.totalorder %s103, %s104
      %p116 = scmp.eq.s32.totalorder %s31, 1
      %p117 = por %p115, %p116
      %p119 = scmp.ne.s32.totalorder %s104, %s118
      %p120 = scmp.eq.s32.totalorder %s31, 0
      %p121 = por %p119, %p120
      %s123 = sadd.s32 %s122, 1
      %p126 = scmp.eq.s32.totalorder %s25, 1
      %p127 = scmp.ne.s32.totalorder %s122, %s124
      %p128 = scmp.eq.s32.totalorder %s25, 0
      %p129 = por %p127, %p128
      %p130 = scmp.ne.s32.totalorder %s122, %s124
      %p131 = scmp.eq.s32.totalorder %s30, 1
      %p132 = por %p130, %p131
      %p133 = scmp.ne.s32.totalorder %s124, %s125
      %p134 = scmp.eq.s32.totalorder %s30, 0
      %p135 = por %p133, %p134
      %p136 = scmp.ne.s32.totalorder %s124, %s125
      %p137 = scmp.eq.s32.totalorder %s31, 1
      %p138 = por %p136, %p137
      %p140 = scmp.ne.s32.totalorder %s125, %s139
      %p141 = scmp.eq.s32.totalorder %s31, 0
      %p142 = por %p140, %p141
      %s144 = sadd.s32 %s143, 1
      %p147 = scmp.eq.s32.totalorder %s25, 1
      %p148 = scmp.ne.s32.totalorder %s143, %s145
      %p149 = scmp.eq.s32.totalorder %s25, 0
      %p150 = por %p148, %p149
      %p151 = scmp.ne.s32.totalorder %s143, %s145
      %p152 = scmp.eq.s32.totalorder %s30, 1
      %p153 = por %p151, %p152
      %p154 = scmp.ne.s32.totalorder %s145, %s146
      %p155 = scmp.eq.s32.totalorder %s30, 0
      %p156 = por %p154, %p155
      %p157 = scmp.ne.s32.totalorder %s145, %s146
      %p158 = scmp.eq.s32.totalorder %s31, 1
      %p159 = por %p157, %p158
      %p161 = scmp.ne.s32.totalorder %s146, %s160
      %p162 = scmp.eq.s32.totalorder %s31, 0
      %p163 = por %p161, %p162
      %s165 = sadd.s32 %s164, 1
      %p168 = scmp.eq.s32.totalorder %s25, 1
      %p169 = scmp.ne.s32.totalorder %s164, %s166
      %p170 = scmp.eq.s32.totalorder %s25, 0
      %p171 = por %p169, %p170
      %p172 = scmp.ne.s32.totalorder %s164, %s166
      %p173 = scmp.eq.s32.totalorder %s30, 1
      %p174 = por %p172, %p173
      %p175 = scmp.ne.s32.totalorder %s166, %s167
      %p176 = scmp.eq.s32.totalorder %s30, 0
      %p177 = por %p175, %p176
      %p178 = scmp.ne.s32.totalorder %s166, %s167
      %p179 = scmp.eq.s32.totalorder %s31, 1
      %p180 = por %p178, %p179
      %p182 = scmp.ne.s32.totalorder %s167, %s181
      %p183 = scmp.eq.s32.totalorder %s31, 0
      %p184 = por %p182, %p183
      %s186 = sadd.s32 %s185, 1
      %p189 = scmp.eq.s32.totalorder %s25, 1
      %p190 = scmp.ne.s32.totalorder %s185, %s187
      %p191 = scmp.eq.s32.totalorder %s25, 0
      %p192 = por %p190, %p191
      %p193 = scmp.ne.s32.totalorder %s185, %s187
      %p194 = scmp.eq.s32.totalorder %s30, 1
      %p195 = por %p193, %p194
      %p196 = scmp.ne.s32.totalorder %s187, %s188
      %p197 = scmp.eq.s32.totalorder %s30, 0
      %p198 = por %p196, %p197
      %p199 = scmp.ne.s32.totalorder %s187, %s188
      %p200 = scmp.eq.s32.totalorder %s31, 1
      %p201 = por %p199, %p200
      %p203 = scmp.ne.s32.totalorder %s188, %s202
      %p204 = scmp.eq.s32.totalorder %s31, 0
      %p205 = por %p203, %p204
      %s207 = sadd.s32 %s206, 1
      %p210 = scmp.eq.s32.totalorder %s25, 1
      %p211 = scmp.ne.s32.totalorder %s206, %s208
      %p212 = scmp.eq.s32.totalorder %s25, 0
      %p213 = por %p211, %p212
      %p214 = scmp.ne.s32.totalorder %s206, %s208
      %p215 = scmp.eq.s32.totalorder %s30, 1
      %p216 = por %p214, %p215
      %p217 = scmp.ne.s32.totalorder %s208, %s209
      %p218 = scmp.eq.s32.totalorder %s30, 0
      %p219 = por %p217, %p218
      %p220 = scmp.ne.s32.totalorder %s208, %s209
      %p221 = scmp.eq.s32.totalorder %s31, 1
      %p222 = por %p220, %p221
      %p224 = scmp.ne.s32.totalorder %s209, %s223
      %p225 = scmp.eq.s32.totalorder %s31, 0
      %p226 = por %p224, %p225
      %s228 = sadd.s32 %s227, 1
      %p231 = scmp.eq.s32.totalorder %s25, 1
      %p232 = scmp.ne.s32.totalorder %s227, %s229
      %p233 = scmp.eq.s32.totalorder %s25, 0
      %p234 = por %p232, %p233
      %p235 = scmp.ne.s32.totalorder %s227, %s229
      %p236 = scmp.eq.s32.totalorder %s30, 1
      %p237 = por %p235, %p236
      %p238 = scmp.ne.s32.totalorder %s229, %s230
      %p239 = scmp.eq.s32.totalorder %s30, 0
      %p240 = por %p238, %p239
      %p241 = scmp.ne.s32.totalorder %s229, %s230
      %p242 = scmp.eq.s32.totalorder %s31, 1
      %p243 = por %p241, %p242
      %p245 = scmp.ne.s32.totalorder %s230, %s244
      %p246 = scmp.eq.s32.totalorder %s31, 0
      %p247 = por %p245, %p246
      %s249 = sadd.s32 %s248, 1
      %p252 = scmp.eq.s32.totalorder %s25, 1
      %p253 = scmp.ne.s32.totalorder %s248, %s250
      %p254 = scmp.eq.s32.totalorder %s25, 0
      %p255 = por %p253, %p254
      %p256 = scmp.ne.s32.totalorder %s248, %s250
      %p257 = scmp.eq.s32.totalorder %s30, 1
      %p258 = por %p256, %p257
      %p259 = scmp.ne.s32.totalorder %s250, %s251
      %p260 = scmp.eq.s32.totalorder %s30, 0
      %p261 = por %p259, %p260
      %p262 = scmp.ne.s32.totalorder %s250, %s251
      %p263 = scmp.eq.s32.totalorder %s31, 1
      %p264 = por %p262, %p263
      %p266 = scmp.ne.s32.totalorder %s251, %s265
      %p267 = scmp.eq.s32.totalorder %s31, 0
      %p268 = por %p266, %p267
      %s269 = ssub.s32 %s25, %s32
      %p270 = scmp.eq.s32.totalorder %s269, 0
      %s272 = sadd.s32 %s271, 1
      %s273 = scalar_select %p270, %s271, %s272
      %p276 = pneg %p270
      %p277 = scmp.eq.s32.totalorder %s25, 1
      %p278 = por %p276, %p277
      %p279 = scmp.ne.s32.totalorder %s271, %s274
      %p280 = scmp.eq.s32.totalorder %s25, 0
      %p281 = por %p279, %p280
      %p282 = scmp.ne.s32.totalorder %s271, %s274
      %p283 = scmp.eq.s32.totalorder %s30, 1
      %p284 = por %p282, %p283
      %p285 = scmp.ne.s32.totalorder %s274, %s275
      %p286 = scmp.eq.s32.totalorder %s30, 0
      %p287 = por %p285, %p286
      %p288 = scmp.ne.s32.totalorder %s274, %s275
      %p289 = scmp.eq.s32.totalorder %s31, 1
      %p290 = por %p288, %p289
      %p292 = scmp.ne.s32.totalorder %s275, %s291
      %p293 = scmp.eq.s32.totalorder %s31, 0
      %p294 = por %p292, %p293
      %p295 = scmp.le.s32.totalorder 1, %s25
      %p296 = scmp.lt.s32.totalorder %s25, 3
      %p297 = pnand %p295, %p296
      %p298 = pneg %p297
      // Predicated region
      $region9: #{tpu_custom_call.1} parent=5 // pred_check
        _
      $region10: #{tpu_custom_call.1} parent=5 // pred_check_branch
        %300 = sbr.rel (%p297) target = $region12
      $region11: #{tpu_custom_call.1} parent=5 // pred_region
        %s301 = ssub.s32 %s25, 1
        // Predicated region
        $region13: #{tpu_custom_call.1} parent=11 // pred_check
          %p302 = pneg %p72
        $region14: #{tpu_custom_call.1} parent=11 // pred_check_branch
          %304 = sbr.rel (%p302) target = $region16
        $region15: #{tpu_custom_call.1} parent=11 // pred_region
          _
        $region16: #{tpu_custom_call.1} parent=11 // pred_fallthru
          _
        // Predicated region
        $region17: #{tpu_custom_call.1} parent=11 // pred_check
          %p305 = pneg %p93
        $region18: #{tpu_custom_call.1} parent=11 // pred_check_branch
          %307 = sbr.rel (%p305) target = $region20
        $region19: #{tpu_custom_call.1} parent=11 // pred_region
          _
        $region20: #{tpu_custom_call.1} parent=11 // pred_fallthru
          _
        // Predicated region
        $region21: #{tpu_custom_call.1} parent=11 // pred_check
          %p308 = pneg %p114
        $region22: #{tpu_custom_call.1} parent=11 // pred_check_branch
          %310 = sbr.rel (%p308) target = $region24
        $region23: #{tpu_custom_call.1} parent=11 // pred_region
          %s312 = ssub.s32 9216, 9216
          %313 = vsyncadd [#allocation8], %s312
          %s314 = sshll.u32 [#allocation7], 4
          %s315 = int_to_ptr.vmem [resolvable:$true] %s314
          %320 = dma.hbm_to_vmem [thread:$0]  %s3, 9216, %s315, [#allocation8], 64, 64, 4
        $region24: #{tpu_custom_call.1} parent=11 // pred_fallthru
          _
        // Predicated region
        $region25: #{tpu_custom_call.1} parent=11 // pred_check
          %p321 = pneg %p135
        $region26: #{tpu_custom_call.1} parent=11 // pred_check_branch
          %323 = sbr.rel (%p321) target = $region28
        $region27: #{tpu_custom_call.1} parent=11 // pred_region
          _
        $region28: #{tpu_custom_call.1} parent=11 // pred_fallthru
          _
        // Predicated region
        $region29: #{tpu_custom_call.1} parent=11 // pred_check
          %p324 = pneg %p156
        $region30: #{tpu_custom_call.1} parent=11 // pred_check_branch
          %326 = sbr.rel (%p324) target = $region32
        $region31: #{tpu_custom_call.1} parent=11 // pred_region
          _
        $region32: #{tpu_custom_call.1} parent=11 // pred_fallthru
          _
        // Predicated region
        $region33: #{tpu_custom_call.1} parent=11 // pred_check
          %p327 = pneg %p177
        $region34: #{tpu_custom_call.1} parent=11 // pred_check_branch
          %329 = sbr.rel (%p327) target = $region36
        $region35: #{tpu_custom_call.1} parent=11 // pred_region
          _
        $region36: #{tpu_custom_call.1} parent=11 // pred_fallthru
          _
        // Predicated region
        $region37: #{tpu_custom_call.1} parent=11 // pred_check
          %p330 = pneg %p198
        $region38: #{tpu_custom_call.1} parent=11 // pred_check_branch
          %332 = sbr.rel (%p330) target = $region40
        $region39: #{tpu_custom_call.1} parent=11 // pred_region
          %s334 = ssub.s32 9216, 9216
          %335 = vsyncadd [#allocation8], %s334
          %s336 = sshll.u32 [#allocation9], 4
          %s337 = int_to_ptr.vmem [resolvable:$true] %s336
          %342 = dma.hbm_to_vmem [thread:$0]  %s7, 9216, %s337, [#allocation8], 64, 64, 4
        $region40: #{tpu_custom_call.1} parent=11 // pred_fallthru
          _
        // Predicated region
        $region41: #{tpu_custom_call.1} parent=11 // pred_check
          %p343 = pneg %p219
        $region42: #{tpu_custom_call.1} parent=11 // pred_check_branch
          %345 = sbr.rel (%p343) target = $region44
        $region43: #{tpu_custom_call.1} parent=11 // pred_region
          _
        $region44: #{tpu_custom_call.1} parent=11 // pred_fallthru
          _
        // Predicated region
        $region45: #{tpu_custom_call.1} parent=11 // pred_check
          %p346 = pneg %p240
        $region46: #{tpu_custom_call.1} parent=11 // pred_check_branch
          %348 = sbr.rel (%p346) target = $region48
        $region47: #{tpu_custom_call.1} parent=11 // pred_region
          %s350 = ssub.s32 1024, 1024
          %351 = vsyncadd [#allocation11], %s350
          %s352 = sshll.u32 [#allocation10], 4
          %s353 = int_to_ptr.vmem [resolvable:$true] %s352
          %358 = dma.hbm_to_vmem [thread:$0]  %s9, 1024, %s353, [#allocation11], 64, 64, 4
        $region48: #{tpu_custom_call.1} parent=11 // pred_fallthru
          _
        // Predicated region
        $region49: #{tpu_custom_call.1} parent=11 // pred_check
          %p359 = pneg %p261
        $region50: #{tpu_custom_call.1} parent=11 // pred_check_branch
          %361 = sbr.rel (%p359) target = $region52
        $region51: #{tpu_custom_call.1} parent=11 // pred_region
          _
        $region52: #{tpu_custom_call.1} parent=11 // pred_fallthru
          _
      $region12: #{tpu_custom_call.1} parent=5 // pred_fallthru
        _
      %p362 = scmp.lt.s32.totalorder %s25, 2
      // Predicated region
      $region53: #{tpu_custom_call.1} parent=5 // pred_check
        %p363 = pneg %p362
      $region54: #{tpu_custom_call.1} parent=5 // pred_check_branch
        %365 = sbr.rel (%p363) target = $region56
      $region55: #{tpu_custom_call.1} parent=5 // pred_region
        // Predicated region
        $region57: #{tpu_custom_call.1} parent=55 // pred_check
          %p366 = pneg %p45
        $region58: #{tpu_custom_call.1} parent=55 // pred_check_branch
          %368 = sbr.rel (%p366) target = $region60
        $region59: #{tpu_custom_call.1} parent=55 // pred_region
          %s369 = sand.u32 %s35, 1
          %s370 = scalar_lea.sflag [#allocation5], %s369
          %s371 = sand.u32 %s35, 1
          %s372 = smul.addr %s371, 256
          %s373 = scalar_lea.vmem [#allocation4], %s372
          %s375 = ssub.s32 4096, 4096
          %376 = vsyncadd %s370, %s375
          %s377 = smul.addr %s25, 32
          %s378 = smul.addr %s377, 128
          %s379 = scalar_lea.hbm %s0, %s378
          %s380 = sshll.u32 %s373, 4
          %s381 = int_to_ptr.vmem [resolvable:$true] %s380
          %386 = dma.hbm_to_vmem [thread:$0]  %s379, 4096, %s381, %s370, 128, 128, 8
        $region60: #{tpu_custom_call.1} parent=55 // pred_fallthru
          _
      $region56: #{tpu_custom_call.1} parent=5 // pred_fallthru
        _
      %p387 = scmp.le.s32.totalorder 1, %s25
      %p388 = scmp.lt.s32.totalorder %s25, 3
      %p389 = pnand %p387, %p388
      %p390 = pneg %p389
      // Predicated region
      $region61: #{tpu_custom_call.1} parent=5 // pred_check
        _
      $region62: #{tpu_custom_call.1} parent=5 // pred_check_branch
        %392 = sbr.rel (%p389) target = $region64
      $region63: #{tpu_custom_call.1} parent=5 // pred_region
        %s393 = ssub.s32 %s25, 1
        %s394 = sand.u32 %s38, 1
        %s395 = scalar_lea.sflag [#allocation5], %s394
        %s396 = sand.u32 %s38, 1
        %s397 = smul.addr %s396, 256
        %s398 = scalar_lea.vmem [#allocation4], %s397
        // Predicated region
        $region65: #{tpu_custom_call.1} parent=63 // pred_check
          %p399 = pneg %p51
        $region66: #{tpu_custom_call.1} parent=63 // pred_check_branch
          %401 = sbr.rel (%p399) target = $region68
        $region67: #{tpu_custom_call.1} parent=63 // pred_region
          %402 = dma.done %s395, 4096
        $region68: #{tpu_custom_call.1} parent=63 // pred_fallthru
          _
        // Predicated region
        $region69: #{tpu_custom_call.1} parent=63 // pred_check
          %p403 = pneg %p114
        $region70: #{tpu_custom_call.1} parent=63 // pred_check_branch
          %405 = sbr.rel (%p403) target = $region72
        $region71: #{tpu_custom_call.1} parent=63 // pred_region
          %406 = dma.done [#allocation8], 9216
        $region72: #{tpu_custom_call.1} parent=63 // pred_fallthru
          _
        // Predicated region
        $region73: #{tpu_custom_call.1} parent=63 // pred_check
          %p407 = pneg %p198
        $region74: #{tpu_custom_call.1} parent=63 // pred_check_branch
          %409 = sbr.rel (%p407) target = $region76
        $region75: #{tpu_custom_call.1} parent=63 // pred_region
          %410 = dma.done [#allocation8], 9216
        $region76: #{tpu_custom_call.1} parent=63 // pred_fallthru
          _
        // Predicated region
        $region77: #{tpu_custom_call.1} parent=63 // pred_check
          %p411 = pneg %p240
        $region78: #{tpu_custom_call.1} parent=63 // pred_check_branch
          %413 = sbr.rel (%p411) target = $region80
        $region79: #{tpu_custom_call.1} parent=63 // pred_region
          %414 = dma.done [#allocation11], 1024
        $region80: #{tpu_custom_call.1} parent=63 // pred_fallthru
          _
        %s415 = sand.u32 %s38, 1
        %s416 = scalar_lea.sflag [#allocation5], %s415
        %s417 = sand.u32 %s38, 1
        %s418 = smul.addr %s417, 256
        %s419 = scalar_lea.vmem [#allocation4], %s418
        %p420 = pneg %p51
        %p421 = pneg %p48
        %p422 = pneg %p72
        %p423 = pneg %p69
        %p424 = pneg %p93
        %p425 = pneg %p90
        %p426 = pneg %p114
        %p427 = pneg %p111
        %p428 = pneg %p135
        %p429 = pneg %p132
        %p430 = pneg %p156
        %p431 = pneg %p153
        %p432 = pneg %p177
        %p433 = pneg %p174
        %p434 = pneg %p198
        %p435 = pneg %p195
        %p436 = pneg %p219
        %p437 = pneg %p216
        %p438 = pneg %p240
        %p439 = pneg %p237
        %p440 = pneg %p261
        %p441 = pneg %p258
        %p442 = pneg %p287
        %p443 = pneg %p284
        %s444 = sand.u32 %s274, 1
        %s445 = scalar_lea.sflag [#allocation6], %s444
        %s446 = sand.u32 %s274, 1
        %s447 = smul.addr %s446, 64
        %s448 = scalar_lea.vmem [#allocation12], %s447
        %450 = vst [vmem:[#allocation2] sm:$0xff] 0.0
        %451 = vst [vmem:[#allocation2 + $0x8] sm:$0xff] 0.0
        %452 = vst [vmem:[#allocation2 + $0x10] sm:$0xff] 0.0
        %453 = vst [vmem:[#allocation2 + $0x18] sm:$0xff] 0.0
        %s454 = scalar_lea.vmem [#allocation2], 544
        %455 = vst [vmem:[%s454] sm:$0xff] 0.0
        %456 = vst [vmem:[%s454 + $0x8] sm:$0xff] 0.0
        %457 = vst [vmem:[%s454 + $0x10] sm:$0xff] 0.0
        %458 = vst [vmem:[%s454 + $0x18] sm:$0xff] 0.0
        %459 = vst [vmem:[#allocation2 + $0x7] sm:$0x1] 0.0
        %460 = vst [vmem:[#allocation2 + $0x27] sm:$0x1] 0.0
        %461 = vst [vmem:[#allocation2 + $0x47] sm:$0x1] 0.0
        %462 = vst [vmem:[#allocation2 + $0x67] sm:$0x1] 0.0
        %463 = vst [vmem:[#allocation2 + $0x87] sm:$0x1] 0.0
        %464 = vst [vmem:[#allocation2 + $0xa7] sm:$0x1] 0.0
        %465 = vst [vmem:[#allocation2 + $0xc7] sm:$0x1] 0.0
        %466 = vst [vmem:[#allocation2 + $0xe7] sm:$0x1] 0.0
        %467 = vst [vmem:[#allocation2 + $0x107] sm:$0x1] 0.0
        %468 = vst [vmem:[#allocation2 + $0x127] sm:$0x1] 0.0
        %469 = vst [vmem:[#allocation2 + $0x147] sm:$0x1] 0.0
        %470 = vst [vmem:[#allocation2 + $0x167] sm:$0x1] 0.0
        %471 = vst [vmem:[#allocation2 + $0x187] sm:$0x1] 0.0
        %472 = vst [vmem:[#allocation2 + $0x1a7] sm:$0x1] 0.0
        %473 = vst [vmem:[#allocation2 + $0x1c7] sm:$0x1] 0.0
        %474 = vst [vmem:[#allocation2 + $0x1e7] sm:$0x1] 0.0
        %475 = vst [vmem:[#allocation2 + $0x207] sm:$0x1] 0.0
        %476 = vst [vmem:[#allocation2 + $0x227] sm:$0x1] 0.0
        %477 = vst [vmem:[#allocation2 + $0x18] sm:$0x1] 0.0
        %478 = vst [vmem:[#allocation2 + $0x38] sm:$0x1] 0.0
        %479 = vst [vmem:[#allocation2 + $0x58] sm:$0x1] 0.0
        %480 = vst [vmem:[#allocation2 + $0x78] sm:$0x1] 0.0
        %481 = vst [vmem:[#allocation2 + $0x98] sm:$0x1] 0.0
        %482 = vst [vmem:[#allocation2 + $0xb8] sm:$0x1] 0.0
        %483 = vst [vmem:[#allocation2 + $0xd8] sm:$0x1] 0.0
        %484 = vst [vmem:[#allocation2 + $0xf8] sm:$0x1] 0.0
        %485 = vst [vmem:[#allocation2 + $0x118] sm:$0x1] 0.0
        %486 = vst [vmem:[#allocation2 + $0x138] sm:$0x1] 0.0
        %487 = vst [vmem:[#allocation2 + $0x158] sm:$0x1] 0.0
        %488 = vst [vmem:[#allocation2 + $0x178] sm:$0x1] 0.0
        %489 = vst [vmem:[#allocation2 + $0x198] sm:$0x1] 0.0
        %490 = vst [vmem:[#allocation2 + $0x1b8] sm:$0x1] 0.0
        %491 = vst [vmem:[#allocation2 + $0x1d8] sm:$0x1] 0.0
        %492 = vst [vmem:[#allocation2 + $0x1f8] sm:$0x1] 0.0
        %493 = vst [vmem:[#allocation2 + $0x218] sm:$0x1] 0.0
        %494 = vst [vmem:[#allocation2 + $0x238] sm:$0x1] 0.0
        %495 = vst [vmem:[#allocation3] sm:$0xff] 0.0
        %496 = vst [vmem:[#allocation3 + $0x8] sm:$0xff] 0.0
        %497 = vst [vmem:[#allocation3 + $0x10] sm:$0xff] 0.0
        %498 = vst [vmem:[#allocation3 + $0x18] sm:$0xff] 0.0
        %s499 = scalar_lea.vmem [#allocation3], 544
        %500 = vst [vmem:[%s499] sm:$0xff] 0.0
        %501 = vst [vmem:[%s499 + $0x8] sm:$0xff] 0.0
        %502 = vst [vmem:[%s499 + $0x10] sm:$0xff] 0.0
        %503 = vst [vmem:[%s499 + $0x18] sm:$0xff] 0.0
        %504 = vst [vmem:[#allocation3 + $0x7] sm:$0x1] 0.0
        %505 = vst [vmem:[#allocation3 + $0x27] sm:$0x1] 0.0
        %506 = vst [vmem:[#allocation3 + $0x47] sm:$0x1] 0.0
        %507 = vst [vmem:[#allocation3 + $0x67] sm:$0x1] 0.0
        %508 = vst [vmem:[#allocation3 + $0x87] sm:$0x1] 0.0
        %509 = vst [vmem:[#allocation3 + $0xa7] sm:$0x1] 0.0
        %510 = vst [vmem:[#allocation3 + $0xc7] sm:$0x1] 0.0
        %511 = vst [vmem:[#allocation3 + $0xe7] sm:$0x1] 0.0
        %512 = vst [vmem:[#allocation3 + $0x107] sm:$0x1] 0.0
        %513 = vst [vmem:[#allocation3 + $0x127] sm:$0x1] 0.0
        %514 = vst [vmem:[#allocation3 + $0x147] sm:$0x1] 0.0
        %515 = vst [vmem:[#allocation3 + $0x167] sm:$0x1] 0.0
        %516 = vst [vmem:[#allocation3 + $0x187] sm:$0x1] 0.0
        %517 = vst [vmem:[#allocation3 + $0x1a7] sm:$0x1] 0.0
        %518 = vst [vmem:[#allocation3 + $0x1c7] sm:$0x1] 0.0
        %519 = vst [vmem:[#allocation3 + $0x1e7] sm:$0x1] 0.0
        %520 = vst [vmem:[#allocation3 + $0x207] sm:$0x1] 0.0
        %521 = vst [vmem:[#allocation3 + $0x227] sm:$0x1] 0.0
        %522 = vst [vmem:[#allocation3 + $0x18] sm:$0x1] 0.0
        %523 = vst [vmem:[#allocation3 + $0x38] sm:$0x1] 0.0
        %524 = vst [vmem:[#allocation3 + $0x58] sm:$0x1] 0.0
        %525 = vst [vmem:[#allocation3 + $0x78] sm:$0x1] 0.0
        %526 = vst [vmem:[#allocation3 + $0x98] sm:$0x1] 0.0
        %527 = vst [vmem:[#allocation3 + $0xb8] sm:$0x1] 0.0
        %528 = vst [vmem:[#allocation3 + $0xd8] sm:$0x1] 0.0
        %529 = vst [vmem:[#allocation3 + $0xf8] sm:$0x1] 0.0
        %530 = vst [vmem:[#allocation3 + $0x118] sm:$0x1] 0.0
        %531 = vst [vmem:[#allocation3 + $0x138] sm:$0x1] 0.0
        %532 = vst [vmem:[#allocation3 + $0x158] sm:$0x1] 0.0
        %533 = vst [vmem:[#allocation3 + $0x178] sm:$0x1] 0.0
        %534 = vst [vmem:[#allocation3 + $0x198] sm:$0x1] 0.0
        %535 = vst [vmem:[#allocation3 + $0x1b8] sm:$0x1] 0.0
        %536 = vst [vmem:[#allocation3 + $0x1d8] sm:$0x1] 0.0
        %537 = vst [vmem:[#allocation3 + $0x1f8] sm:$0x1] 0.0
        %538 = vst [vmem:[#allocation3 + $0x218] sm:$0x1] 0.0
        %539 = vst [vmem:[#allocation3 + $0x238] sm:$0x1] 0.0
        %v540 = vld [vmem:[%s398] sm:$0xff]
        %v541 = vld [vmem:[%s398 + $0x8] sm:$0xff]
        %v542 = vld [vmem:[%s398 + $0x10] sm:$0xff]
        %v543 = vld [vmem:[%s398 + $0x18] sm:$0xff]
        %v544 = vld [vmem:[%s398 + $0x20] sm:$0xff]
        %v545 = vld [vmem:[%s398 + $0x28] sm:$0xff]
        %v546 = vld [vmem:[%s398 + $0x30] sm:$0xff]
        %v547 = vld [vmem:[%s398 + $0x38] sm:$0xff]
        %v548 = vld [vmem:[%s398 + $0x40] sm:$0xff]
        %v549 = vld [vmem:[%s398 + $0x48] sm:$0xff]
        %v550 = vld [vmem:[%s398 + $0x50] sm:$0xff]
        %v551 = vld [vmem:[%s398 + $0x58] sm:$0xff]
        %v552 = vld [vmem:[%s398 + $0x60] sm:$0xff]
        %v553 = vld [vmem:[%s398 + $0x68] sm:$0xff]
        %v554 = vld [vmem:[%s398 + $0x70] sm:$0xff]
        %v555 = vld [vmem:[%s398 + $0x78] sm:$0xff]
        %v556 = vld [vmem:[%s398 + $0x80] sm:$0xff]
        %v557 = vld [vmem:[%s398 + $0x88] sm:$0xff]
        %v558 = vld [vmem:[%s398 + $0x90] sm:$0xff]
        %v559 = vld [vmem:[%s398 + $0x98] sm:$0xff]
        %v560 = vld [vmem:[%s398 + $0xa0] sm:$0xff]
        %v561 = vld [vmem:[%s398 + $0xa8] sm:$0xff]
        %v562 = vld [vmem:[%s398 + $0xb0] sm:$0xff]
        %v563 = vld [vmem:[%s398 + $0xb8] sm:$0xff]
        %v564 = vld [vmem:[%s398 + $0xc0] sm:$0xff]
        %v565 = vld [vmem:[%s398 + $0xc8] sm:$0xff]
        %v566 = vld [vmem:[%s398 + $0xd0] sm:$0xff]
        %v567 = vld [vmem:[%s398 + $0xd8] sm:$0xff]
        %v568 = vld [vmem:[%s398 + $0xe0] sm:$0xff]
        %v569 = vld [vmem:[%s398 + $0xe8] sm:$0xff]
        %v570 = vld [vmem:[%s398 + $0xf0] sm:$0xff]
        %v571 = vld [vmem:[%s398 + $0xf8] sm:$0xff]
        %v572 = vld [vmem:[%s1] sm:$0x1]
        %v574 = vlaneseq
        %v575 = vshrl.u32 %v574, 7
        %v576 = vsub.s32 0, %v575
        %v577 = vrot.slane %v572, %v576
        %v579 = vmul.f32 %v540, %v577
        %v580 = vmul.f32 %v541, %v577
        %v581 = vmul.f32 %v542, %v577
        %v582 = vmul.f32 %v543, %v577
        %v583 = vmul.f32 %v544, %v577
        %v584 = vmul.f32 %v545, %v577
        %v585 = vmul.f32 %v546, %v577
        %v586 = vmul.f32 %v547, %v577
        %v587 = vmul.f32 %v548, %v577
        %v588 = vmul.f32 %v549, %v577
        %v589 = vmul.f32 %v550, %v577
        %v590 = vmul.f32 %v551, %v577
        %v591 = vmul.f32 %v552, %v577
        %v592 = vmul.f32 %v553, %v577
        %v593 = vmul.f32 %v554, %v577
        %v594 = vmul.f32 %v555, %v577
        %v595 = vmul.f32 %v556, %v577
        %v596 = vmul.f32 %v557, %v577
        %v597 = vmul.f32 %v558, %v577
        %v598 = vmul.f32 %v559, %v577
        %v599 = vmul.f32 %v560, %v577
        %v600 = vmul.f32 %v561, %v577
        %v601 = vmul.f32 %v562, %v577
        %v602 = vmul.f32 %v563, %v577
        %v603 = vmul.f32 %v564, %v577
        %v604 = vmul.f32 %v565, %v577
        %v605 = vmul.f32 %v566, %v577
        %v606 = vmul.f32 %v567, %v577
        %v607 = vmul.f32 %v568, %v577
        %v608 = vmul.f32 %v569, %v577
        %v609 = vmul.f32 %v570, %v577
        %v610 = vmul.f32 %v571, %v577
        %v611 = vld [vmem:[%s2] sm:$0x1]
        %v613 = vlaneseq
        %v614 = vshrl.u32 %v613, 7
        %v615 = vsub.s32 0, %v614
        %v616 = vrot.slane %v611, %v615
        %v618 = vadd.f32 %v579, %v616
        %v619 = vadd.f32 %v580, %v616
        %v620 = vadd.f32 %v581, %v616
        %v621 = vadd.f32 %v582, %v616
        %v622 = vadd.f32 %v583, %v616
        %v623 = vadd.f32 %v584, %v616
        %v624 = vadd.f32 %v585, %v616
        %v625 = vadd.f32 %v586, %v616
        %v626 = vadd.f32 %v587, %v616
        %v627 = vadd.f32 %v588, %v616
        %v628 = vadd.f32 %v589, %v616
        %v629 = vadd.f32 %v590, %v616
        %v630 = vadd.f32 %v591, %v616
        %v631 = vadd.f32 %v592, %v616
        %v632 = vadd.f32 %v593, %v616
        %v633 = vadd.f32 %v594, %v616
        %v634 = vadd.f32 %v595, %v616
        %v635 = vadd.f32 %v596, %v616
        %v636 = vadd.f32 %v597, %v616
        %v637 = vadd.f32 %v598, %v616
        %v638 = vadd.f32 %v599, %v616
        %v639 = vadd.f32 %v600, %v616
        %v640 = vadd.f32 %v601, %v616
        %v641 = vadd.f32 %v602, %v616
        %v642 = vadd.f32 %v603, %v616
        %v643 = vadd.f32 %v604, %v616
        %v644 = vadd.f32 %v605, %v616
        %v645 = vadd.f32 %v606, %v616
        %v646 = vadd.f32 %v607, %v616
        %v647 = vadd.f32 %v608, %v616
        %v648 = vadd.f32 %v609, %v616
        %v649 = vadd.f32 %v610, %v616
        %v650 = vmax.f32 %v618, 0.0
        %v651 = vmax.f32 %v619, 0.0
        %v652 = vmax.f32 %v620, 0.0
        %v653 = vmax.f32 %v621, 0.0
        %v654 = vmax.f32 %v622, 0.0
        %v655 = vmax.f32 %v623, 0.0
        %v656 = vmax.f32 %v624, 0.0
        %v657 = vmax.f32 %v625, 0.0
        %v658 = vmax.f32 %v626, 0.0
        %v659 = vmax.f32 %v627, 0.0
        %v660 = vmax.f32 %v628, 0.0
        %v661 = vmax.f32 %v629, 0.0
        %v662 = vmax.f32 %v630, 0.0
        %v663 = vmax.f32 %v631, 0.0
        %v664 = vmax.f32 %v632, 0.0
        %v665 = vmax.f32 %v633, 0.0
        %v666 = vmax.f32 %v634, 0.0
        %v667 = vmax.f32 %v635, 0.0
        %v668 = vmax.f32 %v636, 0.0
        %v669 = vmax.f32 %v637, 0.0
        %v670 = vmax.f32 %v638, 0.0
        %v671 = vmax.f32 %v639, 0.0
        %v672 = vmax.f32 %v640, 0.0
        %v673 = vmax.f32 %v641, 0.0
        %v674 = vmax.f32 %v642, 0.0
        %v675 = vmax.f32 %v643, 0.0
        %v676 = vmax.f32 %v644, 0.0
        %v677 = vmax.f32 %v645, 0.0
        %v678 = vmax.f32 %v646, 0.0
        %v679 = vmax.f32 %v647, 0.0
        %v680 = vmax.f32 %v648, 0.0
        %v681 = vmax.f32 %v649, 0.0
        %s682 = scalar_lea.vmem [#allocation2], 32
        %683 = vst [vmem:[%s682 + $0x8] sm:$0xff] %v650
        %684 = vst [vmem:[%s682 + $0x10] sm:$0xff] %v651
        %685 = vst [vmem:[%s682 + $0x28] sm:$0xff] %v652
        %686 = vst [vmem:[%s682 + $0x30] sm:$0xff] %v653
        %687 = vst [vmem:[%s682 + $0x48] sm:$0xff] %v654
        %688 = vst [vmem:[%s682 + $0x50] sm:$0xff] %v655
        %689 = vst [vmem:[%s682 + $0x68] sm:$0xff] %v656
        %690 = vst [vmem:[%s682 + $0x70] sm:$0xff] %v657
        %691 = vst [vmem:[%s682 + $0x88] sm:$0xff] %v658
        %692 = vst [vmem:[%s682 + $0x90] sm:$0xff] %v659
        %693 = vst [vmem:[%s682 + $0xa8] sm:$0xff] %v660
        %694 = vst [vmem:[%s682 + $0xb0] sm:$0xff] %v661
        %695 = vst [vmem:[%s682 + $0xc8] sm:$0xff] %v662
        %696 = vst [vmem:[%s682 + $0xd0] sm:$0xff] %v663
        %697 = vst [vmem:[%s682 + $0xe8] sm:$0xff] %v664
        %698 = vst [vmem:[%s682 + $0xf0] sm:$0xff] %v665
        %699 = vst [vmem:[%s682 + $0x108] sm:$0xff] %v666
        %700 = vst [vmem:[%s682 + $0x110] sm:$0xff] %v667
        %701 = vst [vmem:[%s682 + $0x128] sm:$0xff] %v668
        %702 = vst [vmem:[%s682 + $0x130] sm:$0xff] %v669
        %703 = vst [vmem:[%s682 + $0x148] sm:$0xff] %v670
        %704 = vst [vmem:[%s682 + $0x150] sm:$0xff] %v671
        %705 = vst [vmem:[%s682 + $0x168] sm:$0xff] %v672
        %706 = vst [vmem:[%s682 + $0x170] sm:$0xff] %v673
        %707 = vst [vmem:[%s682 + $0x188] sm:$0xff] %v674
        %708 = vst [vmem:[%s682 + $0x190] sm:$0xff] %v675
        %709 = vst [vmem:[%s682 + $0x1a8] sm:$0xff] %v676
        %710 = vst [vmem:[%s682 + $0x1b0] sm:$0xff] %v677
        %711 = vst [vmem:[%s682 + $0x1c8] sm:$0xff] %v678
        %712 = vst [vmem:[%s682 + $0x1d0] sm:$0xff] %v679
        %713 = vst [vmem:[%s682 + $0x1e8] sm:$0xff] %v680
        %714 = vst [vmem:[%s682 + $0x1f0] sm:$0xff] %v681
        %v715 = vld [vmem:[#allocation7] sm:$0xf]
        %v716 = vld [vmem:[#allocation7 + $0x4] sm:$0xf]
        %v717 = vld [vmem:[#allocation7 + $0x8] sm:$0xf]
        %v718 = vld [vmem:[#allocation7 + $0xc] sm:$0xf]
        %v719 = vld [vmem:[#allocation7 + $0x10] sm:$0xf]
        %v720 = vld [vmem:[#allocation7 + $0x14] sm:$0xf]
        %v721 = vld [vmem:[#allocation7 + $0x18] sm:$0xf]
        %v722 = vld [vmem:[#allocation7 + $0x1c] sm:$0xf]
        %v723 = vld [vmem:[#allocation7 + $0x20] sm:$0xf]
        %v724 = vld [vmem:[#allocation7 + $0x24] sm:$0xf]
        %v725 = vld [vmem:[#allocation7 + $0x28] sm:$0xf]
        %v726 = vld [vmem:[#allocation7 + $0x2c] sm:$0xf]
        %v727 = vld [vmem:[#allocation7 + $0x30] sm:$0xf]
        %v728 = vld [vmem:[#allocation7 + $0x34] sm:$0xf]
        %v729 = vld [vmem:[#allocation7 + $0x38] sm:$0xf]
        %v730 = vld [vmem:[#allocation7 + $0x3c] sm:$0xf]
        %v731 = vld [vmem:[#allocation7 + $0x40] sm:$0xf]
        %v732 = vld [vmem:[#allocation7 + $0x44] sm:$0xf]
        %v733 = vld [vmem:[#allocation7 + $0x48] sm:$0xf]
        %v734 = vld [vmem:[#allocation7 + $0x4c] sm:$0xf]
        %v735 = vld [vmem:[#allocation7 + $0x50] sm:$0xf]
        %v736 = vld [vmem:[#allocation7 + $0x54] sm:$0xf]
        %v737 = vld [vmem:[#allocation7 + $0x58] sm:$0xf]
        %v738 = vld [vmem:[#allocation7 + $0x5c] sm:$0xf]
        %v739 = vld [vmem:[#allocation7 + $0x60] sm:$0xf]
        %v740 = vld [vmem:[#allocation7 + $0x64] sm:$0xf]
        %v741 = vld [vmem:[#allocation7 + $0x68] sm:$0xf]
        %v742 = vld [vmem:[#allocation7 + $0x6c] sm:$0xf]
        %v743 = vld [vmem:[#allocation7 + $0x70] sm:$0xf]
        %v744 = vld [vmem:[#allocation7 + $0x74] sm:$0xf]
        %v745 = vld [vmem:[#allocation7 + $0x78] sm:$0xf]
        %v746 = vld [vmem:[#allocation7 + $0x7c] sm:$0xf]
        %v747 = vld [vmem:[#allocation7 + $0x80] sm:$0xf]
        %v748 = vld [vmem:[#allocation7 + $0x84] sm:$0xf]
        %v749 = vld [vmem:[#allocation7 + $0x88] sm:$0xf]
        %v750 = vld [vmem:[#allocation7 + $0x8c] sm:$0xf]
        %v751 = vld [vmem:[#allocation7 + $0x90] sm:$0xf]
        %v752 = vld [vmem:[#allocation7 + $0x94] sm:$0xf]
        %v753 = vld [vmem:[#allocation7 + $0x98] sm:$0xf]
        %v754 = vld [vmem:[#allocation7 + $0x9c] sm:$0xf]
        %v755 = vld [vmem:[#allocation7 + $0xa0] sm:$0xf]
        %v756 = vld [vmem:[#allocation7 + $0xa4] sm:$0xf]
        %v757 = vld [vmem:[#allocation7 + $0xa8] sm:$0xf]
        %v758 = vld [vmem:[#allocation7 + $0xac] sm:$0xf]
        %v759 = vld [vmem:[#allocation7 + $0xb0] sm:$0xf]
        %v760 = vld [vmem:[#allocation7 + $0xb4] sm:$0xf]
        %v761 = vld [vmem:[#allocation7 + $0xb8] sm:$0xf]
        %v762 = vld [vmem:[#allocation7 + $0xbc] sm:$0xf]
        %v763 = vld [vmem:[#allocation7 + $0xc0] sm:$0xf]
        %v764 = vld [vmem:[#allocation7 + $0xc4] sm:$0xf]
        %v765 = vld [vmem:[#allocation7 + $0xc8] sm:$0xf]
        %v766 = vld [vmem:[#allocation7 + $0xcc] sm:$0xf]
        %v767 = vld [vmem:[#allocation7 + $0xd0] sm:$0xf]
        %v768 = vld [vmem:[#allocation7 + $0xd4] sm:$0xf]
        %v769 = vld [vmem:[#allocation7 + $0xd8] sm:$0xf]
        %v770 = vld [vmem:[#allocation7 + $0xdc] sm:$0xf]
        %v771 = vld [vmem:[#allocation7 + $0xe0] sm:$0xf]
        %v772 = vld [vmem:[#allocation7 + $0xe4] sm:$0xf]
        %v773 = vld [vmem:[#allocation7 + $0xe8] sm:$0xf]
        %v774 = vld [vmem:[#allocation7 + $0xec] sm:$0xf]
        %v775 = vld [vmem:[#allocation7 + $0xf0] sm:$0xf]
        %v776 = vld [vmem:[#allocation7 + $0xf4] sm:$0xf]
        %v777 = vld [vmem:[#allocation7 + $0xf8] sm:$0xf]
        %v778 = vld [vmem:[#allocation7 + $0xfc] sm:$0xf]
        %v779 = vld [vmem:[#allocation7 + $0x100] sm:$0xf]
        %v780 = vld [vmem:[#allocation7 + $0x104] sm:$0xf]
        %v781 = vld [vmem:[#allocation7 + $0x108] sm:$0xf]
        %v782 = vld [vmem:[#allocation7 + $0x10c] sm:$0xf]
        %v783 = vld [vmem:[#allocation7 + $0x110] sm:$0xf]
        %v784 = vld [vmem:[#allocation7 + $0x114] sm:$0xf]
        %v785 = vld [vmem:[#allocation7 + $0x118] sm:$0xf]
        %v786 = vld [vmem:[#allocation7 + $0x11c] sm:$0xf]
        %v787 = vld [vmem:[#allocation7 + $0x120] sm:$0xf]
        %v788 = vld [vmem:[#allocation7 + $0x124] sm:$0xf]
        %v789 = vld [vmem:[#allocation7 + $0x128] sm:$0xf]
        %v790 = vld [vmem:[#allocation7 + $0x12c] sm:$0xf]
        %v791 = vld [vmem:[#allocation7 + $0x130] sm:$0xf]
        %v792 = vld [vmem:[#allocation7 + $0x134] sm:$0xf]
        %v793 = vld [vmem:[#allocation7 + $0x138] sm:$0xf]
        %v794 = vld [vmem:[#allocation7 + $0x13c] sm:$0xf]
        %v795 = vld [vmem:[#allocation7 + $0x140] sm:$0xf]
        %v796 = vld [vmem:[#allocation7 + $0x144] sm:$0xf]
        %v797 = vld [vmem:[#allocation7 + $0x148] sm:$0xf]
        %v798 = vld [vmem:[#allocation7 + $0x14c] sm:$0xf]
        %v799 = vld [vmem:[#allocation7 + $0x150] sm:$0xf]
        %v800 = vld [vmem:[#allocation7 + $0x154] sm:$0xf]
        %v801 = vld [vmem:[#allocation7 + $0x158] sm:$0xf]
        %v802 = vld [vmem:[#allocation7 + $0x15c] sm:$0xf]
        %v803 = vld [vmem:[#allocation7 + $0x160] sm:$0xf]
        %v804 = vld [vmem:[#allocation7 + $0x164] sm:$0xf]
        %v805 = vld [vmem:[#allocation7 + $0x168] sm:$0xf]
        %v806 = vld [vmem:[#allocation7 + $0x16c] sm:$0xf]
        %v807 = vld [vmem:[#allocation7 + $0x170] sm:$0xf]
        %v808 = vld [vmem:[#allocation7 + $0x174] sm:$0xf]
        %v809 = vld [vmem:[#allocation7 + $0x178] sm:$0xf]
        %v810 = vld [vmem:[#allocation7 + $0x17c] sm:$0xf]
        %v811 = vld [vmem:[#allocation7 + $0x180] sm:$0xf]
        %v812 = vld [vmem:[#allocation7 + $0x184] sm:$0xf]
        %v813 = vld [vmem:[#allocation7 + $0x188] sm:$0xf]
        %v814 = vld [vmem:[#allocation7 + $0x18c] sm:$0xf]
        %v815 = vld [vmem:[#allocation7 + $0x190] sm:$0xf]
        %v816 = vld [vmem:[#allocation7 + $0x194] sm:$0xf]
        %v817 = vld [vmem:[#allocation7 + $0x198] sm:$0xf]
        %v818 = vld [vmem:[#allocation7 + $0x19c] sm:$0xf]
        %v819 = vld [vmem:[#allocation7 + $0x1a0] sm:$0xf]
        %v820 = vld [vmem:[#allocation7 + $0x1a4] sm:$0xf]
        %v821 = vld [vmem:[#allocation7 + $0x1a8] sm:$0xf]
        %v822 = vld [vmem:[#allocation7 + $0x1ac] sm:$0xf]
        %v823 = vld [vmem:[#allocation7 + $0x1b0] sm:$0xf]
        %v824 = vld [vmem:[#allocation7 + $0x1b4] sm:$0xf]
        %v825 = vld [vmem:[#allocation7 + $0x1b8] sm:$0xf]
        %v826 = vld [vmem:[#allocation7 + $0x1bc] sm:$0xf]
        %v827 = vld [vmem:[#allocation7 + $0x1c0] sm:$0xf]
        %v828 = vld [vmem:[#allocation7 + $0x1c4] sm:$0xf]
        %v829 = vld [vmem:[#allocation7 + $0x1c8] sm:$0xf]
        %v830 = vld [vmem:[#allocation7 + $0x1cc] sm:$0xf]
        %v831 = vld [vmem:[#allocation7 + $0x1d0] sm:$0xf]
        %v832 = vld [vmem:[#allocation7 + $0x1d4] sm:$0xf]
        %v833 = vld [vmem:[#allocation7 + $0x1d8] sm:$0xf]
        %v834 = vld [vmem:[#allocation7 + $0x1dc] sm:$0xf]
        %v835 = vld [vmem:[#allocation7 + $0x1e0] sm:$0xf]
        %v836 = vld [vmem:[#allocation7 + $0x1e4] sm:$0xf]
        %v837 = vld [vmem:[#allocation7 + $0x1e8] sm:$0xf]
        %v838 = vld [vmem:[#allocation7 + $0x1ec] sm:$0xf]
        %v839 = vld [vmem:[#allocation7 + $0x1f0] sm:$0xf]
        %v840 = vld [vmem:[#allocation7 + $0x1f4] sm:$0xf]
        %v841 = vld [vmem:[#allocation7 + $0x1f8] sm:$0xf]
        %v842 = vld [vmem:[#allocation7 + $0x1fc] sm:$0xf]
        %v843 = vld [vmem:[#allocation7 + $0x200] sm:$0xf]
        %v844 = vld [vmem:[#allocation7 + $0x204] sm:$0xf]
        %v845 = vld [vmem:[#allocation7 + $0x208] sm:$0xf]
        %v846 = vld [vmem:[#allocation7 + $0x20c] sm:$0xf]
        %v847 = vld [vmem:[#allocation7 + $0x210] sm:$0xf]
        %v848 = vld [vmem:[#allocation7 + $0x214] sm:$0xf]
        %v849 = vld [vmem:[#allocation7 + $0x218] sm:$0xf]
        %v850 = vld [vmem:[#allocation7 + $0x21c] sm:$0xf]
        %v851 = vld [vmem:[#allocation7 + $0x220] sm:$0xf]
        %v852 = vld [vmem:[#allocation7 + $0x224] sm:$0xf]
        %v853 = vld [vmem:[#allocation7 + $0x228] sm:$0xf]
        %v854 = vld [vmem:[#allocation7 + $0x22c] sm:$0xf]
        %v855 = vld [vmem:[#allocation7 + $0x230] sm:$0xf]
        %v856 = vld [vmem:[#allocation7 + $0x234] sm:$0xf]
        %v857 = vld [vmem:[#allocation7 + $0x238] sm:$0xf]
        %v858 = vld [vmem:[#allocation7 + $0x23c] sm:$0xf]
        %v859 = vld [vmem:[#allocation2 + $0x7] sm:$0xff]
        %v860 = vld [vmem:[#allocation2 + $0xf] sm:$0xff]
        %v861 = vld [vmem:[#allocation2 + $0x27] sm:$0xff]
        %v862 = vld [vmem:[#allocation2 + $0x2f] sm:$0xff]
        %v863 = vld [vmem:[#allocation2 + $0x47] sm:$0xff]
        %v864 = vld [vmem:[#allocation2 + $0x4f] sm:$0xff]
        %v865 = vld [vmem:[#allocation2 + $0x67] sm:$0xff]
        %v866 = vld [vmem:[#allocation2 + $0x6f] sm:$0xff]
        %v867 = vld [vmem:[#allocation2 + $0x87] sm:$0xff]
        %v868 = vld [vmem:[#allocation2 + $0x8f] sm:$0xff]
        %v869 = vld [vmem:[#allocation2 + $0xa7] sm:$0xff]
        %v870 = vld [vmem:[#allocation2 + $0xaf] sm:$0xff]
        %v871 = vld [vmem:[#allocation2 + $0xc7] sm:$0xff]
        %v872 = vld [vmem:[#allocation2 + $0xcf] sm:$0xff]
        %v873 = vld [vmem:[#allocation2 + $0xe7] sm:$0xff]
        %v874 = vld [vmem:[#allocation2 + $0xef] sm:$0xff]
        %v875 = vpack.c.bf16 %v860, %v859
        %v876 = vpack.c.bf16 %v862, %v861
        %v877 = vpack.c.bf16 %v864, %v863
        %v878 = vpack.c.bf16 %v866, %v865
        %v879 = vpack.c.bf16 %v868, %v867
        %v880 = vpack.c.bf16 %v870, %v869
        %v881 = vpack.c.bf16 %v872, %v871
        %v882 = vpack.c.bf16 %v874, %v873
        %v883 = vld [vmem:[#allocation2 + $0x8] sm:$0xff]
        %v884 = vld [vmem:[#allocation2 + $0x10] sm:$0xff]
        %v885 = vld [vmem:[#allocation2 + $0x28] sm:$0xff]
        %v886 = vld [vmem:[#allocation2 + $0x30] sm:$0xff]
        %v887 = vld [vmem:[#allocation2 + $0x48] sm:$0xff]
        %v888 = vld [vmem:[#allocation2 + $0x50] sm:$0xff]
        %v889 = vld [vmem:[#allocation2 + $0x68] sm:$0xff]
        %v890 = vld [vmem:[#allocation2 + $0x70] sm:$0xff]
        %v891 = vld [vmem:[#allocation2 + $0x88] sm:$0xff]
        %v892 = vld [vmem:[#allocation2 + $0x90] sm:$0xff]
        %v893 = vld [vmem:[#allocation2 + $0xa8] sm:$0xff]
        %v894 = vld [vmem:[#allocation2 + $0xb0] sm:$0xff]
        %v895 = vld [vmem:[#allocation2 + $0xc8] sm:$0xff]
        %v896 = vld [vmem:[#allocation2 + $0xd0] sm:$0xff]
        %v897 = vld [vmem:[#allocation2 + $0xe8] sm:$0xff]
        %v898 = vld [vmem:[#allocation2 + $0xf0] sm:$0xff]
        %v899 = vpack.c.bf16 %v884, %v883
        %v900 = vpack.c.bf16 %v886, %v885
        %v901 = vpack.c.bf16 %v888, %v887
        %v902 = vpack.c.bf16 %v890, %v889
        %v903 = vpack.c.bf16 %v892, %v891
        %v904 = vpack.c.bf16 %v894, %v893
        %v905 = vpack.c.bf16 %v896, %v895
        %v906 = vpack.c.bf16 %v898, %v897
        %v907 = vld [vmem:[#allocation2 + $0x9] sm:$0xff]
        %v908 = vld [vmem:[#allocation2 + $0x11] sm:$0xff]
        %v909 = vld [vmem:[#allocation2 + $0x29] sm:$0xff]
        %v910 = vld [vmem:[#allocation2 + $0x31] sm:$0xff]
        %v911 = vld [vmem:[#allocation2 + $0x49] sm:$0xff]
        %v912 = vld [vmem:[#allocation2 + $0x51] sm:$0xff]
        %v913 = vld [vmem:[#allocation2 + $0x69] sm:$0xff]
        %v914 = vld [vmem:[#allocation2 + $0x71] sm:$0xff]
        %v915 = vld [vmem:[#allocation2 + $0x89] sm:$0xff]
        %v916 = vld [vmem:[#allocation2 + $0x91] sm:$0xff]
        %v917 = vld [vmem:[#allocation2 + $0xa9] sm:$0xff]
        %v918 = vld [vmem:[#allocation2 + $0xb1] sm:$0xff]
        %v919 = vld [vmem:[#allocation2 + $0xc9] sm:$0xff]
        %v920 = vld [vmem:[#allocation2 + $0xd1] sm:$0xff]
        %v921 = vld [vmem:[#allocation2 + $0xe9] sm:$0xff]
        %v922 = vld [vmem:[#allocation2 + $0xf1] sm:$0xff]
        %v923 = vpack.c.bf16 %v908, %v907
        %v924 = vpack.c.bf16 %v910, %v909
        %v925 = vpack.c.bf16 %v912, %v911
        %v926 = vpack.c.bf16 %v914, %v913
        %v927 = vpack.c.bf16 %v916, %v915
        %v928 = vpack.c.bf16 %v918, %v917
        %v929 = vpack.c.bf16 %v920, %v919
        %v930 = vpack.c.bf16 %v922, %v921
        %v931 = vld [vmem:[%s682 + $0x7] sm:$0xff]
        %v932 = vld [vmem:[%s682 + $0xf] sm:$0xff]
        %v933 = vld [vmem:[%s682 + $0x27] sm:$0xff]
        %v934 = vld [vmem:[%s682 + $0x2f] sm:$0xff]
        %v935 = vld [vmem:[%s682 + $0x47] sm:$0xff]
        %v936 = vld [vmem:[%s682 + $0x4f] sm:$0xff]
        %v937 = vld [vmem:[%s682 + $0x67] sm:$0xff]
        %v938 = vld [vmem:[%s682 + $0x6f] sm:$0xff]
        %v939 = vld [vmem:[%s682 + $0x87] sm:$0xff]
        %v940 = vld [vmem:[%s682 + $0x8f] sm:$0xff]
        %v941 = vld [vmem:[%s682 + $0xa7] sm:$0xff]
        %v942 = vld [vmem:[%s682 + $0xaf] sm:$0xff]
        %v943 = vld [vmem:[%s682 + $0xc7] sm:$0xff]
        %v944 = vld [vmem:[%s682 + $0xcf] sm:$0xff]
        %v945 = vld [vmem:[%s682 + $0xe7] sm:$0xff]
        %v946 = vld [vmem:[%s682 + $0xef] sm:$0xff]
        %v947 = vpack.c.bf16 %v932, %v931
        %v948 = vpack.c.bf16 %v934, %v933
        %v949 = vpack.c.bf16 %v936, %v935
        %v950 = vpack.c.bf16 %v938, %v937
        %v951 = vpack.c.bf16 %v940, %v939
        %v952 = vpack.c.bf16 %v942, %v941
        %v953 = vpack.c.bf16 %v944, %v943
        %v954 = vpack.c.bf16 %v946, %v945
        %v955 = vld [vmem:[%s682 + $0x8] sm:$0xff]
        %v956 = vld [vmem:[%s682 + $0x10] sm:$0xff]
        %v957 = vld [vmem:[%s682 + $0x28] sm:$0xff]
        %v958 = vld [vmem:[%s682 + $0x30] sm:$0xff]
        %v959 = vld [vmem:[%s682 + $0x48] sm:$0xff]
        %v960 = vld [vmem:[%s682 + $0x50] sm:$0xff]
        %v961 = vld [vmem:[%s682 + $0x68] sm:$0xff]
        %v962 = vld [vmem:[%s682 + $0x70] sm:$0xff]
        %v963 = vld [vmem:[%s682 + $0x88] sm:$0xff]
        %v964 = vld [vmem:[%s682 + $0x90] sm:$0xff]
        %v965 = vld [vmem:[%s682 + $0xa8] sm:$0xff]
        %v966 = vld [vmem:[%s682 + $0xb0] sm:$0xff]
        %v967 = vld [vmem:[%s682 + $0xc8] sm:$0xff]
        %v968 = vld [vmem:[%s682 + $0xd0] sm:$0xff]
        %v969 = vld [vmem:[%s682 + $0xe8] sm:$0xff]
        %v970 = vld [vmem:[%s682 + $0xf0] sm:$0xff]
        %v971 = vpack.c.bf16 %v956, %v955
        %v972 = vpack.c.bf16 %v958, %v957
        %v973 = vpack.c.bf16 %v960, %v959
        %v974 = vpack.c.bf16 %v962, %v961
        %v975 = vpack.c.bf16 %v964, %v963
        %v976 = vpack.c.bf16 %v966, %v965
        %v977 = vpack.c.bf16 %v968, %v967
        %v978 = vpack.c.bf16 %v970, %v969
        %v979 = vld [vmem:[%s682 + $0x9] sm:$0xff]
        %v980 = vld [vmem:[%s682 + $0x11] sm:$0xff]
        %v981 = vld [vmem:[%s682 + $0x29] sm:$0xff]
        %v982 = vld [vmem:[%s682 + $0x31] sm:$0xff]
        %v983 = vld [vmem:[%s682 + $0x49] sm:$0xff]
        %v984 = vld [vmem:[%s682 + $0x51] sm:$0xff]
        %v985 = vld [vmem:[%s682 + $0x69] sm:$0xff]
        %v986 = vld [vmem:[%s682 + $0x71] sm:$0xff]
        %v987 = vld [vmem:[%s682 + $0x89] sm:$0xff]
        %v988 = vld [vmem:[%s682 + $0x91] sm:$0xff]
        %v989 = vld [vmem:[%s682 + $0xa9] sm:$0xff]
        %v990 = vld [vmem:[%s682 + $0xb1] sm:$0xff]
        %v991 = vld [vmem:[%s682 + $0xc9] sm:$0xff]
        %v992 = vld [vmem:[%s682 + $0xd1] sm:$0xff]
        %v993 = vld [vmem:[%s682 + $0xe9] sm:$0xff]
        %v994 = vld [vmem:[%s682 + $0xf1] sm:$0xff]
        %v995 = vpack.c.bf16 %v980, %v979
        %v996 = vpack.c.bf16 %v982, %v981
        %v997 = vpack.c.bf16 %v984, %v983
        %v998 = vpack.c.bf16 %v986, %v985
        %v999 = vpack.c.bf16 %v988, %v987
        %v1000 = vpack.c.bf16 %v990, %v989
        %v1001 = vpack.c.bf16 %v992, %v991
        %v1002 = vpack.c.bf16 %v994, %v993
        %s1003 = scalar_lea.vmem [#allocation2], 64
        %v1004 = vld [vmem:[%s1003 + $0x7] sm:$0xff]
        %v1005 = vld [vmem:[%s1003 + $0xf] sm:$0xff]
        %v1006 = vld [vmem:[%s1003 + $0x27] sm:$0xff]
        %v1007 = vld [vmem:[%s1003 + $0x2f] sm:$0xff]
        %v1008 = vld [vmem:[%s1003 + $0x47] sm:$0xff]
        %v1009 = vld [vmem:[%s1003 + $0x4f] sm:$0xff]
        %v1010 = vld [vmem:[%s1003 + $0x67] sm:$0xff]
        %v1011 = vld [vmem:[%s1003 + $0x6f] sm:$0xff]
        %v1012 = vld [vmem:[%s1003 + $0x87] sm:$0xff]
        %v1013 = vld [vmem:[%s1003 + $0x8f] sm:$0xff]
        %v1014 = vld [vmem:[%s1003 + $0xa7] sm:$0xff]
        %v1015 = vld [vmem:[%s1003 + $0xaf] sm:$0xff]
        %v1016 = vld [vmem:[%s1003 + $0xc7] sm:$0xff]
        %v1017 = vld [vmem:[%s1003 + $0xcf] sm:$0xff]
        %v1018 = vld [vmem:[%s1003 + $0xe7] sm:$0xff]
        %v1019 = vld [vmem:[%s1003 + $0xef] sm:$0xff]
        %v1020 = vpack.c.bf16 %v1005, %v1004
        %v1021 = vpack.c.bf16 %v1007, %v1006
        %v1022 = vpack.c.bf16 %v1009, %v1008
        %v1023 = vpack.c.bf16 %v1011, %v1010
        %v1024 = vpack.c.bf16 %v1013, %v1012
        %v1025 = vpack.c.bf16 %v1015, %v1014
        %v1026 = vpack.c.bf16 %v1017, %v1016
        %v1027 = vpack.c.bf16 %v1019, %v1018
        %v1028 = vld [vmem:[%s1003 + $0x8] sm:$0xff]
        %v1029 = vld [vmem:[%s1003 + $0x10] sm:$0xff]
        %v1030 = vld [vmem:[%s1003 + $0x28] sm:$0xff]
        %v1031 = vld [vmem:[%s1003 + $0x30] sm:$0xff]
        %v1032 = vld [vmem:[%s1003 + $0x48] sm:$0xff]
        %v1033 = vld [vmem:[%s1003 + $0x50] sm:$0xff]
        %v1034 = vld [vmem:[%s1003 + $0x68] sm:$0xff]
        %v1035 = vld [vmem:[%s1003 + $0x70] sm:$0xff]
        %v1036 = vld [vmem:[%s1003 + $0x88] sm:$0xff]
        %v1037 = vld [vmem:[%s1003 + $0x90] sm:$0xff]
        %v1038 = vld [vmem:[%s1003 + $0xa8] sm:$0xff]
        %v1039 = vld [vmem:[%s1003 + $0xb0] sm:$0xff]
        %v1040 = vld [vmem:[%s1003 + $0xc8] sm:$0xff]
        %v1041 = vld [vmem:[%s1003 + $0xd0] sm:$0xff]
        %v1042 = vld [vmem:[%s1003 + $0xe8] sm:$0xff]
        %v1043 = vld [vmem:[%s1003 + $0xf0] sm:$0xff]
        %v1044 = vpack.c.bf16 %v1029, %v1028
        %v1045 = vpack.c.bf16 %v1031, %v1030
        %v1046 = vpack.c.bf16 %v1033, %v1032
        %v1047 = vpack.c.bf16 %v1035, %v1034
        %v1048 = vpack.c.bf16 %v1037, %v1036
        %v1049 = vpack.c.bf16 %v1039, %v1038
        %v1050 = vpack.c.bf16 %v1041, %v1040
        %v1051 = vpack.c.bf16 %v1043, %v1042
        %v1052 = vld [vmem:[%s1003 + $0x9] sm:$0xff]
        %v1053 = vld [vmem:[%s1003 + $0x11] sm:$0xff]
        %v1054 = vld [vmem:[%s1003 + $0x29] sm:$0xff]
        %v1055 = vld [vmem:[%s1003 + $0x31] sm:$0xff]
        %v1056 = vld [vmem:[%s1003 + $0x49] sm:$0xff]
        %v1057 = vld [vmem:[%s1003 + $0x51] sm:$0xff]
        %v1058 = vld [vmem:[%s1003 + $0x69] sm:$0xff]
        %v1059 = vld [vmem:[%s1003 + $0x71] sm:$0xff]
        %v1060 = vld [vmem:[%s1003 + $0x89] sm:$0xff]
        %v1061 = vld [vmem:[%s1003 + $0x91] sm:$0xff]
        %v1062 = vld [vmem:[%s1003 + $0xa9] sm:$0xff]
        %v1063 = vld [vmem:[%s1003 + $0xb1] sm:$0xff]
        %v1064 = vld [vmem:[%s1003 + $0xc9] sm:$0xff]
        %v1065 = vld [vmem:[%s1003 + $0xd1] sm:$0xff]
        %v1066 = vld [vmem:[%s1003 + $0xe9] sm:$0xff]
        %v1067 = vld [vmem:[%s1003 + $0xf1] sm:$0xff]
        %v1068 = vpack.c.bf16 %v1053, %v1052
        %v1069 = vpack.c.bf16 %v1055, %v1054
        %v1070 = vpack.c.bf16 %v1057, %v1056
        %v1071 = vpack.c.bf16 %v1059, %v1058
        %v1072 = vpack.c.bf16 %v1061, %v1060
        %v1073 = vpack.c.bf16 %v1063, %v1062
        %v1074 = vpack.c.bf16 %v1065, %v1064
        %v1075 = vpack.c.bf16 %v1067, %v1066
        %v1220 = vunpack.c.l.b16 %v715
        %v1221 = vunpack.c.l.b16 %v716
        %v1222 = vunpack.c.l.b16 %v717
        %v1223 = vunpack.c.l.b16 %v718
        %v1224 = vunpack.c.l.b16 %v719
        %v1225 = vunpack.c.l.b16 %v720
        %v1226 = vunpack.c.l.b16 %v721
        %v1227 = vunpack.c.l.b16 %v722
        %v1228 = vunpack.c.l.b16 %v723
        %v1229 = vunpack.c.l.b16 %v724
        %v1230 = vunpack.c.l.b16 %v725
        %v1231 = vunpack.c.l.b16 %v726
        %v1232 = vunpack.c.l.b16 %v727
        %v1233 = vunpack.c.l.b16 %v728
        %v1234 = vunpack.c.l.b16 %v729
        %v1235 = vunpack.c.l.b16 %v730
        %v1236 = vunpack.c.l.b16 %v731
        %v1237 = vunpack.c.l.b16 %v732
        %v1238 = vunpack.c.l.b16 %v733
        %v1239 = vunpack.c.l.b16 %v734
        %v1240 = vunpack.c.l.b16 %v735
        %v1241 = vunpack.c.l.b16 %v736
        %v1242 = vunpack.c.l.b16 %v737
        %v1243 = vunpack.c.l.b16 %v738
        %v1244 = vunpack.c.l.b16 %v739
        %v1245 = vunpack.c.l.b16 %v740
        %v1246 = vunpack.c.l.b16 %v741
        %v1247 = vunpack.c.l.b16 %v742
        %v1248 = vunpack.c.l.b16 %v743
        %v1249 = vunpack.c.l.b16 %v744
        %v1250 = vunpack.c.l.b16 %v745
        %v1251 = vunpack.c.l.b16 %v746
        %v1252 = vunpack.c.l.b16 %v747
        %v1253 = vunpack.c.l.b16 %v748
        %v1254 = vunpack.c.l.b16 %v749
        %v1255 = vunpack.c.l.b16 %v750
        %v1256 = vunpack.c.l.b16 %v751
        %v1257 = vunpack.c.l.b16 %v752
        %v1258 = vunpack.c.l.b16 %v753
        %v1259 = vunpack.c.l.b16 %v754
        %v1260 = vunpack.c.l.b16 %v755
        %v1261 = vunpack.c.l.b16 %v756
        %v1262 = vunpack.c.l.b16 %v757
        %v1263 = vunpack.c.l.b16 %v758
        %v1264 = vunpack.c.l.b16 %v759
        %v1265 = vunpack.c.l.b16 %v760
        %v1266 = vunpack.c.l.b16 %v761
        %v1267 = vunpack.c.l.b16 %v762
        %v1268 = vunpack.c.l.b16 %v763
        %v1269 = vunpack.c.l.b16 %v764
        %v1270 = vunpack.c.l.b16 %v765
        %v1271 = vunpack.c.l.b16 %v766
        %v1272 = vunpack.c.l.b16 %v767
        %v1273 = vunpack.c.l.b16 %v768
        %v1274 = vunpack.c.l.b16 %v769
        %v1275 = vunpack.c.l.b16 %v770
        %v1276 = vunpack.c.l.b16 %v771
        %v1277 = vunpack.c.l.b16 %v772
        %v1278 = vunpack.c.l.b16 %v773
        %v1279 = vunpack.c.l.b16 %v774
        %v1280 = vunpack.c.l.b16 %v775
        %v1281 = vunpack.c.l.b16 %v776
        %v1282 = vunpack.c.l.b16 %v777
        %v1283 = vunpack.c.l.b16 %v778
        %v1284 = vunpack.c.l.b16 %v779
        %v1285 = vunpack.c.l.b16 %v780
        %v1286 = vunpack.c.l.b16 %v781
        %v1287 = vunpack.c.l.b16 %v782
        %v1288 = vunpack.c.l.b16 %v783
        %v1289 = vunpack.c.l.b16 %v784
        %v1290 = vunpack.c.l.b16 %v785
        %v1291 = vunpack.c.l.b16 %v786
        %v1292 = vunpack.c.l.b16 %v787
        %v1293 = vunpack.c.l.b16 %v788
        %v1294 = vunpack.c.l.b16 %v789
        %v1295 = vunpack.c.l.b16 %v790
        %v1296 = vunpack.c.l.b16 %v791
        %v1297 = vunpack.c.l.b16 %v792
        %v1298 = vunpack.c.l.b16 %v793
        %v1299 = vunpack.c.l.b16 %v794
        %v1300 = vunpack.c.l.b16 %v795
        %v1301 = vunpack.c.l.b16 %v796
        %v1302 = vunpack.c.l.b16 %v797
        %v1303 = vunpack.c.l.b16 %v798
        %v1304 = vunpack.c.l.b16 %v799
        %v1305 = vunpack.c.l.b16 %v800
        %v1306 = vunpack.c.l.b16 %v801
        %v1307 = vunpack.c.l.b16 %v802
        %v1308 = vunpack.c.l.b16 %v803
        %v1309 = vunpack.c.l.b16 %v804
        %v1310 = vunpack.c.l.b16 %v805
        %v1311 = vunpack.c.l.b16 %v806
        %v1312 = vunpack.c.l.b16 %v807
        %v1313 = vunpack.c.l.b16 %v808
        %v1314 = vunpack.c.l.b16 %v809
        %v1315 = vunpack.c.l.b16 %v810
        %v1316 = vunpack.c.l.b16 %v811
        %v1317 = vunpack.c.l.b16 %v812
        %v1318 = vunpack.c.l.b16 %v813
        %v1319 = vunpack.c.l.b16 %v814
        %v1320 = vunpack.c.l.b16 %v815
        %v1321 = vunpack.c.l.b16 %v816
        %v1322 = vunpack.c.l.b16 %v817
        %v1323 = vunpack.c.l.b16 %v818
        %v1324 = vunpack.c.l.b16 %v819
        %v1325 = vunpack.c.l.b16 %v820
        %v1326 = vunpack.c.l.b16 %v821
        %v1327 = vunpack.c.l.b16 %v822
        %v1328 = vunpack.c.l.b16 %v823
        %v1329 = vunpack.c.l.b16 %v824
        %v1330 = vunpack.c.l.b16 %v825
        %v1331 = vunpack.c.l.b16 %v826
        %v1332 = vunpack.c.l.b16 %v827
        %v1333 = vunpack.c.l.b16 %v828
        %v1334 = vunpack.c.l.b16 %v829
        %v1335 = vunpack.c.l.b16 %v830
        %v1336 = vunpack.c.l.b16 %v831
        %v1337 = vunpack.c.l.b16 %v832
        %v1338 = vunpack.c.l.b16 %v833
        %v1339 = vunpack.c.l.b16 %v834
        %v1340 = vunpack.c.l.b16 %v835
        %v1341 = vunpack.c.l.b16 %v836
        %v1342 = vunpack.c.l.b16 %v837
        %v1343 = vunpack.c.l.b16 %v838
        %v1344 = vunpack.c.l.b16 %v839
        %v1345 = vunpack.c.l.b16 %v840
        %v1346 = vunpack.c.l.b16 %v841
        %v1347 = vunpack.c.l.b16 %v842
        %v1348 = vunpack.c.l.b16 %v843
        %v1349 = vunpack.c.l.b16 %v844
        %v1350 = vunpack.c.l.b16 %v845
        %v1351 = vunpack.c.l.b16 %v846
        %v1352 = vunpack.c.l.b16 %v847
        %v1353 = vunpack.c.l.b16 %v848
        %v1354 = vunpack.c.l.b16 %v849
        %v1355 = vunpack.c.l.b16 %v850
        %v1356 = vunpack.c.l.b16 %v851
        %v1357 = vunpack.c.l.b16 %v852
        %v1358 = vunpack.c.l.b16 %v853
        %v1359 = vunpack.c.l.b16 %v854
        %v1360 = vunpack.c.l.b16 %v855
        %v1361 = vunpack.c.l.b16 %v856
        %v1362 = vunpack.c.l.b16 %v857
        %v1363 = vunpack.c.l.b16 %v858
        %v1364 = vpack.c.b16 %v1221, %v1220
        %v1365 = vpack.c.b16 %v1223, %v1222
        %v1366 = vpack.c.b16 %v1225, %v1224
        %v1367 = vpack.c.b16 %v1227, %v1226
        %v1368 = vpack.c.b16 %v1229, %v1228
        %v1369 = vpack.c.b16 %v1231, %v1230
        %v1370 = vpack.c.b16 %v1233, %v1232
        %v1371 = vpack.c.b16 %v1235, %v1234
        %v1372 = vpack.c.b16 %v1237, %v1236
        %v1373 = vpack.c.b16 %v1239, %v1238
        %v1374 = vpack.c.b16 %v1241, %v1240
        %v1375 = vpack.c.b16 %v1243, %v1242
        %v1376 = vpack.c.b16 %v1245, %v1244
        %v1377 = vpack.c.b16 %v1247, %v1246
        %v1378 = vpack.c.b16 %v1249, %v1248
        %v1379 = vpack.c.b16 %v1251, %v1250
        %v1380 = vpack.c.b16 %v1253, %v1252
        %v1381 = vpack.c.b16 %v1255, %v1254
        %v1382 = vpack.c.b16 %v1257, %v1256
        %v1383 = vpack.c.b16 %v1259, %v1258
        %v1384 = vpack.c.b16 %v1261, %v1260
        %v1385 = vpack.c.b16 %v1263, %v1262
        %v1386 = vpack.c.b16 %v1265, %v1264
        %v1387 = vpack.c.b16 %v1267, %v1266
        %v1388 = vpack.c.b16 %v1269, %v1268
        %v1389 = vpack.c.b16 %v1271, %v1270
        %v1390 = vpack.c.b16 %v1273, %v1272
        %v1391 = vpack.c.b16 %v1275, %v1274
        %v1392 = vpack.c.b16 %v1277, %v1276
        %v1393 = vpack.c.b16 %v1279, %v1278
        %v1394 = vpack.c.b16 %v1281, %v1280
        %v1395 = vpack.c.b16 %v1283, %v1282
        %v1396 = vpack.c.b16 %v1285, %v1284
        %v1397 = vpack.c.b16 %v1287, %v1286
        %v1398 = vpack.c.b16 %v1289, %v1288
        %v1399 = vpack.c.b16 %v1291, %v1290
        %v1400 = vpack.c.b16 %v1293, %v1292
        %v1401 = vpack.c.b16 %v1295, %v1294
        %v1402 = vpack.c.b16 %v1297, %v1296
        %v1403 = vpack.c.b16 %v1299, %v1298
        %v1404 = vpack.c.b16 %v1301, %v1300
        %v1405 = vpack.c.b16 %v1303, %v1302
        %v1406 = vpack.c.b16 %v1305, %v1304
        %v1407 = vpack.c.b16 %v1307, %v1306
        %v1408 = vpack.c.b16 %v1309, %v1308
        %v1409 = vpack.c.b16 %v1311, %v1310
        %v1410 = vpack.c.b16 %v1313, %v1312
        %v1411 = vpack.c.b16 %v1315, %v1314
        %v1412 = vpack.c.b16 %v1317, %v1316
        %v1413 = vpack.c.b16 %v1319, %v1318
        %v1414 = vpack.c.b16 %v1321, %v1320
        %v1415 = vpack.c.b16 %v1323, %v1322
        %v1416 = vpack.c.b16 %v1325, %v1324
        %v1417 = vpack.c.b16 %v1327, %v1326
        %v1418 = vpack.c.b16 %v1329, %v1328
        %v1419 = vpack.c.b16 %v1331, %v1330
        %v1420 = vpack.c.b16 %v1333, %v1332
        %v1421 = vpack.c.b16 %v1335, %v1334
        %v1422 = vpack.c.b16 %v1337, %v1336
        %v1423 = vpack.c.b16 %v1339, %v1338
        %v1424 = vpack.c.b16 %v1341, %v1340
        %v1425 = vpack.c.b16 %v1343, %v1342
        %v1426 = vpack.c.b16 %v1345, %v1344
        %v1427 = vpack.c.b16 %v1347, %v1346
        %v1428 = vpack.c.b16 %v1349, %v1348
        %v1429 = vpack.c.b16 %v1351, %v1350
        %v1430 = vpack.c.b16 %v1353, %v1352
        %v1431 = vpack.c.b16 %v1355, %v1354
        %v1432 = vpack.c.b16 %v1357, %v1356
        %v1433 = vpack.c.b16 %v1359, %v1358
        %v1434 = vpack.c.b16 %v1361, %v1360
        %v1435 = vpack.c.b16 %v1363, %v1362
        %1508 = vmatprep.subr.bf16.mxu0 0
        %1509 = vmatpush1.bf16.msra.mxu0 %v1364
        %1510 = vmatprep.subr.bf16.mxu0 0
        %1511 = vmatpush1.bf16.msra.mxu0 %v1365
        %1512 = vmatprep.subr.bf16.mxu0 0
        %1513 = vmatpush1.bf16.msra.mxu0 %v1366
        %1514 = vmatprep.subr.bf16.mxu0 0
        %1515 = vmatpush1.bf16.msra.mxu0 %v1367
        %1516 = vmatprep.subr.bf16.mxu0 0
        %1517 = vmatpush1.bf16.msra.mxu0 %v1368
        %1518 = vmatprep.subr.bf16.mxu0 0
        %1519 = vmatpush1.bf16.msra.mxu0 %v1369
        %1520 = vmatprep.subr.bf16.mxu0 0
        %1521 = vmatpush1.bf16.msra.mxu0 %v1370
        %1522 = vmatprep.subr.bf16.mxu0 0
        %1523 = vmatpush1.bf16.msra.mxu0 %v1371
        %1524 = vmatprep.subr.bf16.mxu0 0
        %1525 = vmatpush1.bf16.msra.mxu0 %v1372
        %1526 = vmatprep.subr.bf16.mxu0 0
        %1527 = vmatpush1.bf16.msra.mxu0 %v1373
        %1528 = vmatprep.subr.bf16.mxu0 0
        %1529 = vmatpush1.bf16.msra.mxu0 %v1374
        %1530 = vmatprep.subr.bf16.mxu0 0
        %1531 = vmatpush1.bf16.msra.mxu0 %v1375
        %1532 = vmatprep.subr.bf16.mxu0 0
        %1533 = vmatpush1.bf16.msra.mxu0 %v1376
        %1534 = vmatprep.subr.bf16.mxu0 0
        %1535 = vmatpush1.bf16.msra.mxu0 %v1377
        %1536 = vmatprep.subr.bf16.mxu0 0
        %1537 = vmatpush1.bf16.msra.mxu0 %v1378
        %1538 = vmatprep.subr.bf16.mxu0 0
        %1539 = vmatpush1.bf16.msra.mxu0 %v1379
        %1540 = vmatprep.mubr.bf16.mxu0 %v899
        %1541 = vmatmul.mubr.bf16.gmra.mrb[0].mxu0 %v875
        %v1542 = vpop.f32.mrb[0].mxu0
        %v1543 = vadd.f32 0.0, %v1542
        %v1544 = vpop.f32.mrb[0].mxu0
        %v1545 = vpop.f32.mrb[0].mxu0
        %v1546 = vadd.f32 0.0, %v1545
        %v1547 = vpop.f32.mrb[0].mxu0
        %1548 = vmatprep.mubr.bf16.mxu0 %v900
        %1549 = vmatmul.mubr.bf16.gmra.mrb[0].mxu0 %v876
        %v1550 = vpop.f32.mrb[0].mxu0
        %v1551 = vadd.f32 0.0, %v1550
        %v1552 = vpop.f32.mrb[0].mxu0
        %v1553 = vpop.f32.mrb[0].mxu0
        %v1554 = vadd.f32 0.0, %v1553
        %v1555 = vpop.f32.mrb[0].mxu0
        %1556 = vmatprep.mubr.bf16.mxu0 %v901
        %1557 = vmatmul.mubr.bf16.gmra.mrb[0].mxu0 %v877
        %v1558 = vpop.f32.mrb[0].mxu0
        %v1559 = vadd.f32 0.0, %v1558
        %v1560 = vpop.f32.mrb[0].mxu0
        %v1561 = vpop.f32.mrb[0].mxu0
        %v1562 = vadd.f32 0.0, %v1561
        %v1563 = vpop.f32.mrb[0].mxu0
        %1564 = vmatprep.mubr.bf16.mxu0 %v902
        %1565 = vmatmul.mubr.bf16.gmra.mrb[0].mxu0 %v878
        %v1566 = vpop.f32.mrb[0].mxu0
        %v1567 = vadd.f32 0.0, %v1566
        %v1568 = vpop.f32.mrb[0].mxu0
        %v1569 = vpop.f32.mrb[0].mxu0
        %v1570 = vadd.f32 0.0, %v1569
        %v1571 = vpop.f32.mrb[0].mxu0
        %1572 = vmatprep.mubr.bf16.mxu0 %v903
        %1573 = vmatmul.mubr.bf16.gmra.mrb[0].mxu0 %v879
        %v1574 = vpop.f32.mrb[0].mxu0
        %v1575 = vadd.f32 0.0, %v1574
        %v1576 = vpop.f32.mrb[0].mxu0
        %v1577 = vpop.f32.mrb[0].mxu0
        %v1578 = vadd.f32 0.0, %v1577
        %v1579 = vpop.f32.mrb[0].mxu0
        %1580 = vmatprep.mubr.bf16.mxu0 %v904
        %1581 = vmatmul.mubr.bf16.gmra.mrb[0].mxu0 %v880
        %v1582 = vpop.f32.mrb[0].mxu0
        %v1583 = vadd.f32 0.0, %v1582
        %v1584 = vpop.f32.mrb[0].mxu0
        %v1585 = vpop.f32.mrb[0].mxu0
        %v1586 = vadd.f32 0.0, %v1585
        %v1587 = vpop.f32.mrb[0].mxu0
        %1588 = vmatprep.mubr.bf16.mxu0 %v905
        %1589 = vmatmul.mubr.bf16.gmra.mrb[0].mxu0 %v881
        %v1590 = vpop.f32.mrb[0].mxu0
        %v1591 = vadd.f32 0.0, %v1590
        %v1592 = vpop.f32.mrb[0].mxu0
        %v1593 = vpop.f32.mrb[0].mxu0
        %v1594 = vadd.f32 0.0, %v1593
        %v1595 = vpop.f32.mrb[0].mxu0
        %1596 = vmatprep.mubr.bf16.mxu0 %v906
        %1597 = vmatmul.mubr.bf16.gmra.mrb[0].mxu0 %v882
        %v1598 = vpop.f32.mrb[0].mxu0
        %v1599 = vadd.f32 0.0, %v1598
        %v1600 = vpop.f32.mrb[0].mxu0
        %v1601 = vpop.f32.mrb[0].mxu0
        %v1602 = vadd.f32 0.0, %v1601
        %v1603 = vpop.f32.mrb[0].mxu0
        %1604 = vdwg.mxu0
        %1605 = vmatprep.subr.bf16.mxu0 0
        %1606 = vmatpush1.bf16.msra.mxu0 %v1380
        %1607 = vmatprep.subr.bf16.mxu0 0
        %1608 = vmatpush1.bf16.msra.mxu0 %v1381
        %1609 = vmatprep.subr.bf16.mxu0 0
        %1610 = vmatpush1.bf16.msra.mxu0 %v1382
        %1611 = vmatprep.subr.bf16.mxu0 0
        %1612 = vmatpush1.bf16.msra.mxu0 %v1383
        %1613 = vmatprep.subr.bf16.mxu0 0
        %1614 = vmatpush1.bf16.msra.mxu0 %v1384
        %1615 = vmatprep.subr.bf16.mxu0 0
        %1616 = vmatpush1.bf16.msra.mxu0 %v1385
        %1617 = vmatprep.subr.bf16.mxu0 0
        %1618 = vmatpush1.bf16.msra.mxu0 %v1386
        %1619 = vmatprep.subr.bf16.mxu0 0
        %1620 = vmatpush1.bf16.msra.mxu0 %v1387
        %1621 = vmatprep.subr.bf16.mxu0 0
        %1622 = vmatpush1.bf16.msra.mxu0 %v1388
        %1623 = vmatprep.subr.bf16.mxu0 0
        %1624 = vmatpush1.bf16.msra.mxu0 %v1389
        %1625 = vmatprep.subr.bf16.mxu0 0
        %1626 = vmatpush1.bf16.msra.mxu0 %v1390
        %1627 = vmatprep.subr.bf16.mxu0 0
        %1628 = vmatpush1.bf16.msra.mxu0 %v1391
        %1629 = vmatprep.subr.bf16.mxu0 0
        %1630 = vmatpush1.bf16.msra.mxu0 %v1392
        %1631 = vmatprep.subr.bf16.mxu0 0
        %1632 = vmatpush1.bf16.msra.mxu0 %v1393
        %1633 = vmatprep.subr.bf16.mxu0 0
        %1634 = vmatpush1.bf16.msra.mxu0 %v1394
        %1635 = vmatprep.subr.bf16.mxu0 0
        %1636 = vmatpush1.bf16.msra.mxu0 %v1395
        %1637 = vmatprep.mubr.bf16.mxu0 %v947
        %1638 = vmatmul.mubr.bf16.gmra.mrb[0].mxu0 %v923
        %v1639 = vpop.f32.mrb[0].mxu0
        %v1640 = vadd.f32 %v1543, %v1639
        %v1641 = vpop.f32.mrb[0].mxu0
        %v1642 = vpop.f32.mrb[0].mxu0
        %v1643 = vadd.f32 %v1546, %v1642
        %v1644 = vpop.f32.mrb[0].mxu0
        %1645 = vmatprep.mubr.bf16.mxu0 %v948
        %1646 = vmatmul.mubr.bf16.gmra.mrb[0].mxu0 %v924
        %v1647 = vpop.f32.mrb[0].mxu0
        %v1648 = vadd.f32 %v1551, %v1647
        %v1649 = vpop.f32.mrb[0].mxu0
        %v1650 = vpop.f32.mrb[0].mxu0
        %v1651 = vadd.f32 %v1554, %v1650
        %v1652 = vpop.f32.mrb[0].mxu0
        %1653 = vmatprep.mubr.bf16.mxu0 %v949
        %1654 = vmatmul.mubr.bf16.gmra.mrb[0].mxu0 %v925
        %v1655 = vpop.f32.mrb[0].mxu0
        %v1656 = vadd.f32 %v1559, %v1655
        %v1657 = vpop.f32.mrb[0].mxu0
        %v1658 = vpop.f32.mrb[0].mxu0
        %v1659 = vadd.f32 %v1562, %v1658
        %v1660 = vpop.f32.mrb[0].mxu0
        %1661 = vmatprep.mubr.bf16.mxu0 %v950
        %1662 = vmatmul.mubr.bf16.gmra.mrb[0].mxu0 %v926
        %v1663 = vpop.f32.mrb[0].mxu0
        %v1664 = vadd.f32 %v1567, %v1663
        %v1665 = vpop.f32.mrb[0].mxu0
        %v1666 = vpop.f32.mrb[0].mxu0
        %v1667 = vadd.f32 %v1570, %v1666
        %v1668 = vpop.f32.mrb[0].mxu0
        %1669 = vmatprep.mubr.bf16.mxu0 %v951
        %1670 = vmatmul.mubr.bf16.gmra.mrb[0].mxu0 %v927
        %v1671 = vpop.f32.mrb[0].mxu0
        %v1672 = vadd.f32 %v1575, %v1671
        %v1673 = vpop.f32.mrb[0].mxu0
        %v1674 = vpop.f32.mrb[0].mxu0
        %v1675 = vadd.f32 %v1578, %v1674
        %v1676 = vpop.f32.mrb[0].mxu0
        %1677 = vmatprep.mubr.bf16.mxu0 %v952
        %1678 = vmatmul.mubr.bf16.gmra.mrb[0].mxu0 %v928
        %v1679 = vpop.f32.mrb[0].mxu0
        %v1680 = vadd.f32 %v1583, %v1679
        %v1681 = vpop.f32.mrb[0].mxu0
        %v1682 = vpop.f32.mrb[0].mxu0
        %v1683 = vadd.f32 %v1586, %v1682
        %v1684 = vpop.f32.mrb[0].mxu0
        %1685 = vmatprep.mubr.bf16.mxu0 %v953
        %1686 = vmatmul.mubr.bf16.gmra.mrb[0].mxu0 %v929
        %v1687 = vpop.f32.mrb[0].mxu0
        %v1688 = vadd.f32 %v1591, %v1687
        %v1689 = vpop.f32.mrb[0].mxu0
        %v1690 = vpop.f32.mrb[0].mxu0
        %v1691 = vadd.f32 %v1594, %v1690
        %v1692 = vpop.f32.mrb[0].mxu0
        %1693 = vmatprep.mubr.bf16.mxu0 %v954
        %1694 = vmatmul.mubr.bf16.gmra.mrb[0].mxu0 %v930
        %v1695 = vpop.f32.mrb[0].mxu0
        %v1696 = vadd.f32 %v1599, %v1695
        %v1697 = vpop.f32.mrb[0].mxu0
        %v1698 = vpop.f32.mrb[0].mxu0
        %v1699 = vadd.f32 %v1602, %v1698
        %v1700 = vpop.f32.mrb[0].mxu0
        %1701 = vdwg.mxu0
        %1702 = vmatprep.subr.bf16.mxu0 0
        %1703 = vmatpush1.bf16.msra.mxu0 %v1396
        %1704 = vmatprep.subr.bf16.mxu0 0
        %1705 = vmatpush1.bf16.msra.mxu0 %v1397
        %1706 = vmatprep.subr.bf16.mxu0 0
        %1707 = vmatpush1.bf16.msra.mxu0 %v1398
        %1708 = vmatprep.subr.bf16.mxu0 0
        %1709 = vmatpush1.bf16.msra.mxu0 %v1399
        %1710 = vmatprep.subr.bf16.mxu0 0
        %1711 = vmatpush1.bf16.msra.mxu0 %v1400
        %1712 = vmatprep.subr.bf16.mxu0 0
        %1713 = vmatpush1.bf16.msra.mxu0 %v1401
        %1714 = vmatprep.subr.bf16.mxu0 0
        %1715 = vmatpush1.bf16.msra.mxu0 %v1402
        %1716 = vmatprep.subr.bf16.mxu0 0
        %1717 = vmatpush1.bf16.msra.mxu0 %v1403
        %1718 = vmatprep.subr.bf16.mxu0 0
        %1719 = vmatpush1.bf16.msra.mxu0 %v1404
        %1720 = vmatprep.subr.bf16.mxu0 0
        %1721 = vmatpush1.bf16.msra.mxu0 %v1405
        %1722 = vmatprep.subr.bf16.mxu0 0
        %1723 = vmatpush1.bf16.msra.mxu0 %v1406
        %1724 = vmatprep.subr.bf16.mxu0 0
        %1725 = vmatpush1.bf16.msra.mxu0 %v1407
        %1726 = vmatprep.subr.bf16.mxu0 0
        %1727 = vmatpush1.bf16.msra.mxu0 %v1408
        %1728 = vmatprep.subr.bf16.mxu0 0
        %1729 = vmatpush1.bf16.msra.mxu0 %v1409
        %1730 = vmatprep.subr.bf16.mxu0 0
        %1731 = vmatpush1.bf16.msra.mxu0 %v1410
        %1732 = vmatprep.subr.bf16.mxu0 0
        %1733 = vmatpush1.bf16.msra.mxu0 %v1411
        %1734 = vmatprep.mubr.bf16.mxu0 %v995
        %1735 = vmatmul.mubr.bf16.gmra.mrb[0].mxu0 %v971
        %v1736 = vpop.f32.mrb[0].mxu0
        %v1737 = vadd.f32 %v1640, %v1736
        %v1738 = vpop.f32.mrb[0].mxu0
        %v1739 = vpop.f32.mrb[0].mxu0
        %v1740 = vadd.f32 %v1643, %v1739
        %v1741 = vpop.f32.mrb[0].mxu0
        %1742 = vmatprep.mubr.bf16.mxu0 %v996
        %1743 = vmatmul.mubr.bf16.gmra.mrb[0].mxu0 %v972
        %v1744 = vpop.f32.mrb[0].mxu0
        %v1745 = vadd.f32 %v1648, %v1744
        %v1746 = vpop.f32.mrb[0].mxu0
        %v1747 = vpop.f32.mrb[0].mxu0
        %v1748 = vadd.f32 %v1651, %v1747
        %v1749 = vpop.f32.mrb[0].mxu0
        %1750 = vmatprep.mubr.bf16.mxu0 %v997
        %1751 = vmatmul.mubr.bf16.gmra.mrb[0].mxu0 %v973
        %v1752 = vpop.f32.mrb[0].mxu0
        %v1753 = vadd.f32 %v1656, %v1752
        %v1754 = vpop.f32.mrb[0].mxu0
        %v1755 = vpop.f32.mrb[0].mxu0
        %v1756 = vadd.f32 %v1659, %v1755
        %v1757 = vpop.f32.mrb[0].mxu0
        %1758 = vmatprep.mubr.bf16.mxu0 %v998
        %1759 = vmatmul.mubr.bf16.gmra.mrb[0].mxu0 %v974
        %v1760 = vpop.f32.mrb[0].mxu0
        %v1761 = vadd.f32 %v1664, %v1760
        %v1762 = vpop.f32.mrb[0].mxu0
        %v1763 = vpop.f32.mrb[0].mxu0
        %v1764 = vadd.f32 %v1667, %v1763
        %v1765 = vpop.f32.mrb[0].mxu0
        %1766 = vmatprep.mubr.bf16.mxu0 %v999
        %1767 = vmatmul.mubr.bf16.gmra.mrb[0].mxu0 %v975
        %v1768 = vpop.f32.mrb[0].mxu0
        %v1769 = vadd.f32 %v1672, %v1768
        %v1770 = vpop.f32.mrb[0].mxu0
        %v1771 = vpop.f32.mrb[0].mxu0
        %v1772 = vadd.f32 %v1675, %v1771
        %v1773 = vpop.f32.mrb[0].mxu0
        %1774 = vmatprep.mubr.bf16.mxu0 %v1000
        %1775 = vmatmul.mubr.bf16.gmra.mrb[0].mxu0 %v976
        %v1776 = vpop.f32.mrb[0].mxu0
        %v1777 = vadd.f32 %v1680, %v1776
        %v1778 = vpop.f32.mrb[0].mxu0
        %v1779 = vpop.f32.mrb[0].mxu0
        %v1780 = vadd.f32 %v1683, %v1779
        %v1781 = vpop.f32.mrb[0].mxu0
        %1782 = vmatprep.mubr.bf16.mxu0 %v1001
        %1783 = vmatmul.mubr.bf16.gmra.mrb[0].mxu0 %v977
        %v1784 = vpop.f32.mrb[0].mxu0
        %v1785 = vadd.f32 %v1688, %v1784
        %v1786 = vpop.f32.mrb[0].mxu0
        %v1787 = vpop.f32.mrb[0].mxu0
        %v1788 = vadd.f32 %v1691, %v1787
        %v1789 = vpop.f32.mrb[0].mxu0
        %1790 = vmatprep.mubr.bf16.mxu0 %v1002
        %1791 = vmatmul.mubr.bf16.gmra.mrb[0].mxu0 %v978
        %v1792 = vpop.f32.mrb[0].mxu0
        %v1793 = vadd.f32 %v1696, %v1792
        %v1794 = vpop.f32.mrb[0].mxu0
        %v1795 = vpop.f32.mrb[0].mxu0
        %v1796 = vadd.f32 %v1699, %v1795
        %v1797 = vpop.f32.mrb[0].mxu0
        %1798 = vdwg.mxu0
        %1799 = vmatprep.subr.bf16.mxu0 0
        %1800 = vmatpush1.bf16.msra.mxu0 %v1412
        %1801 = vmatprep.subr.bf16.mxu0 0
        %1802 = vmatpush1.bf16.msra.mxu0 %v1413
        %1803 = vmatprep.subr.bf16.mxu0 0
        %1804 = vmatpush1.bf16.msra.mxu0 %v1414
        %1805 = vmatprep.subr.bf16.mxu0 0
        %1806 = vmatpush1.bf16.msra.mxu0 %v1415
        %1807 = vmatprep.subr.bf16.mxu0 0
        %1808 = vmatpush1.bf16.msra.mxu0 %v1416
        %1809 = vmatprep.subr.bf16.mxu0 0
        %1810 = vmatpush1.bf16.msra.mxu0 %v1417
        %1811 = vmatprep.subr.bf16.mxu0 0
        %1812 = vmatpush1.bf16.msra.mxu0 %v1418
        %1813 = vmatprep.subr.bf16.mxu0 0
        %1814 = vmatpush1.bf16.msra.mxu0 %v1419
        %1815 = vmatprep.subr.bf16.mxu0 0
        %1816 = vmatpush1.bf16.msra.mxu0 %v1420
        %1817 = vmatprep.subr.bf16.mxu0 0
        %1818 = vmatpush1.bf16.msra.mxu0 %v1421
        %1819 = vmatprep.subr.bf16.mxu0 0
        %1820 = vmatpush1.bf16.msra.mxu0 %v1422
        %1821 = vmatprep.subr.bf16.mxu0 0
        %1822 = vmatpush1.bf16.msra.mxu0 %v1423
        %1823 = vmatprep.subr.bf16.mxu0 0
        %1824 = vmatpush1.bf16.msra.mxu0 %v1424
        %1825 = vmatprep.subr.bf16.mxu0 0
        %1826 = vmatpush1.bf16.msra.mxu0 %v1425
        %1827 = vmatprep.subr.bf16.mxu0 0
        %1828 = vmatpush1.bf16.msra.mxu0 %v1426
        %1829 = vmatprep.subr.bf16.mxu0 0
        %1830 = vmatpush1.bf16.msra.mxu0 %v1427
        %1831 = vmatprep.mubr.bf16.mxu0 %v1044
        %1832 = vmatmul.mubr.bf16.gmra.mrb[0].mxu0 %v1020
        %v1833 = vpop.f32.mrb[0].mxu0
        %v1834 = vadd.f32 %v1737, %v1833
        %v1835 = vpop.f32.mrb[0].mxu0
        %v1836 = vpop.f32.mrb[0].mxu0
        %v1837 = vadd.f32 %v1740, %v1836
        %v1838 = vpop.f32.mrb[0].mxu0
        %1839 = vmatprep.mubr.bf16.mxu0 %v1045
        %1840 = vmatmul.mubr.bf16.gmra.mrb[0].mxu0 %v1021
        %v1841 = vpop.f32.mrb[0].mxu0
        %v1842 = vadd.f32 %v1745, %v1841
        %v1843 = vpop.f32.mrb[0].mxu0
        %v1844 = vpop.f32.mrb[0].mxu0
        %v1845 = vadd.f32 %v1748, %v1844
        %v1846 = vpop.f32.mrb[0].mxu0
        %1847 = vmatprep.mubr.bf16.mxu0 %v1046
        %1848 = vmatmul.mubr.bf16.gmra.mrb[0].mxu0 %v1022
        %v1849 = vpop.f32.mrb[0].mxu0
        %v1850 = vadd.f32 %v1753, %v1849
        %v1851 = vpop.f32.mrb[0].mxu0
        %v1852 = vpop.f32.mrb[0].mxu0
        %v1853 = vadd.f32 %v1756, %v1852
        %v1854 = vpop.f32.mrb[0].mxu0
        %1855 = vmatprep.mubr.bf16.mxu0 %v1047
        %1856 = vmatmul.mubr.bf16.gmra.mrb[0].mxu0 %v1023
        %v1857 = vpop.f32.mrb[0].mxu0
        %v1858 = vadd.f32 %v1761, %v1857
        %v1859 = vpop.f32.mrb[0].mxu0
        %v1860 = vpop.f32.mrb[0].mxu0
        %v1861 = vadd.f32 %v1764, %v1860
        %v1862 = vpop.f32.mrb[0].mxu0
        %1863 = vmatprep.mubr.bf16.mxu0 %v1048
        %1864 = vmatmul.mubr.bf16.gmra.mrb[0].mxu0 %v1024
        %v1865 = vpop.f32.mrb[0].mxu0
        %v1866 = vadd.f32 %v1769, %v1865
        %v1867 = vpop.f32.mrb[0].mxu0
        %v1868 = vpop.f32.mrb[0].mxu0
        %v1869 = vadd.f32 %v1772, %v1868
        %v1870 = vpop.f32.mrb[0].mxu0
        %1871 = vmatprep.mubr.bf16.mxu0 %v1049
        %1872 = vmatmul.mubr.bf16.gmra.mrb[0].mxu0 %v1025
        %v1873 = vpop.f32.mrb[0].mxu0
        %v1874 = vadd.f32 %v1777, %v1873
        %v1875 = vpop.f32.mrb[0].mxu0
        %v1876 = vpop.f32.mrb[0].mxu0
        %v1877 = vadd.f32 %v1780, %v1876
        %v1878 = vpop.f32.mrb[0].mxu0
        %1879 = vmatprep.mubr.bf16.mxu0 %v1050
        %1880 = vmatmul.mubr.bf16.gmra.mrb[0].mxu0 %v1026
        %v1881 = vpop.f32.mrb[0].mxu0
        %v1882 = vadd.f32 %v1785, %v1881
        %v1883 = vpop.f32.mrb[0].mxu0
        %v1884 = vpop.f32.mrb[0].mxu0
        %v1885 = vadd.f32 %v1788, %v1884
        %v1886 = vpop.f32.mrb[0].mxu0
        %1887 = vmatprep.mubr.bf16.mxu0 %v1051
        %1888 = vmatmul.mubr.bf16.gmra.mrb[0].mxu0 %v1027
        %v1889 = vpop.f32.mrb[0].mxu0
        %v1890 = vadd.f32 %v1793, %v1889
        %v1891 = vpop.f32.mrb[0].mxu0
        %v1892 = vpop.f32.mrb[0].mxu0
        %v1893 = vadd.f32 %v1796, %v1892
        %v1894 = vpop.f32.mrb[0].mxu0
        %1895 = vdwg.mxu0
        %1896 = vmatprep.subr.bf16.mxu0 0
        %1897 = vmatpush1.bf16.msra.mxu0 %v1428
        %1898 = vmatprep.subr.bf16.mxu0 0
        %1899 = vmatpush1.bf16.msra.mxu0 %v1429
        %1900 = vmatprep.subr.bf16.mxu0 0
        %1901 = vmatpush1.bf16.msra.mxu0 %v1430
        %1902 = vmatprep.subr.bf16.mxu0 0
        %1903 = vmatpush1.bf16.msra.mxu0 %v1431
        %1904 = vmatprep.subr.bf16.mxu0 0
        %1905 = vmatpush1.bf16.msra.mxu0 %v1432
        %1906 = vmatprep.subr.bf16.mxu0 0
        %1907 = vmatpush1.bf16.msra.mxu0 %v1433
        %1908 = vmatprep.subr.bf16.mxu0 0
        %1909 = vmatpush1.bf16.msra.mxu0 %v1434
        %1910 = vmatprep.subr.bf16.mxu0 0
        %1911 = vmatpush1.bf16.msra.mxu0 %v1435
        %1912 = vmatprep.subr.bf16.mxu0 0
        %1913 = vmatpush1.bf16.msra.mxu0 0
        %1914 = vmatprep.subr.bf16.mxu0 0
        %1915 = vmatpush1.bf16.msra.mxu0 0
        %1916 = vmatprep.subr.bf16.mxu0 0
        %1917 = vmatpush1.bf16.msra.mxu0 0
        %1918 = vmatprep.subr.bf16.mxu0 0
        %1919 = vmatpush1.bf16.msra.mxu0 0
        %1920 = vmatprep.subr.bf16.mxu0 0
        %1921 = vmatpush1.bf16.msra.mxu0 0
        %1922 = vmatprep.subr.bf16.mxu0 0
        %1923 = vmatpush1.bf16.msra.mxu0 0
        %1924 = vmatprep.subr.bf16.mxu0 0
        %1925 = vmatpush1.bf16.msra.mxu0 0
        %1926 = vmatprep.subr.bf16.mxu0 0
        %1927 = vmatpush1.bf16.msra.mxu0 0
        %1928 = vmatprep.mubr.bf16.mxu0 0
        %1929 = vmatmul.mubr.bf16.gmra.mrb[0].mxu0 %v1068
        %v1930 = vpop.f32.mrb[0].mxu0
        %v1931 = vadd.f32 %v1834, %v1930
        %v1932 = vpop.f32.mrb[0].mxu0
        %v1933 = vpop.f32.mrb[0].mxu0
        %v1934 = vadd.f32 %v1837, %v1933
        %v1935 = vpop.f32.mrb[0].mxu0
        %1936 = vmatprep.mubr.bf16.mxu0 0
        %1937 = vmatmul.mubr.bf16.gmra.mrb[0].mxu0 %v1069
        %v1938 = vpop.f32.mrb[0].mxu0
        %v1939 = vadd.f32 %v1842, %v1938
        %v1940 = vpop.f32.mrb[0].mxu0
        %v1941 = vpop.f32.mrb[0].mxu0
        %v1942 = vadd.f32 %v1845, %v1941
        %v1943 = vpop.f32.mrb[0].mxu0
        %1944 = vmatprep.mubr.bf16.mxu0 0
        %1945 = vmatmul.mubr.bf16.gmra.mrb[0].mxu0 %v1070
        %v1946 = vpop.f32.mrb[0].mxu0
        %v1947 = vadd.f32 %v1850, %v1946
        %v1948 = vpop.f32.mrb[0].mxu0
        %v1949 = vpop.f32.mrb[0].mxu0
        %v1950 = vadd.f32 %v1853, %v1949
        %v1951 = vpop.f32.mrb[0].mxu0
        %1952 = vmatprep.mubr.bf16.mxu0 0
        %1953 = vmatmul.mubr.bf16.gmra.mrb[0].mxu0 %v1071
        %v1954 = vpop.f32.mrb[0].mxu0
        %v1955 = vadd.f32 %v1858, %v1954
        %v1956 = vpop.f32.mrb[0].mxu0
        %v1957 = vpop.f32.mrb[0].mxu0
        %v1958 = vadd.f32 %v1861, %v1957
        %v1959 = vpop.f32.mrb[0].mxu0
        %1960 = vmatprep.mubr.bf16.mxu0 0
        %1961 = vmatmul.mubr.bf16.gmra.mrb[0].mxu0 %v1072
        %v1962 = vpop.f32.mrb[0].mxu0
        %v1963 = vadd.f32 %v1866, %v1962
        %v1964 = vpop.f32.mrb[0].mxu0
        %v1965 = vpop.f32.mrb[0].mxu0
        %v1966 = vadd.f32 %v1869, %v1965
        %v1967 = vpop.f32.mrb[0].mxu0
        %1968 = vmatprep.mubr.bf16.mxu0 0
        %1969 = vmatmul.mubr.bf16.gmra.mrb[0].mxu0 %v1073
        %v1970 = vpop.f32.mrb[0].mxu0
        %v1971 = vadd.f32 %v1874, %v1970
        %v1972 = vpop.f32.mrb[0].mxu0
        %v1973 = vpop.f32.mrb[0].mxu0
        %v1974 = vadd.f32 %v1877, %v1973
        %v1975 = vpop.f32.mrb[0].mxu0
        %1976 = vmatprep.mubr.bf16.mxu0 0
        %1977 = vmatmul.mubr.bf16.gmra.mrb[0].mxu0 %v1074
        %v1978 = vpop.f32.mrb[0].mxu0
        %v1979 = vadd.f32 %v1882, %v1978
        %v1980 = vpop.f32.mrb[0].mxu0
        %v1981 = vpop.f32.mrb[0].mxu0
        %v1982 = vadd.f32 %v1885, %v1981
        %v1983 = vpop.f32.mrb[0].mxu0
        %1984 = vmatprep.mubr.bf16.mxu0 0
        %1985 = vmatmul.mubr.bf16.gmra.mrb[0].mxu0 %v1075
        %v1986 = vpop.f32.mrb[0].mxu0
        %v1987 = vadd.f32 %v1890, %v1986
        %v1988 = vpop.f32.mrb[0].mxu0
        %v1989 = vpop.f32.mrb[0].mxu0
        %v1990 = vadd.f32 %v1893, %v1989
        %v1991 = vpop.f32.mrb[0].mxu0
        %1992 = vdwg.mxu0
        %v1993 = vld [vmem:[%s4] sm:$0x1]
        %v1995 = vlaneseq
        %v1996 = vshrl.u32 %v1995, 7
        %v1997 = vsub.s32 0, %v1996
        %v1998 = vrot.slane %v1993, %v1997
        %v2000 = vadd.f32 %v1931, %v1998
        %v2001 = vadd.f32 %v1934, %v1998
        %v2002 = vadd.f32 %v1939, %v1998
        %v2003 = vadd.f32 %v1942, %v1998
        %v2004 = vadd.f32 %v1947, %v1998
        %v2005 = vadd.f32 %v1950, %v1998
        %v2006 = vadd.f32 %v1955, %v1998
        %v2007 = vadd.f32 %v1958, %v1998
        %v2008 = vadd.f32 %v1963, %v1998
        %v2009 = vadd.f32 %v1966, %v1998
        %v2010 = vadd.f32 %v1971, %v1998
        %v2011 = vadd.f32 %v1974, %v1998
        %v2012 = vadd.f32 %v1979, %v1998
        %v2013 = vadd.f32 %v1982, %v1998
        %v2014 = vadd.f32 %v1987, %v1998
        %v2015 = vadd.f32 %v1990, %v1998
        %v2016 = vld [vmem:[%s5] sm:$0x1]
        %v2018 = vlaneseq
        %v2019 = vshrl.u32 %v2018, 7
        %v2020 = vsub.s32 0, %v2019
        %v2021 = vrot.slane %v2016, %v2020
        %v2023 = vmul.f32 %v2000, %v2021
        %v2024 = vmul.f32 %v2001, %v2021
        %v2025 = vmul.f32 %v2002, %v2021
        %v2026 = vmul.f32 %v2003, %v2021
        %v2027 = vmul.f32 %v2004, %v2021
        %v2028 = vmul.f32 %v2005, %v2021
        %v2029 = vmul.f32 %v2006, %v2021
        %v2030 = vmul.f32 %v2007, %v2021
        %v2031 = vmul.f32 %v2008, %v2021
        %v2032 = vmul.f32 %v2009, %v2021
        %v2033 = vmul.f32 %v2010, %v2021
        %v2034 = vmul.f32 %v2011, %v2021
        %v2035 = vmul.f32 %v2012, %v2021
        %v2036 = vmul.f32 %v2013, %v2021
        %v2037 = vmul.f32 %v2014, %v2021
        %v2038 = vmul.f32 %v2015, %v2021
        %v2039 = vld [vmem:[%s6] sm:$0x1]
        %v2041 = vlaneseq
        %v2042 = vshrl.u32 %v2041, 7
        %v2043 = vsub.s32 0, %v2042
        %v2044 = vrot.slane %v2039, %v2043
        %v2046 = vadd.f32 %v2023, %v2044
        %v2047 = vadd.f32 %v2024, %v2044
        %v2048 = vadd.f32 %v2025, %v2044
        %v2049 = vadd.f32 %v2026, %v2044
        %v2050 = vadd.f32 %v2027, %v2044
        %v2051 = vadd.f32 %v2028, %v2044
        %v2052 = vadd.f32 %v2029, %v2044
        %v2053 = vadd.f32 %v2030, %v2044
        %v2054 = vadd.f32 %v2031, %v2044
        %v2055 = vadd.f32 %v2032, %v2044
        %v2056 = vadd.f32 %v2033, %v2044
        %v2057 = vadd.f32 %v2034, %v2044
        %v2058 = vadd.f32 %v2035, %v2044
        %v2059 = vadd.f32 %v2036, %v2044
        %v2060 = vadd.f32 %v2037, %v2044
        %v2061 = vadd.f32 %v2038, %v2044
        %v2062 = vmax.f32 %v2046, 0.0
        %v2063 = vmax.f32 %v2047, 0.0
        %v2064 = vmax.f32 %v2048, 0.0
        %v2065 = vmax.f32 %v2049, 0.0
        %v2066 = vmax.f32 %v2050, 0.0
        %v2067 = vmax.f32 %v2051, 0.0
        %v2068 = vmax.f32 %v2052, 0.0
        %v2069 = vmax.f32 %v2053, 0.0
        %v2070 = vmax.f32 %v2054, 0.0
        %v2071 = vmax.f32 %v2055, 0.0
        %v2072 = vmax.f32 %v2056, 0.0
        %v2073 = vmax.f32 %v2057, 0.0
        %v2074 = vmax.f32 %v2058, 0.0
        %v2075 = vmax.f32 %v2059, 0.0
        %v2076 = vmax.f32 %v2060, 0.0
        %v2077 = vmax.f32 %v2061, 0.0
        %s2078 = scalar_lea.vmem [#allocation3], 32
        %2079 = vst [vmem:[%s2078 + $0x8] sm:$0xff] %v2062
        %2080 = vst [vmem:[%s2078 + $0x10] sm:$0xff] %v2063
        %2081 = vst [vmem:[%s2078 + $0x28] sm:$0xff] %v2064
        %2082 = vst [vmem:[%s2078 + $0x30] sm:$0xff] %v2065
        %2083 = vst [vmem:[%s2078 + $0x48] sm:$0xff] %v2066
        %2084 = vst [vmem:[%s2078 + $0x50] sm:$0xff] %v2067
        %2085 = vst [vmem:[%s2078 + $0x68] sm:$0xff] %v2068
        %2086 = vst [vmem:[%s2078 + $0x70] sm:$0xff] %v2069
        %2087 = vst [vmem:[%s2078 + $0x88] sm:$0xff] %v2070
        %2088 = vst [vmem:[%s2078 + $0x90] sm:$0xff] %v2071
        %2089 = vst [vmem:[%s2078 + $0xa8] sm:$0xff] %v2072
        %2090 = vst [vmem:[%s2078 + $0xb0] sm:$0xff] %v2073
        %2091 = vst [vmem:[%s2078 + $0xc8] sm:$0xff] %v2074
        %2092 = vst [vmem:[%s2078 + $0xd0] sm:$0xff] %v2075
        %2093 = vst [vmem:[%s2078 + $0xe8] sm:$0xff] %v2076
        %2094 = vst [vmem:[%s2078 + $0xf0] sm:$0xff] %v2077
        %s2095 = scalar_lea.vmem [#allocation2], 256
        %v2096 = vld [vmem:[%s2095 + $0x7] sm:$0xff]
        %v2097 = vld [vmem:[%s2095 + $0xf] sm:$0xff]
        %v2098 = vld [vmem:[%s2095 + $0x27] sm:$0xff]
        %v2099 = vld [vmem:[%s2095 + $0x2f] sm:$0xff]
        %v2100 = vld [vmem:[%s2095 + $0x47] sm:$0xff]
        %v2101 = vld [vmem:[%s2095 + $0x4f] sm:$0xff]
        %v2102 = vld [vmem:[%s2095 + $0x67] sm:$0xff]
        %v2103 = vld [vmem:[%s2095 + $0x6f] sm:$0xff]
        %v2104 = vld [vmem:[%s2095 + $0x87] sm:$0xff]
        %v2105 = vld [vmem:[%s2095 + $0x8f] sm:$0xff]
        %v2106 = vld [vmem:[%s2095 + $0xa7] sm:$0xff]
        %v2107 = vld [vmem:[%s2095 + $0xaf] sm:$0xff]
        %v2108 = vld [vmem:[%s2095 + $0xc7] sm:$0xff]
        %v2109 = vld [vmem:[%s2095 + $0xcf] sm:$0xff]
        %v2110 = vld [vmem:[%s2095 + $0xe7] sm:$0xff]
        %v2111 = vld [vmem:[%s2095 + $0xef] sm:$0xff]
        %v2112 = vpack.c.bf16 %v2097, %v2096
        %v2113 = vpack.c.bf16 %v2099, %v2098
        %v2114 = vpack.c.bf16 %v2101, %v2100
        %v2115 = vpack.c.bf16 %v2103, %v2102
        %v2116 = vpack.c.bf16 %v2105, %v2104
        %v2117 = vpack.c.bf16 %v2107, %v2106
        %v2118 = vpack.c.bf16 %v2109, %v2108
        %v2119 = vpack.c.bf16 %v2111, %v2110
        %v2120 = vld [vmem:[%s2095 + $0x8] sm:$0xff]
        %v2121 = vld [vmem:[%s2095 + $0x10] sm:$0xff]
        %v2122 = vld [vmem:[%s2095 + $0x28] sm:$0xff]
        %v2123 = vld [vmem:[%s2095 + $0x30] sm:$0xff]
        %v2124 = vld [vmem:[%s2095 + $0x48] sm:$0xff]
        %v2125 = vld [vmem:[%s2095 + $0x50] sm:$0xff]
        %v2126 = vld [vmem:[%s2095 + $0x68] sm:$0xff]
        %v2127 = vld [vmem:[%s2095 + $0x70] sm:$0xff]
        %v2128 = vld [vmem:[%s2095 + $0x88] sm:$0xff]
        %v2129 = vld [vmem:[%s2095 + $0x90] sm:$0xff]
        %v2130 = vld [vmem:[%s2095 + $0xa8] sm:$0xff]
        %v2131 = vld [vmem:[%s2095 + $0xb0] sm:$0xff]
        %v2132 = vld [vmem:[%s2095 + $0xc8] sm:$0xff]
        %v2133 = vld [vmem:[%s2095 + $0xd0] sm:$0xff]
        %v2134 = vld [vmem:[%s2095 + $0xe8] sm:$0xff]
        %v2135 = vld [vmem:[%s2095 + $0xf0] sm:$0xff]
        %v2136 = vpack.c.bf16 %v2121, %v2120
        %v2137 = vpack.c.bf16 %v2123, %v2122
        %v2138 = vpack.c.bf16 %v2125, %v2124
        %v2139 = vpack.c.bf16 %v2127, %v2126
        %v2140 = vpack.c.bf16 %v2129, %v2128
        %v2141 = vpack.c.bf16 %v2131, %v2130
        %v2142 = vpack.c.bf16 %v2133, %v2132
        %v2143 = vpack.c.bf16 %v2135, %v2134
        %v2144 = vld [vmem:[%s2095 + $0x9] sm:$0xff]
        %v2145 = vld [vmem:[%s2095 + $0x11] sm:$0xff]
        %v2146 = vld [vmem:[%s2095 + $0x29] sm:$0xff]
        %v2147 = vld [vmem:[%s2095 + $0x31] sm:$0xff]
        %v2148 = vld [vmem:[%s2095 + $0x49] sm:$0xff]
        %v2149 = vld [vmem:[%s2095 + $0x51] sm:$0xff]
        %v2150 = vld [vmem:[%s2095 + $0x69] sm:$0xff]
        %v2151 = vld [vmem:[%s2095 + $0x71] sm:$0xff]
        %v2152 = vld [vmem:[%s2095 + $0x89] sm:$0xff]
        %v2153 = vld [vmem:[%s2095 + $0x91] sm:$0xff]
        %v2154 = vld [vmem:[%s2095 + $0xa9] sm:$0xff]
        %v2155 = vld [vmem:[%s2095 + $0xb1] sm:$0xff]
        %v2156 = vld [vmem:[%s2095 + $0xc9] sm:$0xff]
        %v2157 = vld [vmem:[%s2095 + $0xd1] sm:$0xff]
        %v2158 = vld [vmem:[%s2095 + $0xe9] sm:$0xff]
        %v2159 = vld [vmem:[%s2095 + $0xf1] sm:$0xff]
        %v2160 = vpack.c.bf16 %v2145, %v2144
        %v2161 = vpack.c.bf16 %v2147, %v2146
        %v2162 = vpack.c.bf16 %v2149, %v2148
        %v2163 = vpack.c.bf16 %v2151, %v2150
        %v2164 = vpack.c.bf16 %v2153, %v2152
        %v2165 = vpack.c.bf16 %v2155, %v2154
        %v2166 = vpack.c.bf16 %v2157, %v2156
        %v2167 = vpack.c.bf16 %v2159, %v2158
        %s2168 = scalar_lea.vmem [#allocation2], 288
        %v2169 = vld [vmem:[%s2168 + $0x7] sm:$0xff]
        %v2170 = vld [vmem:[%s2168 + $0xf] sm:$0xff]
        %v2171 = vld [vmem:[%s2168 + $0x27] sm:$0xff]
        %v2172 = vld [vmem:[%s2168 + $0x2f] sm:$0xff]
        %v2173 = vld [vmem:[%s2168 + $0x47] sm:$0xff]
        %v2174 = vld [vmem:[%s2168 + $0x4f] sm:$0xff]
        %v2175 = vld [vmem:[%s2168 + $0x67] sm:$0xff]
        %v2176 = vld [vmem:[%s2168 + $0x6f] sm:$0xff]
        %v2177 = vld [vmem:[%s2168 + $0x87] sm:$0xff]
        %v2178 = vld [vmem:[%s2168 + $0x8f] sm:$0xff]
        %v2179 = vld [vmem:[%s2168 + $0xa7] sm:$0xff]
        %v2180 = vld [vmem:[%s2168 + $0xaf] sm:$0xff]
        %v2181 = vld [vmem:[%s2168 + $0xc7] sm:$0xff]
        %v2182 = vld [vmem:[%s2168 + $0xcf] sm:$0xff]
        %v2183 = vld [vmem:[%s2168 + $0xe7] sm:$0xff]
        %v2184 = vld [vmem:[%s2168 + $0xef] sm:$0xff]
        %v2185 = vpack.c.bf16 %v2170, %v2169
        %v2186 = vpack.c.bf16 %v2172, %v2171
        %v2187 = vpack.c.bf16 %v2174, %v2173
        %v2188 = vpack.c.bf16 %v2176, %v2175
        %v2189 = vpack.c.bf16 %v2178, %v2177
        %v2190 = vpack.c.bf16 %v2180, %v2179
        %v2191 = vpack.c.bf16 %v2182, %v2181
        %v2192 = vpack.c.bf16 %v2184, %v2183
        %v2193 = vld [vmem:[%s2168 + $0x8] sm:$0xff]
        %v2194 = vld [vmem:[%s2168 + $0x10] sm:$0xff]
        %v2195 = vld [vmem:[%s2168 + $0x28] sm:$0xff]
        %v2196 = vld [vmem:[%s2168 + $0x30] sm:$0xff]
        %v2197 = vld [vmem:[%s2168 + $0x48] sm:$0xff]
        %v2198 = vld [vmem:[%s2168 + $0x50] sm:$0xff]
        %v2199 = vld [vmem:[%s2168 + $0x68] sm:$0xff]
        %v2200 = vld [vmem:[%s2168 + $0x70] sm:$0xff]
        %v2201 = vld [vmem:[%s2168 + $0x88] sm:$0xff]
        %v2202 = vld [vmem:[%s2168 + $0x90] sm:$0xff]
        %v2203 = vld [vmem:[%s2168 + $0xa8] sm:$0xff]
        %v2204 = vld [vmem:[%s2168 + $0xb0] sm:$0xff]
        %v2205 = vld [vmem:[%s2168 + $0xc8] sm:$0xff]
        %v2206 = vld [vmem:[%s2168 + $0xd0] sm:$0xff]
        %v2207 = vld [vmem:[%s2168 + $0xe8] sm:$0xff]
        %v2208 = vld [vmem:[%s2168 + $0xf0] sm:$0xff]
        %v2209 = vpack.c.bf16 %v2194, %v2193
        %v2210 = vpack.c.bf16 %v2196, %v2195
        %v2211 = vpack.c.bf16 %v2198, %v2197
        %v2212 = vpack.c.bf16 %v2200, %v2199
        %v2213 = vpack.c.bf16 %v2202, %v2201
        %v2214 = vpack.c.bf16 %v2204, %v2203
        %v2215 = vpack.c.bf16 %v2206, %v2205
        %v2216 = vpack.c.bf16 %v2208, %v2207
        %v2217 = vld [vmem:[%s2168 + $0x9] sm:$0xff]
        %v2218 = vld [vmem:[%s2168 + $0x11] sm:$0xff]
        %v2219 = vld [vmem:[%s2168 + $0x29] sm:$0xff]
        %v2220 = vld [vmem:[%s2168 + $0x31] sm:$0xff]
        %v2221 = vld [vmem:[%s2168 + $0x49] sm:$0xff]
        %v2222 = vld [vmem:[%s2168 + $0x51] sm:$0xff]
        %v2223 = vld [vmem:[%s2168 + $0x69] sm:$0xff]
        %v2224 = vld [vmem:[%s2168 + $0x71] sm:$0xff]
        %v2225 = vld [vmem:[%s2168 + $0x89] sm:$0xff]
        %v2226 = vld [vmem:[%s2168 + $0x91] sm:$0xff]
        %v2227 = vld [vmem:[%s2168 + $0xa9] sm:$0xff]
        %v2228 = vld [vmem:[%s2168 + $0xb1] sm:$0xff]
        %v2229 = vld [vmem:[%s2168 + $0xc9] sm:$0xff]
        %v2230 = vld [vmem:[%s2168 + $0xd1] sm:$0xff]
        %v2231 = vld [vmem:[%s2168 + $0xe9] sm:$0xff]
        %v2232 = vld [vmem:[%s2168 + $0xf1] sm:$0xff]
        %v2233 = vpack.c.bf16 %v2218, %v2217
        %v2234 = vpack.c.bf16 %v2220, %v2219
        %v2235 = vpack.c.bf16 %v2222, %v2221
        %v2236 = vpack.c.bf16 %v2224, %v2223
        %v2237 = vpack.c.bf16 %v2226, %v2225
        %v2238 = vpack.c.bf16 %v2228, %v2227
        %v2239 = vpack.c.bf16 %v2230, %v2229
        %v2240 = vpack.c.bf16 %v2232, %v2231
        %s2241 = scalar_lea.vmem [#allocation2], 320
        %v2242 = vld [vmem:[%s2241 + $0x7] sm:$0xff]
        %v2243 = vld [vmem:[%s2241 + $0xf] sm:$0xff]
        %v2244 = vld [vmem:[%s2241 + $0x27] sm:$0xff]
        %v2245 = vld [vmem:[%s2241 + $0x2f] sm:$0xff]
        %v2246 = vld [vmem:[%s2241 + $0x47] sm:$0xff]
        %v2247 = vld [vmem:[%s2241 + $0x4f] sm:$0xff]
        %v2248 = vld [vmem:[%s2241 + $0x67] sm:$0xff]
        %v2249 = vld [vmem:[%s2241 + $0x6f] sm:$0xff]
        %v2250 = vld [vmem:[%s2241 + $0x87] sm:$0xff]
        %v2251 = vld [vmem:[%s2241 + $0x8f] sm:$0xff]
        %v2252 = vld [vmem:[%s2241 + $0xa7] sm:$0xff]
        %v2253 = vld [vmem:[%s2241 + $0xaf] sm:$0xff]
        %v2254 = vld [vmem:[%s2241 + $0xc7] sm:$0xff]
        %v2255 = vld [vmem:[%s2241 + $0xcf] sm:$0xff]
        %v2256 = vld [vmem:[%s2241 + $0xe7] sm:$0xff]
        %v2257 = vld [vmem:[%s2241 + $0xef] sm:$0xff]
        %v2258 = vpack.c.bf16 %v2243, %v2242
        %v2259 = vpack.c.bf16 %v2245, %v2244
        %v2260 = vpack.c.bf16 %v2247, %v2246
        %v2261 = vpack.c.bf16 %v2249, %v2248
        %v2262 = vpack.c.bf16 %v2251, %v2250
        %v2263 = vpack.c.bf16 %v2253, %v2252
        %v2264 = vpack.c.bf16 %v2255, %v2254
        %v2265 = vpack.c.bf16 %v2257, %v2256
        %v2266 = vld [vmem:[%s2241 + $0x8] sm:$0xff]
        %v2267 = vld [vmem:[%s2241 + $0x10] sm:$0xff]
        %v2268 = vld [vmem:[%s2241 + $0x28] sm:$0xff]
        %v2269 = vld [vmem:[%s2241 + $0x30] sm:$0xff]
        %v2270 = vld [vmem:[%s2241 + $0x48] sm:$0xff]
        %v2271 = vld [vmem:[%s2241 + $0x50] sm:$0xff]
        %v2272 = vld [vmem:[%s2241 + $0x68] sm:$0xff]
        %v2273 = vld [vmem:[%s2241 + $0x70] sm:$0xff]
        %v2274 = vld [vmem:[%s2241 + $0x88] sm:$0xff]
        %v2275 = vld [vmem:[%s2241 + $0x90] sm:$0xff]
        %v2276 = vld [vmem:[%s2241 + $0xa8] sm:$0xff]
        %v2277 = vld [vmem:[%s2241 + $0xb0] sm:$0xff]
        %v2278 = vld [vmem:[%s2241 + $0xc8] sm:$0xff]
        %v2279 = vld [vmem:[%s2241 + $0xd0] sm:$0xff]
        %v2280 = vld [vmem:[%s2241 + $0xe8] sm:$0xff]
        %v2281 = vld [vmem:[%s2241 + $0xf0] sm:$0xff]
        %v2282 = vpack.c.bf16 %v2267, %v2266
        %v2283 = vpack.c.bf16 %v2269, %v2268
        %v2284 = vpack.c.bf16 %v2271, %v2270
        %v2285 = vpack.c.bf16 %v2273, %v2272
        %v2286 = vpack.c.bf16 %v2275, %v2274
        %v2287 = vpack.c.bf16 %v2277, %v2276
        %v2288 = vpack.c.bf16 %v2279, %v2278
        %v2289 = vpack.c.bf16 %v2281, %v2280
        %v2290 = vld [vmem:[%s2241 + $0x9] sm:$0xff]
        %v2291 = vld [vmem:[%s2241 + $0x11] sm:$0xff]
        %v2292 = vld [vmem:[%s2241 + $0x29] sm:$0xff]
        %v2293 = vld [vmem:[%s2241 + $0x31] sm:$0xff]
        %v2294 = vld [vmem:[%s2241 + $0x49] sm:$0xff]
        %v2295 = vld [vmem:[%s2241 + $0x51] sm:$0xff]
        %v2296 = vld [vmem:[%s2241 + $0x69] sm:$0xff]
        %v2297 = vld [vmem:[%s2241 + $0x71] sm:$0xff]
        %v2298 = vld [vmem:[%s2241 + $0x89] sm:$0xff]
        %v2299 = vld [vmem:[%s2241 + $0x91] sm:$0xff]
        %v2300 = vld [vmem:[%s2241 + $0xa9] sm:$0xff]
        %v2301 = vld [vmem:[%s2241 + $0xb1] sm:$0xff]
        %v2302 = vld [vmem:[%s2241 + $0xc9] sm:$0xff]
        %v2303 = vld [vmem:[%s2241 + $0xd1] sm:$0xff]
        %v2304 = vld [vmem:[%s2241 + $0xe9] sm:$0xff]
        %v2305 = vld [vmem:[%s2241 + $0xf1] sm:$0xff]
        %v2306 = vpack.c.bf16 %v2291, %v2290
        %v2307 = vpack.c.bf16 %v2293, %v2292
        %v2308 = vpack.c.bf16 %v2295, %v2294
        %v2309 = vpack.c.bf16 %v2297, %v2296
        %v2310 = vpack.c.bf16 %v2299, %v2298
        %v2311 = vpack.c.bf16 %v2301, %v2300
        %v2312 = vpack.c.bf16 %v2303, %v2302
        %v2313 = vpack.c.bf16 %v2305, %v2304
        %2314 = vmatprep.subr.bf16.mxu0 0
        %2315 = vmatpush1.bf16.msra.mxu0 %v1364
        %2316 = vmatprep.subr.bf16.mxu0 0
        %2317 = vmatpush1.bf16.msra.mxu0 %v1365
        %2318 = vmatprep.subr.bf16.mxu0 0
        %2319 = vmatpush1.bf16.msra.mxu0 %v1366
        %2320 = vmatprep.subr.bf16.mxu0 0
        %2321 = vmatpush1.bf16.msra.mxu0 %v1367
        %2322 = vmatprep.subr.bf16.mxu0 0
        %2323 = vmatpush1.bf16.msra.mxu0 %v1368
        %2324 = vmatprep.subr.bf16.mxu0 0
        %2325 = vmatpush1.bf16.msra.mxu0 %v1369
        %2326 = vmatprep.subr.bf16.mxu0 0
        %2327 = vmatpush1.bf16.msra.mxu0 %v1370
        %2328 = vmatprep.subr.bf16.mxu0 0
        %2329 = vmatpush1.bf16.msra.mxu0 %v1371
        %2330 = vmatprep.subr.bf16.mxu0 0
        %2331 = vmatpush1.bf16.msra.mxu0 %v1372
        %2332 = vmatprep.subr.bf16.mxu0 0
        %2333 = vmatpush1.bf16.msra.mxu0 %v1373
        %2334 = vmatprep.subr.bf16.mxu0 0
        %2335 = vmatpush1.bf16.msra.mxu0 %v1374
        %2336 = vmatprep.subr.bf16.mxu0 0
        %2337 = vmatpush1.bf16.msra.mxu0 %v1375
        %2338 = vmatprep.subr.bf16.mxu0 0
        %2339 = vmatpush1.bf16.msra.mxu0 %v1376
        %2340 = vmatprep.subr.bf16.mxu0 0
        %2341 = vmatpush1.bf16.msra.mxu0 %v1377
        %2342 = vmatprep.subr.bf16.mxu0 0
        %2343 = vmatpush1.bf16.msra.mxu0 %v1378
        %2344 = vmatprep.subr.bf16.mxu0 0
        %2345 = vmatpush1.bf16.msra.mxu0 %v1379
        %2346 = vmatprep.mubr.bf16.mxu0 %v2136
        %2347 = vmatmul.mubr.bf16.gmra.mrb[0].mxu0 %v2112
        %v2348 = vpop.f32.mrb[0].mxu0
        %v2349 = vadd.f32 0.0, %v2348
        %v2350 = vpop.f32.mrb[0].mxu0
        %v2351 = vpop.f32.mrb[0].mxu0
        %v2352 = vadd.f32 0.0, %v2351
        %v2353 = vpop.f32.mrb[0].mxu0
        %2354 = vmatprep.mubr.bf16.mxu0 %v2137
        %2355 = vmatmul.mubr.bf16.gmra.mrb[0].mxu0 %v2113
        %v2356 = vpop.f32.mrb[0].mxu0
        %v2357 = vadd.f32 0.0, %v2356
        %v2358 = vpop.f32.mrb[0].mxu0
        %v2359 = vpop.f32.mrb[0].mxu0
        %v2360 = vadd.f32 0.0, %v2359
        %v2361 = vpop.f32.mrb[0].mxu0
        %2362 = vmatprep.mubr.bf16.mxu0 %v2138
        %2363 = vmatmul.mubr.bf16.gmra.mrb[0].mxu0 %v2114
        %v2364 = vpop.f32.mrb[0].mxu0
        %v2365 = vadd.f32 0.0, %v2364
        %v2366 = vpop.f32.mrb[0].mxu0
        %v2367 = vpop.f32.mrb[0].mxu0
        %v2368 = vadd.f32 0.0, %v2367
        %v2369 = vpop.f32.mrb[0].mxu0
        %2370 = vmatprep.mubr.bf16.mxu0 %v2139
        %2371 = vmatmul.mubr.bf16.gmra.mrb[0].mxu0 %v2115
        %v2372 = vpop.f32.mrb[0].mxu0
        %v2373 = vadd.f32 0.0, %v2372
        %v2374 = vpop.f32.mrb[0].mxu0
        %v2375 = vpop.f32.mrb[0].mxu0
        %v2376 = vadd.f32 0.0, %v2375
        %v2377 = vpop.f32.mrb[0].mxu0
        %2378 = vmatprep.mubr.bf16.mxu0 %v2140
        %2379 = vmatmul.mubr.bf16.gmra.mrb[0].mxu0 %v2116
        %v2380 = vpop.f32.mrb[0].mxu0
        %v2381 = vadd.f32 0.0, %v2380
        %v2382 = vpop.f32.mrb[0].mxu0
        %v2383 = vpop.f32.mrb[0].mxu0
        %v2384 = vadd.f32 0.0, %v2383
        %v2385 = vpop.f32.mrb[0].mxu0
        %2386 = vmatprep.mubr.bf16.mxu0 %v2141
        %2387 = vmatmul.mubr.bf16.gmra.mrb[0].mxu0 %v2117
        %v2388 = vpop.f32.mrb[0].mxu0
        %v2389 = vadd.f32 0.0, %v2388
        %v2390 = vpop.f32.mrb[0].mxu0
        %v2391 = vpop.f32.mrb[0].mxu0
        %v2392 = vadd.f32 0.0, %v2391
        %v2393 = vpop.f32.mrb[0].mxu0
        %2394 = vmatprep.mubr.bf16.mxu0 %v2142
        %2395 = vmatmul.mubr.bf16.gmra.mrb[0].mxu0 %v2118
        %v2396 = vpop.f32.mrb[0].mxu0
        %v2397 = vadd.f32 0.0, %v2396
        %v2398 = vpop.f32.mrb[0].mxu0
        %v2399 = vpop.f32.mrb[0].mxu0
        %v2400 = vadd.f32 0.0, %v2399
        %v2401 = vpop.f32.mrb[0].mxu0
        %2402 = vmatprep.mubr.bf16.mxu0 %v2143
        %2403 = vmatmul.mubr.bf16.gmra.mrb[0].mxu0 %v2119
        %v2404 = vpop.f32.mrb[0].mxu0
        %v2405 = vadd.f32 0.0, %v2404
        %v2406 = vpop.f32.mrb[0].mxu0
        %v2407 = vpop.f32.mrb[0].mxu0
        %v2408 = vadd.f32 0.0, %v2407
        %v2409 = vpop.f32.mrb[0].mxu0
        %2410 = vdwg.mxu0
        %2411 = vmatprep.subr.bf16.mxu0 0
        %2412 = vmatpush1.bf16.msra.mxu0 %v1380
        %2413 = vmatprep.subr.bf16.mxu0 0
        %2414 = vmatpush1.bf16.msra.mxu0 %v1381
        %2415 = vmatprep.subr.bf16.mxu0 0
        %2416 = vmatpush1.bf16.msra.mxu0 %v1382
        %2417 = vmatprep.subr.bf16.mxu0 0
        %2418 = vmatpush1.bf16.msra.mxu0 %v1383
        %2419 = vmatprep.subr.bf16.mxu0 0
        %2420 = vmatpush1.bf16.msra.mxu0 %v1384
        %2421 = vmatprep.subr.bf16.mxu0 0
        %2422 = vmatpush1.bf16.msra.mxu0 %v1385
        %2423 = vmatprep.subr.bf16.mxu0 0
        %2424 = vmatpush1.bf16.msra.mxu0 %v1386
        %2425 = vmatprep.subr.bf16.mxu0 0
        %2426 = vmatpush1.bf16.msra.mxu0 %v1387
        %2427 = vmatprep.subr.bf16.mxu0 0
        %2428 = vmatpush1.bf16.msra.mxu0 %v1388
        %2429 = vmatprep.subr.bf16.mxu0 0
        %2430 = vmatpush1.bf16.msra.mxu0 %v1389
        %2431 = vmatprep.subr.bf16.mxu0 0
        %2432 = vmatpush1.bf16.msra.mxu0 %v1390
        %2433 = vmatprep.subr.bf16.mxu0 0
        %2434 = vmatpush1.bf16.msra.mxu0 %v1391
        %2435 = vmatprep.subr.bf16.mxu0 0
        %2436 = vmatpush1.bf16.msra.mxu0 %v1392
        %2437 = vmatprep.subr.bf16.mxu0 0
        %2438 = vmatpush1.bf16.msra.mxu0 %v1393
        %2439 = vmatprep.subr.bf16.mxu0 0
        %2440 = vmatpush1.bf16.msra.mxu0 %v1394
        %2441 = vmatprep.subr.bf16.mxu0 0
        %2442 = vmatpush1.bf16.msra.mxu0 %v1395
        %2443 = vmatprep.mubr.bf16.mxu0 %v2185
        %2444 = vmatmul.mubr.bf16.gmra.mrb[0].mxu0 %v2160
        %v2445 = vpop.f32.mrb[0].mxu0
        %v2446 = vadd.f32 %v2349, %v2445
        %v2447 = vpop.f32.mrb[0].mxu0
        %v2448 = vpop.f32.mrb[0].mxu0
        %v2449 = vadd.f32 %v2352, %v2448
        %v2450 = vpop.f32.mrb[0].mxu0
        %2451 = vmatprep.mubr.bf16.mxu0 %v2186
        %2452 = vmatmul.mubr.bf16.gmra.mrb[0].mxu0 %v2161
        %v2453 = vpop.f32.mrb[0].mxu0
        %v2454 = vadd.f32 %v2357, %v2453
        %v2455 = vpop.f32.mrb[0].mxu0
        %v2456 = vpop.f32.mrb[0].mxu0
        %v2457 = vadd.f32 %v2360, %v2456
        %v2458 = vpop.f32.mrb[0].mxu0
        %2459 = vmatprep.mubr.bf16.mxu0 %v2187
        %2460 = vmatmul.mubr.bf16.gmra.mrb[0].mxu0 %v2162
        %v2461 = vpop.f32.mrb[0].mxu0
        %v2462 = vadd.f32 %v2365, %v2461
        %v2463 = vpop.f32.mrb[0].mxu0
        %v2464 = vpop.f32.mrb[0].mxu0
        %v2465 = vadd.f32 %v2368, %v2464
        %v2466 = vpop.f32.mrb[0].mxu0
        %2467 = vmatprep.mubr.bf16.mxu0 %v2188
        %2468 = vmatmul.mubr.bf16.gmra.mrb[0].mxu0 %v2163
        %v2469 = vpop.f32.mrb[0].mxu0
        %v2470 = vadd.f32 %v2373, %v2469
        %v2471 = vpop.f32.mrb[0].mxu0
        %v2472 = vpop.f32.mrb[0].mxu0
        %v2473 = vadd.f32 %v2376, %v2472
        %v2474 = vpop.f32.mrb[0].mxu0
        %2475 = vmatprep.mubr.bf16.mxu0 %v2189
        %2476 = vmatmul.mubr.bf16.gmra.mrb[0].mxu0 %v2164
        %v2477 = vpop.f32.mrb[0].mxu0
        %v2478 = vadd.f32 %v2381, %v2477
        %v2479 = vpop.f32.mrb[0].mxu0
        %v2480 = vpop.f32.mrb[0].mxu0
        %v2481 = vadd.f32 %v2384, %v2480
        %v2482 = vpop.f32.mrb[0].mxu0
        %2483 = vmatprep.mubr.bf16.mxu0 %v2190
        %2484 = vmatmul.mubr.bf16.gmra.mrb[0].mxu0 %v2165
        %v2485 = vpop.f32.mrb[0].mxu0
        %v2486 = vadd.f32 %v2389, %v2485
        %v2487 = vpop.f32.mrb[0].mxu0
        %v2488 = vpop.f32.mrb[0].mxu0
        %v2489 = vadd.f32 %v2392, %v2488
        %v2490 = vpop.f32.mrb[0].mxu0
        %2491 = vmatprep.mubr.bf16.mxu0 %v2191
        %2492 = vmatmul.mubr.bf16.gmra.mrb[0].mxu0 %v2166
        %v2493 = vpop.f32.mrb[0].mxu0
        %v2494 = vadd.f32 %v2397, %v2493
        %v2495 = vpop.f32.mrb[0].mxu0
        %v2496 = vpop.f32.mrb[0].mxu0
        %v2497 = vadd.f32 %v2400, %v2496
        %v2498 = vpop.f32.mrb[0].mxu0
        %2499 = vmatprep.mubr.bf16.mxu0 %v2192
        %2500 = vmatmul.mubr.bf16.gmra.mrb[0].mxu0 %v2167
        %v2501 = vpop.f32.mrb[0].mxu0
        %v2502 = vadd.f32 %v2405, %v2501
        %v2503 = vpop.f32.mrb[0].mxu0
        %v2504 = vpop.f32.mrb[0].mxu0
        %v2505 = vadd.f32 %v2408, %v2504
        %v2506 = vpop.f32.mrb[0].mxu0
        %2507 = vdwg.mxu0
        %2508 = vmatprep.subr.bf16.mxu0 0
        %2509 = vmatpush1.bf16.msra.mxu0 %v1396
        %2510 = vmatprep.subr.bf16.mxu0 0
        %2511 = vmatpush1.bf16.msra.mxu0 %v1397
        %2512 = vmatprep.subr.bf16.mxu0 0
        %2513 = vmatpush1.bf16.msra.mxu0 %v1398
        %2514 = vmatprep.subr.bf16.mxu0 0
        %2515 = vmatpush1.bf16.msra.mxu0 %v1399
        %2516 = vmatprep.subr.bf16.mxu0 0
        %2517 = vmatpush1.bf16.msra.mxu0 %v1400
        %2518 = vmatprep.subr.bf16.mxu0 0
        %2519 = vmatpush1.bf16.msra.mxu0 %v1401
        %2520 = vmatprep.subr.bf16.mxu0 0
        %2521 = vmatpush1.bf16.msra.mxu0 %v1402
        %2522 = vmatprep.subr.bf16.mxu0 0
        %2523 = vmatpush1.bf16.msra.mxu0 %v1403
        %2524 = vmatprep.subr.bf16.mxu0 0
        %2525 = vmatpush1.bf16.msra.mxu0 %v1404
        %2526 = vmatprep.subr.bf16.mxu0 0
        %2527 = vmatpush1.bf16.msra.mxu0 %v1405
        %2528 = vmatprep.subr.bf16.mxu0 0
        %2529 = vmatpush1.bf16.msra.mxu0 %v1406
        %2530 = vmatprep.subr.bf16.mxu0 0
        %2531 = vmatpush1.bf16.msra.mxu0 %v1407
        %2532 = vmatprep.subr.bf16.mxu0 0
        %2533 = vmatpush1.bf16.msra.mxu0 %v1408
        %2534 = vmatprep.subr.bf16.mxu0 0
        %2535 = vmatpush1.bf16.msra.mxu0 %v1409
        %2536 = vmatprep.subr.bf16.mxu0 0
        %2537 = vmatpush1.bf16.msra.mxu0 %v1410
        %2538 = vmatprep.subr.bf16.mxu0 0
        %2539 = vmatpush1.bf16.msra.mxu0 %v1411
        %2540 = vmatprep.mubr.bf16.mxu0 %v2233
        %2541 = vmatmul.mubr.bf16.gmra.mrb[0].mxu0 %v2209
        %v2542 = vpop.f32.mrb[0].mxu0
        %v2543 = vadd.f32 %v2446, %v2542
        %v2544 = vpop.f32.mrb[0].mxu0
        %v2545 = vpop.f32.mrb[0].mxu0
        %v2546 = vadd.f32 %v2449, %v2545
        %v2547 = vpop.f32.mrb[0].mxu0
        %2548 = vmatprep.mubr.bf16.mxu0 %v2234
        %2549 = vmatmul.mubr.bf16.gmra.mrb[0].mxu0 %v2210
        %v2550 = vpop.f32.mrb[0].mxu0
        %v2551 = vadd.f32 %v2454, %v2550
        %v2552 = vpop.f32.mrb[0].mxu0
        %v2553 = vpop.f32.mrb[0].mxu0
        %v2554 = vadd.f32 %v2457, %v2553
        %v2555 = vpop.f32.mrb[0].mxu0
        %2556 = vmatprep.mubr.bf16.mxu0 %v2235
        %2557 = vmatmul.mubr.bf16.gmra.mrb[0].mxu0 %v2211
        %v2558 = vpop.f32.mrb[0].mxu0
        %v2559 = vadd.f32 %v2462, %v2558
        %v2560 = vpop.f32.mrb[0].mxu0
        %v2561 = vpop.f32.mrb[0].mxu0
        %v2562 = vadd.f32 %v2465, %v2561
        %v2563 = vpop.f32.mrb[0].mxu0
        %2564 = vmatprep.mubr.bf16.mxu0 %v2236
        %2565 = vmatmul.mubr.bf16.gmra.mrb[0].mxu0 %v2212
        %v2566 = vpop.f32.mrb[0].mxu0
        %v2567 = vadd.f32 %v2470, %v2566
        %v2568 = vpop.f32.mrb[0].mxu0
        %v2569 = vpop.f32.mrb[0].mxu0
        %v2570 = vadd.f32 %v2473, %v2569
        %v2571 = vpop.f32.mrb[0].mxu0
        %2572 = vmatprep.mubr.bf16.mxu0 %v2237
        %2573 = vmatmul.mubr.bf16.gmra.mrb[0].mxu0 %v2213
        %v2574 = vpop.f32.mrb[0].mxu0
        %v2575 = vadd.f32 %v2478, %v2574
        %v2576 = vpop.f32.mrb[0].mxu0
        %v2577 = vpop.f32.mrb[0].mxu0
        %v2578 = vadd.f32 %v2481, %v2577
        %v2579 = vpop.f32.mrb[0].mxu0
        %2580 = vmatprep.mubr.bf16.mxu0 %v2238
        %2581 = vmatmul.mubr.bf16.gmra.mrb[0].mxu0 %v2214
        %v2582 = vpop.f32.mrb[0].mxu0
        %v2583 = vadd.f32 %v2486, %v2582
        %v2584 = vpop.f32.mrb[0].mxu0
        %v2585 = vpop.f32.mrb[0].mxu0
        %v2586 = vadd.f32 %v2489, %v2585
        %v2587 = vpop.f32.mrb[0].mxu0
        %2588 = vmatprep.mubr.bf16.mxu0 %v2239
        %2589 = vmatmul.mubr.bf16.gmra.mrb[0].mxu0 %v2215
        %v2590 = vpop.f32.mrb[0].mxu0
        %v2591 = vadd.f32 %v2494, %v2590
        %v2592 = vpop.f32.mrb[0].mxu0
        %v2593 = vpop.f32.mrb[0].mxu0
        %v2594 = vadd.f32 %v2497, %v2593
        %v2595 = vpop.f32.mrb[0].mxu0
        %2596 = vmatprep.mubr.bf16.mxu0 %v2240
        %2597 = vmatmul.mubr.bf16.gmra.mrb[0].mxu0 %v2216
        %v2598 = vpop.f32.mrb[0].mxu0
        %v2599 = vadd.f32 %v2502, %v2598
        %v2600 = vpop.f32.mrb[0].mxu0
        %v2601 = vpop.f32.mrb[0].mxu0
        %v2602 = vadd.f32 %v2505, %v2601
        %v2603 = vpop.f32.mrb[0].mxu0
        %2604 = vdwg.mxu0
        %2605 = vmatprep.subr.bf16.mxu0 0
        %2606 = vmatpush1.bf16.msra.mxu0 %v1412
        %2607 = vmatprep.subr.bf16.mxu0 0
        %2608 = vmatpush1.bf16.msra.mxu0 %v1413
        %2609 = vmatprep.subr.bf16.mxu0 0
        %2610 = vmatpush1.bf16.msra.mxu0 %v1414
        %2611 = vmatprep.subr.bf16.mxu0 0
        %2612 = vmatpush1.bf16.msra.mxu0 %v1415
        %2613 = vmatprep.subr.bf16.mxu0 0
        %2614 = vmatpush1.bf16.msra.mxu0 %v1416
        %2615 = vmatprep.subr.bf16.mxu0 0
        %2616 = vmatpush1.bf16.msra.mxu0 %v1417
        %2617 = vmatprep.subr.bf16.mxu0 0
        %2618 = vmatpush1.bf16.msra.mxu0 %v1418
        %2619 = vmatprep.subr.bf16.mxu0 0
        %2620 = vmatpush1.bf16.msra.mxu0 %v1419
        %2621 = vmatprep.subr.bf16.mxu0 0
        %2622 = vmatpush1.bf16.msra.mxu0 %v1420
        %2623 = vmatprep.subr.bf16.mxu0 0
        %2624 = vmatpush1.bf16.msra.mxu0 %v1421
        %2625 = vmatprep.subr.bf16.mxu0 0
        %2626 = vmatpush1.bf16.msra.mxu0 %v1422
        %2627 = vmatprep.subr.bf16.mxu0 0
        %2628 = vmatpush1.bf16.msra.mxu0 %v1423
        %2629 = vmatprep.subr.bf16.mxu0 0
        %2630 = vmatpush1.bf16.msra.mxu0 %v1424
        %2631 = vmatprep.subr.bf16.mxu0 0
        %2632 = vmatpush1.bf16.msra.mxu0 %v1425
        %2633 = vmatprep.subr.bf16.mxu0 0
        %2634 = vmatpush1.bf16.msra.mxu0 %v1426
        %2635 = vmatprep.subr.bf16.mxu0 0
        %2636 = vmatpush1.bf16.msra.mxu0 %v1427
        %2637 = vmatprep.mubr.bf16.mxu0 %v2282
        %2638 = vmatmul.mubr.bf16.gmra.mrb[0].mxu0 %v2258
        %v2639 = vpop.f32.mrb[0].mxu0
        %v2640 = vadd.f32 %v2543, %v2639
        %v2641 = vpop.f32.mrb[0].mxu0
        %v2642 = vpop.f32.mrb[0].mxu0
        %v2643 = vadd.f32 %v2546, %v2642
        %v2644 = vpop.f32.mrb[0].mxu0
        %2645 = vmatprep.mubr.bf16.mxu0 %v2283
        %2646 = vmatmul.mubr.bf16.gmra.mrb[0].mxu0 %v2259
        %v2647 = vpop.f32.mrb[0].mxu0
        %v2648 = vadd.f32 %v2551, %v2647
        %v2649 = vpop.f32.mrb[0].mxu0
        %v2650 = vpop.f32.mrb[0].mxu0
        %v2651 = vadd.f32 %v2554, %v2650
        %v2652 = vpop.f32.mrb[0].mxu0
        %2653 = vmatprep.mubr.bf16.mxu0 %v2284
        %2654 = vmatmul.mubr.bf16.gmra.mrb[0].mxu0 %v2260
        %v2655 = vpop.f32.mrb[0].mxu0
        %v2656 = vadd.f32 %v2559, %v2655
        %v2657 = vpop.f32.mrb[0].mxu0
        %v2658 = vpop.f32.mrb[0].mxu0
        %v2659 = vadd.f32 %v2562, %v2658
        %v2660 = vpop.f32.mrb[0].mxu0
        %2661 = vmatprep.mubr.bf16.mxu0 %v2285
        %2662 = vmatmul.mubr.bf16.gmra.mrb[0].mxu0 %v2261
        %v2663 = vpop.f32.mrb[0].mxu0
        %v2664 = vadd.f32 %v2567, %v2663
        %v2665 = vpop.f32.mrb[0].mxu0
        %v2666 = vpop.f32.mrb[0].mxu0
        %v2667 = vadd.f32 %v2570, %v2666
        %v2668 = vpop.f32.mrb[0].mxu0
        %2669 = vmatprep.mubr.bf16.mxu0 %v2286
        %2670 = vmatmul.mubr.bf16.gmra.mrb[0].mxu0 %v2262
        %v2671 = vpop.f32.mrb[0].mxu0
        %v2672 = vadd.f32 %v2575, %v2671
        %v2673 = vpop.f32.mrb[0].mxu0
        %v2674 = vpop.f32.mrb[0].mxu0
        %v2675 = vadd.f32 %v2578, %v2674
        %v2676 = vpop.f32.mrb[0].mxu0
        %2677 = vmatprep.mubr.bf16.mxu0 %v2287
        %2678 = vmatmul.mubr.bf16.gmra.mrb[0].mxu0 %v2263
        %v2679 = vpop.f32.mrb[0].mxu0
        %v2680 = vadd.f32 %v2583, %v2679
        %v2681 = vpop.f32.mrb[0].mxu0
        %v2682 = vpop.f32.mrb[0].mxu0
        %v2683 = vadd.f32 %v2586, %v2682
        %v2684 = vpop.f32.mrb[0].mxu0
        %2685 = vmatprep.mubr.bf16.mxu0 %v2288
        %2686 = vmatmul.mubr.bf16.gmra.mrb[0].mxu0 %v2264
        %v2687 = vpop.f32.mrb[0].mxu0
        %v2688 = vadd.f32 %v2591, %v2687
        %v2689 = vpop.f32.mrb[0].mxu0
        %v2690 = vpop.f32.mrb[0].mxu0
        %v2691 = vadd.f32 %v2594, %v2690
        %v2692 = vpop.f32.mrb[0].mxu0
        %2693 = vmatprep.mubr.bf16.mxu0 %v2289
        %2694 = vmatmul.mubr.bf16.gmra.mrb[0].mxu0 %v2265
        %v2695 = vpop.f32.mrb[0].mxu0
        %v2696 = vadd.f32 %v2599, %v2695
        %v2697 = vpop.f32.mrb[0].mxu0
        %v2698 = vpop.f32.mrb[0].mxu0
        %v2699 = vadd.f32 %v2602, %v2698
        %v2700 = vpop.f32.mrb[0].mxu0
        %2701 = vdwg.mxu0
        %2702 = vmatprep.subr.bf16.mxu0 0
        %2703 = vmatpush1.bf16.msra.mxu0 %v1428
        %2704 = vmatprep.subr.bf16.mxu0 0
        %2705 = vmatpush1.bf16.msra.mxu0 %v1429
        %2706 = vmatprep.subr.bf16.mxu0 0
        %2707 = vmatpush1.bf16.msra.mxu0 %v1430
        %2708 = vmatprep.subr.bf16.mxu0 0
        %2709 = vmatpush1.bf16.msra.mxu0 %v1431
        %2710 = vmatprep.subr.bf16.mxu0 0
        %2711 = vmatpush1.bf16.msra.mxu0 %v1432
        %2712 = vmatprep.subr.bf16.mxu0 0
        %2713 = vmatpush1.bf16.msra.mxu0 %v1433
        %2714 = vmatprep.subr.bf16.mxu0 0
        %2715 = vmatpush1.bf16.msra.mxu0 %v1434
        %2716 = vmatprep.subr.bf16.mxu0 0
        %2717 = vmatpush1.bf16.msra.mxu0 %v1435
        %2718 = vmatprep.subr.bf16.mxu0 0
        %2719 = vmatpush1.bf16.msra.mxu0 0
        %2720 = vmatprep.subr.bf16.mxu0 0
        %2721 = vmatpush1.bf16.msra.mxu0 0
        %2722 = vmatprep.subr.bf16.mxu0 0
        %2723 = vmatpush1.bf16.msra.mxu0 0
        %2724 = vmatprep.subr.bf16.mxu0 0
        %2725 = vmatpush1.bf16.msra.mxu0 0
        %2726 = vmatprep.subr.bf16.mxu0 0
        %2727 = vmatpush1.bf16.msra.mxu0 0
        %2728 = vmatprep.subr.bf16.mxu0 0
        %2729 = vmatpush1.bf16.msra.mxu0 0
        %2730 = vmatprep.subr.bf16.mxu0 0
        %2731 = vmatpush1.bf16.msra.mxu0 0
        %2732 = vmatprep.subr.bf16.mxu0 0
        %2733 = vmatpush1.bf16.msra.mxu0 0
        %2734 = vmatprep.mubr.bf16.mxu0 0
        %2735 = vmatmul.mubr.bf16.gmra.mrb[0].mxu0 %v2306
        %v2736 = vpop.f32.mrb[0].mxu0
        %v2737 = vadd.f32 %v2640, %v2736
        %v2738 = vpop.f32.mrb[0].mxu0
        %v2739 = vpop.f32.mrb[0].mxu0
        %v2740 = vadd.f32 %v2643, %v2739
        %v2741 = vpop.f32.mrb[0].mxu0
        %2742 = vmatprep.mubr.bf16.mxu0 0
        %2743 = vmatmul.mubr.bf16.gmra.mrb[0].mxu0 %v2307
        %v2744 = vpop.f32.mrb[0].mxu0
        %v2745 = vadd.f32 %v2648, %v2744
        %v2746 = vpop.f32.mrb[0].mxu0
        %v2747 = vpop.f32.mrb[0].mxu0
        %v2748 = vadd.f32 %v2651, %v2747
        %v2749 = vpop.f32.mrb[0].mxu0
        %2750 = vmatprep.mubr.bf16.mxu0 0
        %2751 = vmatmul.mubr.bf16.gmra.mrb[0].mxu0 %v2308
        %v2752 = vpop.f32.mrb[0].mxu0
        %v2753 = vadd.f32 %v2656, %v2752
        %v2754 = vpop.f32.mrb[0].mxu0
        %v2755 = vpop.f32.mrb[0].mxu0
        %v2756 = vadd.f32 %v2659, %v2755
        %v2757 = vpop.f32.mrb[0].mxu0
        %2758 = vmatprep.mubr.bf16.mxu0 0
        %2759 = vmatmul.mubr.bf16.gmra.mrb[0].mxu0 %v2309
        %v2760 = vpop.f32.mrb[0].mxu0
        %v2761 = vadd.f32 %v2664, %v2760
        %v2762 = vpop.f32.mrb[0].mxu0
        %v2763 = vpop.f32.mrb[0].mxu0
        %v2764 = vadd.f32 %v2667, %v2763
        %v2765 = vpop.f32.mrb[0].mxu0
        %2766 = vmatprep.mubr.bf16.mxu0 0
        %2767 = vmatmul.mubr.bf16.gmra.mrb[0].mxu0 %v2310
        %v2768 = vpop.f32.mrb[0].mxu0
        %v2769 = vadd.f32 %v2672, %v2768
        %v2770 = vpop.f32.mrb[0].mxu0
        %v2771 = vpop.f32.mrb[0].mxu0
        %v2772 = vadd.f32 %v2675, %v2771
        %v2773 = vpop.f32.mrb[0].mxu0
        %2774 = vmatprep.mubr.bf16.mxu0 0
        %2775 = vmatmul.mubr.bf16.gmra.mrb[0].mxu0 %v2311
        %v2776 = vpop.f32.mrb[0].mxu0
        %v2777 = vadd.f32 %v2680, %v2776
        %v2778 = vpop.f32.mrb[0].mxu0
        %v2779 = vpop.f32.mrb[0].mxu0
        %v2780 = vadd.f32 %v2683, %v2779
        %v2781 = vpop.f32.mrb[0].mxu0
        %2782 = vmatprep.mubr.bf16.mxu0 0
        %2783 = vmatmul.mubr.bf16.gmra.mrb[0].mxu0 %v2312
        %v2784 = vpop.f32.mrb[0].mxu0
        %v2785 = vadd.f32 %v2688, %v2784
        %v2786 = vpop.f32.mrb[0].mxu0
        %v2787 = vpop.f32.mrb[0].mxu0
        %v2788 = vadd.f32 %v2691, %v2787
        %v2789 = vpop.f32.mrb[0].mxu0
        %2790 = vmatprep.mubr.bf16.mxu0 0
        %2791 = vmatmul.mubr.bf16.gmra.mrb[0].mxu0 %v2313
        %v2792 = vpop.f32.mrb[0].mxu0
        %v2793 = vadd.f32 %v2696, %v2792
        %v2794 = vpop.f32.mrb[0].mxu0
        %v2795 = vpop.f32.mrb[0].mxu0
        %v2796 = vadd.f32 %v2699, %v2795
        %v2797 = vpop.f32.mrb[0].mxu0
        %2798 = vdwg.mxu0
        %v2799 = vld [vmem:[%s4] sm:$0x1]
        %v2801 = vlaneseq
        %v2802 = vshrl.u32 %v2801, 7
        %v2803 = vsub.s32 0, %v2802
        %v2804 = vrot.slane %v2799, %v2803
        %v2806 = vadd.f32 %v2737, %v2804
        %v2807 = vadd.f32 %v2740, %v2804
        %v2808 = vadd.f32 %v2745, %v2804
        %v2809 = vadd.f32 %v2748, %v2804
        %v2810 = vadd.f32 %v2753, %v2804
        %v2811 = vadd.f32 %v2756, %v2804
        %v2812 = vadd.f32 %v2761, %v2804
        %v2813 = vadd.f32 %v2764, %v2804
        %v2814 = vadd.f32 %v2769, %v2804
        %v2815 = vadd.f32 %v2772, %v2804
        %v2816 = vadd.f32 %v2777, %v2804
        %v2817 = vadd.f32 %v2780, %v2804
        %v2818 = vadd.f32 %v2785, %v2804
        %v2819 = vadd.f32 %v2788, %v2804
        %v2820 = vadd.f32 %v2793, %v2804
        %v2821 = vadd.f32 %v2796, %v2804
        %v2822 = vld [vmem:[%s5] sm:$0x1]
        %v2824 = vlaneseq
        %v2825 = vshrl.u32 %v2824, 7
        %v2826 = vsub.s32 0, %v2825
        %v2827 = vrot.slane %v2822, %v2826
        %v2829 = vmul.f32 %v2806, %v2827
        %v2830 = vmul.f32 %v2807, %v2827
        %v2831 = vmul.f32 %v2808, %v2827
        %v2832 = vmul.f32 %v2809, %v2827
        %v2833 = vmul.f32 %v2810, %v2827
        %v2834 = vmul.f32 %v2811, %v2827
        %v2835 = vmul.f32 %v2812, %v2827
        %v2836 = vmul.f32 %v2813, %v2827
        %v2837 = vmul.f32 %v2814, %v2827
        %v2838 = vmul.f32 %v2815, %v2827
        %v2839 = vmul.f32 %v2816, %v2827
        %v2840 = vmul.f32 %v2817, %v2827
        %v2841 = vmul.f32 %v2818, %v2827
        %v2842 = vmul.f32 %v2819, %v2827
        %v2843 = vmul.f32 %v2820, %v2827
        %v2844 = vmul.f32 %v2821, %v2827
        %v2845 = vld [vmem:[%s6] sm:$0x1]
        %v2847 = vlaneseq
        %v2848 = vshrl.u32 %v2847, 7
        %v2849 = vsub.s32 0, %v2848
        %v2850 = vrot.slane %v2845, %v2849
        %v2852 = vadd.f32 %v2829, %v2850
        %v2853 = vadd.f32 %v2830, %v2850
        %v2854 = vadd.f32 %v2831, %v2850
        %v2855 = vadd.f32 %v2832, %v2850
        %v2856 = vadd.f32 %v2833, %v2850
        %v2857 = vadd.f32 %v2834, %v2850
        %v2858 = vadd.f32 %v2835, %v2850
        %v2859 = vadd.f32 %v2836, %v2850
        %v2860 = vadd.f32 %v2837, %v2850
        %v2861 = vadd.f32 %v2838, %v2850
        %v2862 = vadd.f32 %v2839, %v2850
        %v2863 = vadd.f32 %v2840, %v2850
        %v2864 = vadd.f32 %v2841, %v2850
        %v2865 = vadd.f32 %v2842, %v2850
        %v2866 = vadd.f32 %v2843, %v2850
        %v2867 = vadd.f32 %v2844, %v2850
        %v2868 = vmax.f32 %v2852, 0.0
        %v2869 = vmax.f32 %v2853, 0.0
        %v2870 = vmax.f32 %v2854, 0.0
        %v2871 = vmax.f32 %v2855, 0.0
        %v2872 = vmax.f32 %v2856, 0.0
        %v2873 = vmax.f32 %v2857, 0.0
        %v2874 = vmax.f32 %v2858, 0.0
        %v2875 = vmax.f32 %v2859, 0.0
        %v2876 = vmax.f32 %v2860, 0.0
        %v2877 = vmax.f32 %v2861, 0.0
        %v2878 = vmax.f32 %v2862, 0.0
        %v2879 = vmax.f32 %v2863, 0.0
        %v2880 = vmax.f32 %v2864, 0.0
        %v2881 = vmax.f32 %v2865, 0.0
        %v2882 = vmax.f32 %v2866, 0.0
        %v2883 = vmax.f32 %v2867, 0.0
        %s2884 = scalar_lea.vmem [#allocation3], 288
        %2885 = vst [vmem:[%s2884 + $0x8] sm:$0xff] %v2868
        %2886 = vst [vmem:[%s2884 + $0x10] sm:$0xff] %v2869
        %2887 = vst [vmem:[%s2884 + $0x28] sm:$0xff] %v2870
        %2888 = vst [vmem:[%s2884 + $0x30] sm:$0xff] %v2871
        %2889 = vst [vmem:[%s2884 + $0x48] sm:$0xff] %v2872
        %2890 = vst [vmem:[%s2884 + $0x50] sm:$0xff] %v2873
        %2891 = vst [vmem:[%s2884 + $0x68] sm:$0xff] %v2874
        %2892 = vst [vmem:[%s2884 + $0x70] sm:$0xff] %v2875
        %2893 = vst [vmem:[%s2884 + $0x88] sm:$0xff] %v2876
        %2894 = vst [vmem:[%s2884 + $0x90] sm:$0xff] %v2877
        %2895 = vst [vmem:[%s2884 + $0xa8] sm:$0xff] %v2878
        %2896 = vst [vmem:[%s2884 + $0xb0] sm:$0xff] %v2879
        %2897 = vst [vmem:[%s2884 + $0xc8] sm:$0xff] %v2880
        %2898 = vst [vmem:[%s2884 + $0xd0] sm:$0xff] %v2881
        %2899 = vst [vmem:[%s2884 + $0xe8] sm:$0xff] %v2882
        %2900 = vst [vmem:[%s2884 + $0xf0] sm:$0xff] %v2883
        %v2901 = vld [vmem:[#allocation9] sm:$0xf]
        %v2902 = vld [vmem:[#allocation9 + $0x4] sm:$0xf]
        %v2903 = vld [vmem:[#allocation9 + $0x8] sm:$0xf]
        %v2904 = vld [vmem:[#allocation9 + $0xc] sm:$0xf]
        %v2905 = vld [vmem:[#allocation9 + $0x10] sm:$0xf]
        %v2906 = vld [vmem:[#allocation9 + $0x14] sm:$0xf]
        %v2907 = vld [vmem:[#allocation9 + $0x18] sm:$0xf]
        %v2908 = vld [vmem:[#allocation9 + $0x1c] sm:$0xf]
        %v2909 = vld [vmem:[#allocation9 + $0x20] sm:$0xf]
        %v2910 = vld [vmem:[#allocation9 + $0x24] sm:$0xf]
        %v2911 = vld [vmem:[#allocation9 + $0x28] sm:$0xf]
        %v2912 = vld [vmem:[#allocation9 + $0x2c] sm:$0xf]
        %v2913 = vld [vmem:[#allocation9 + $0x30] sm:$0xf]
        %v2914 = vld [vmem:[#allocation9 + $0x34] sm:$0xf]
        %v2915 = vld [vmem:[#allocation9 + $0x38] sm:$0xf]
        %v2916 = vld [vmem:[#allocation9 + $0x3c] sm:$0xf]
        %v2917 = vld [vmem:[#allocation9 + $0x40] sm:$0xf]
        %v2918 = vld [vmem:[#allocation9 + $0x44] sm:$0xf]
        %v2919 = vld [vmem:[#allocation9 + $0x48] sm:$0xf]
        %v2920 = vld [vmem:[#allocation9 + $0x4c] sm:$0xf]
        %v2921 = vld [vmem:[#allocation9 + $0x50] sm:$0xf]
        %v2922 = vld [vmem:[#allocation9 + $0x54] sm:$0xf]
        %v2923 = vld [vmem:[#allocation9 + $0x58] sm:$0xf]
        %v2924 = vld [vmem:[#allocation9 + $0x5c] sm:$0xf]
        %v2925 = vld [vmem:[#allocation9 + $0x60] sm:$0xf]
        %v2926 = vld [vmem:[#allocation9 + $0x64] sm:$0xf]
        %v2927 = vld [vmem:[#allocation9 + $0x68] sm:$0xf]
        %v2928 = vld [vmem:[#allocation9 + $0x6c] sm:$0xf]
        %v2929 = vld [vmem:[#allocation9 + $0x70] sm:$0xf]
        %v2930 = vld [vmem:[#allocation9 + $0x74] sm:$0xf]
        %v2931 = vld [vmem:[#allocation9 + $0x78] sm:$0xf]
        %v2932 = vld [vmem:[#allocation9 + $0x7c] sm:$0xf]
        %v2933 = vld [vmem:[#allocation9 + $0x80] sm:$0xf]
        %v2934 = vld [vmem:[#allocation9 + $0x84] sm:$0xf]
        %v2935 = vld [vmem:[#allocation9 + $0x88] sm:$0xf]
        %v2936 = vld [vmem:[#allocation9 + $0x8c] sm:$0xf]
        %v2937 = vld [vmem:[#allocation9 + $0x90] sm:$0xf]
        %v2938 = vld [vmem:[#allocation9 + $0x94] sm:$0xf]
        %v2939 = vld [vmem:[#allocation9 + $0x98] sm:$0xf]
        %v2940 = vld [vmem:[#allocation9 + $0x9c] sm:$0xf]
        %v2941 = vld [vmem:[#allocation9 + $0xa0] sm:$0xf]
        %v2942 = vld [vmem:[#allocation9 + $0xa4] sm:$0xf]
        %v2943 = vld [vmem:[#allocation9 + $0xa8] sm:$0xf]
        %v2944 = vld [vmem:[#allocation9 + $0xac] sm:$0xf]
        %v2945 = vld [vmem:[#allocation9 + $0xb0] sm:$0xf]
        %v2946 = vld [vmem:[#allocation9 + $0xb4] sm:$0xf]
        %v2947 = vld [vmem:[#allocation9 + $0xb8] sm:$0xf]
        %v2948 = vld [vmem:[#allocation9 + $0xbc] sm:$0xf]
        %v2949 = vld [vmem:[#allocation9 + $0xc0] sm:$0xf]
        %v2950 = vld [vmem:[#allocation9 + $0xc4] sm:$0xf]
        %v2951 = vld [vmem:[#allocation9 + $0xc8] sm:$0xf]
        %v2952 = vld [vmem:[#allocation9 + $0xcc] sm:$0xf]
        %v2953 = vld [vmem:[#allocation9 + $0xd0] sm:$0xf]
        %v2954 = vld [vmem:[#allocation9 + $0xd4] sm:$0xf]
        %v2955 = vld [vmem:[#allocation9 + $0xd8] sm:$0xf]
        %v2956 = vld [vmem:[#allocation9 + $0xdc] sm:$0xf]
        %v2957 = vld [vmem:[#allocation9 + $0xe0] sm:$0xf]
        %v2958 = vld [vmem:[#allocation9 + $0xe4] sm:$0xf]
        %v2959 = vld [vmem:[#allocation9 + $0xe8] sm:$0xf]
        %v2960 = vld [vmem:[#allocation9 + $0xec] sm:$0xf]
        %v2961 = vld [vmem:[#allocation9 + $0xf0] sm:$0xf]
        %v2962 = vld [vmem:[#allocation9 + $0xf4] sm:$0xf]
        %v2963 = vld [vmem:[#allocation9 + $0xf8] sm:$0xf]
        %v2964 = vld [vmem:[#allocation9 + $0xfc] sm:$0xf]
        %v2965 = vld [vmem:[#allocation9 + $0x100] sm:$0xf]
        %v2966 = vld [vmem:[#allocation9 + $0x104] sm:$0xf]
        %v2967 = vld [vmem:[#allocation9 + $0x108] sm:$0xf]
        %v2968 = vld [vmem:[#allocation9 + $0x10c] sm:$0xf]
        %v2969 = vld [vmem:[#allocation9 + $0x110] sm:$0xf]
        %v2970 = vld [vmem:[#allocation9 + $0x114] sm:$0xf]
        %v2971 = vld [vmem:[#allocation9 + $0x118] sm:$0xf]
        %v2972 = vld [vmem:[#allocation9 + $0x11c] sm:$0xf]
        %v2973 = vld [vmem:[#allocation9 + $0x120] sm:$0xf]
        %v2974 = vld [vmem:[#allocation9 + $0x124] sm:$0xf]
        %v2975 = vld [vmem:[#allocation9 + $0x128] sm:$0xf]
        %v2976 = vld [vmem:[#allocation9 + $0x12c] sm:$0xf]
        %v2977 = vld [vmem:[#allocation9 + $0x130] sm:$0xf]
        %v2978 = vld [vmem:[#allocation9 + $0x134] sm:$0xf]
        %v2979 = vld [vmem:[#allocation9 + $0x138] sm:$0xf]
        %v2980 = vld [vmem:[#allocation9 + $0x13c] sm:$0xf]
        %v2981 = vld [vmem:[#allocation9 + $0x140] sm:$0xf]
        %v2982 = vld [vmem:[#allocation9 + $0x144] sm:$0xf]
        %v2983 = vld [vmem:[#allocation9 + $0x148] sm:$0xf]
        %v2984 = vld [vmem:[#allocation9 + $0x14c] sm:$0xf]
        %v2985 = vld [vmem:[#allocation9 + $0x150] sm:$0xf]
        %v2986 = vld [vmem:[#allocation9 + $0x154] sm:$0xf]
        %v2987 = vld [vmem:[#allocation9 + $0x158] sm:$0xf]
        %v2988 = vld [vmem:[#allocation9 + $0x15c] sm:$0xf]
        %v2989 = vld [vmem:[#allocation9 + $0x160] sm:$0xf]
        %v2990 = vld [vmem:[#allocation9 + $0x164] sm:$0xf]
        %v2991 = vld [vmem:[#allocation9 + $0x168] sm:$0xf]
        %v2992 = vld [vmem:[#allocation9 + $0x16c] sm:$0xf]
        %v2993 = vld [vmem:[#allocation9 + $0x170] sm:$0xf]
        %v2994 = vld [vmem:[#allocation9 + $0x174] sm:$0xf]
        %v2995 = vld [vmem:[#allocation9 + $0x178] sm:$0xf]
        %v2996 = vld [vmem:[#allocation9 + $0x17c] sm:$0xf]
        %v2997 = vld [vmem:[#allocation9 + $0x180] sm:$0xf]
        %v2998 = vld [vmem:[#allocation9 + $0x184] sm:$0xf]
        %v2999 = vld [vmem:[#allocation9 + $0x188] sm:$0xf]
        %v3000 = vld [vmem:[#allocation9 + $0x18c] sm:$0xf]
        %v3001 = vld [vmem:[#allocation9 + $0x190] sm:$0xf]
        %v3002 = vld [vmem:[#allocation9 + $0x194] sm:$0xf]
        %v3003 = vld [vmem:[#allocation9 + $0x198] sm:$0xf]
        %v3004 = vld [vmem:[#allocation9 + $0x19c] sm:$0xf]
        %v3005 = vld [vmem:[#allocation9 + $0x1a0] sm:$0xf]
        %v3006 = vld [vmem:[#allocation9 + $0x1a4] sm:$0xf]
        %v3007 = vld [vmem:[#allocation9 + $0x1a8] sm:$0xf]
        %v3008 = vld [vmem:[#allocation9 + $0x1ac] sm:$0xf]
        %v3009 = vld [vmem:[#allocation9 + $0x1b0] sm:$0xf]
        %v3010 = vld [vmem:[#allocation9 + $0x1b4] sm:$0xf]
        %v3011 = vld [vmem:[#allocation9 + $0x1b8] sm:$0xf]
        %v3012 = vld [vmem:[#allocation9 + $0x1bc] sm:$0xf]
        %v3013 = vld [vmem:[#allocation9 + $0x1c0] sm:$0xf]
        %v3014 = vld [vmem:[#allocation9 + $0x1c4] sm:$0xf]
        %v3015 = vld [vmem:[#allocation9 + $0x1c8] sm:$0xf]
        %v3016 = vld [vmem:[#allocation9 + $0x1cc] sm:$0xf]
        %v3017 = vld [vmem:[#allocation9 + $0x1d0] sm:$0xf]
        %v3018 = vld [vmem:[#allocation9 + $0x1d4] sm:$0xf]
        %v3019 = vld [vmem:[#allocation9 + $0x1d8] sm:$0xf]
        %v3020 = vld [vmem:[#allocation9 + $0x1dc] sm:$0xf]
        %v3021 = vld [vmem:[#allocation9 + $0x1e0] sm:$0xf]
        %v3022 = vld [vmem:[#allocation9 + $0x1e4] sm:$0xf]
        %v3023 = vld [vmem:[#allocation9 + $0x1e8] sm:$0xf]
        %v3024 = vld [vmem:[#allocation9 + $0x1ec] sm:$0xf]
        %v3025 = vld [vmem:[#allocation9 + $0x1f0] sm:$0xf]
        %v3026 = vld [vmem:[#allocation9 + $0x1f4] sm:$0xf]
        %v3027 = vld [vmem:[#allocation9 + $0x1f8] sm:$0xf]
        %v3028 = vld [vmem:[#allocation9 + $0x1fc] sm:$0xf]
        %v3029 = vld [vmem:[#allocation9 + $0x200] sm:$0xf]
        %v3030 = vld [vmem:[#allocation9 + $0x204] sm:$0xf]
        %v3031 = vld [vmem:[#allocation9 + $0x208] sm:$0xf]
        %v3032 = vld [vmem:[#allocation9 + $0x20c] sm:$0xf]
        %v3033 = vld [vmem:[#allocation9 + $0x210] sm:$0xf]
        %v3034 = vld [vmem:[#allocation9 + $0x214] sm:$0xf]
        %v3035 = vld [vmem:[#allocation9 + $0x218] sm:$0xf]
        %v3036 = vld [vmem:[#allocation9 + $0x21c] sm:$0xf]
        %v3037 = vld [vmem:[#allocation9 + $0x220] sm:$0xf]
        %v3038 = vld [vmem:[#allocation9 + $0x224] sm:$0xf]
        %v3039 = vld [vmem:[#allocation9 + $0x228] sm:$0xf]
        %v3040 = vld [vmem:[#allocation9 + $0x22c] sm:$0xf]
        %v3041 = vld [vmem:[#allocation9 + $0x230] sm:$0xf]
        %v3042 = vld [vmem:[#allocation9 + $0x234] sm:$0xf]
        %v3043 = vld [vmem:[#allocation9 + $0x238] sm:$0xf]
        %v3044 = vld [vmem:[#allocation9 + $0x23c] sm:$0xf]
        %v3045 = vld [vmem:[#allocation10] sm:$0xf]
        %v3046 = vld [vmem:[#allocation10 + $0x4] sm:$0xf]
        %v3047 = vld [vmem:[#allocation10 + $0x8] sm:$0xf]
        %v3048 = vld [vmem:[#allocation10 + $0xc] sm:$0xf]
        %v3049 = vld [vmem:[#allocation10 + $0x10] sm:$0xf]
        %v3050 = vld [vmem:[#allocation10 + $0x14] sm:$0xf]
        %v3051 = vld [vmem:[#allocation10 + $0x18] sm:$0xf]
        %v3052 = vld [vmem:[#allocation10 + $0x1c] sm:$0xf]
        %v3053 = vld [vmem:[#allocation10 + $0x20] sm:$0xf]
        %v3054 = vld [vmem:[#allocation10 + $0x24] sm:$0xf]
        %v3055 = vld [vmem:[#allocation10 + $0x28] sm:$0xf]
        %v3056 = vld [vmem:[#allocation10 + $0x2c] sm:$0xf]
        %v3057 = vld [vmem:[#allocation10 + $0x30] sm:$0xf]
        %v3058 = vld [vmem:[#allocation10 + $0x34] sm:$0xf]
        %v3059 = vld [vmem:[#allocation10 + $0x38] sm:$0xf]
        %v3060 = vld [vmem:[#allocation10 + $0x3c] sm:$0xf]
        %s3061 = scalar_lea.vmem [#allocation3], 7
        %v3062 = vld [vmem:[%s3061] ss:$2 sm:$0xff]
        %s3063 = scalar_lea.vmem [#allocation3], 71
        %v3064 = vld [vmem:[%s3063] ss:$2 sm:$0xff]
        %s3065 = scalar_lea.vmem [#allocation3], 135
        %v3066 = vld [vmem:[%s3065] ss:$2 sm:$0xff]
        %s3067 = scalar_lea.vmem [#allocation3], 199
        %v3068 = vld [vmem:[%s3067] ss:$2 sm:$0xff]
        %s3069 = scalar_lea.vmem [#allocation3], 263
        %v3070 = vld [vmem:[%s3069] ss:$2 sm:$0xff]
        %s3071 = scalar_lea.vmem [#allocation3], 327
        %v3072 = vld [vmem:[%s3071] ss:$2 sm:$0xff]
        %s3073 = scalar_lea.vmem [#allocation3], 391
        %v3074 = vld [vmem:[%s3073] ss:$2 sm:$0xff]
        %s3075 = scalar_lea.vmem [#allocation3], 455
        %v3076 = vld [vmem:[%s3075] ss:$2 sm:$0xff]
        %v3077 = vpack.c.bf16 %v3062, %v3062
        %v3078 = vpack.c.bf16 %v3064, %v3064
        %v3079 = vpack.c.bf16 %v3066, %v3066
        %v3080 = vpack.c.bf16 %v3068, %v3068
        %v3081 = vpack.c.bf16 %v3070, %v3070
        %v3082 = vpack.c.bf16 %v3072, %v3072
        %v3083 = vpack.c.bf16 %v3074, %v3074
        %v3084 = vpack.c.bf16 %v3076, %v3076
        %s3085 = scalar_lea.vmem [#allocation3], 8
        %v3086 = vld [vmem:[%s3085] ss:$2 sm:$0xff]
        %s3087 = scalar_lea.vmem [#allocation3], 72
        %v3088 = vld [vmem:[%s3087] ss:$2 sm:$0xff]
        %s3089 = scalar_lea.vmem [#allocation3], 136
        %v3090 = vld [vmem:[%s3089] ss:$2 sm:$0xff]
        %s3091 = scalar_lea.vmem [#allocation3], 200
        %v3092 = vld [vmem:[%s3091] ss:$2 sm:$0xff]
        %s3093 = scalar_lea.vmem [#allocation3], 264
        %v3094 = vld [vmem:[%s3093] ss:$2 sm:$0xff]
        %s3095 = scalar_lea.vmem [#allocation3], 328
        %v3096 = vld [vmem:[%s3095] ss:$2 sm:$0xff]
        %s3097 = scalar_lea.vmem [#allocation3], 392
        %v3098 = vld [vmem:[%s3097] ss:$2 sm:$0xff]
        %s3099 = scalar_lea.vmem [#allocation3], 456
        %v3100 = vld [vmem:[%s3099] ss:$2 sm:$0xff]
        %v3101 = vpack.c.bf16 %v3086, %v3086
        %v3102 = vpack.c.bf16 %v3088, %v3088
        %v3103 = vpack.c.bf16 %v3090, %v3090
        %v3104 = vpack.c.bf16 %v3092, %v3092
        %v3105 = vpack.c.bf16 %v3094, %v3094
        %v3106 = vpack.c.bf16 %v3096, %v3096
        %v3107 = vpack.c.bf16 %v3098, %v3098
        %v3108 = vpack.c.bf16 %v3100, %v3100
        %s3109 = scalar_lea.vmem [#allocation3], 9
        %v3110 = vld [vmem:[%s3109] ss:$2 sm:$0xff]
        %s3111 = scalar_lea.vmem [#allocation3], 73
        %v3112 = vld [vmem:[%s3111] ss:$2 sm:$0xff]
        %s3113 = scalar_lea.vmem [#allocation3], 137
        %v3114 = vld [vmem:[%s3113] ss:$2 sm:$0xff]
        %s3115 = scalar_lea.vmem [#allocation3], 201
        %v3116 = vld [vmem:[%s3115] ss:$2 sm:$0xff]
        %s3117 = scalar_lea.vmem [#allocation3], 265
        %v3118 = vld [vmem:[%s3117] ss:$2 sm:$0xff]
        %s3119 = scalar_lea.vmem [#allocation3], 329
        %v3120 = vld [vmem:[%s3119] ss:$2 sm:$0xff]
        %s3121 = scalar_lea.vmem [#allocation3], 393
        %v3122 = vld [vmem:[%s3121] ss:$2 sm:$0xff]
        %s3123 = scalar_lea.vmem [#allocation3], 457
        %v3124 = vld [vmem:[%s3123] ss:$2 sm:$0xff]
        %v3125 = vpack.c.bf16 %v3110, %v3110
        %v3126 = vpack.c.bf16 %v3112, %v3112
        %v3127 = vpack.c.bf16 %v3114, %v3114
        %v3128 = vpack.c.bf16 %v3116, %v3116
        %v3129 = vpack.c.bf16 %v3118, %v3118
        %v3130 = vpack.c.bf16 %v3120, %v3120
        %v3131 = vpack.c.bf16 %v3122, %v3122
        %v3132 = vpack.c.bf16 %v3124, %v3124
        %s3133 = scalar_lea.vmem %s2078, 7 [#allocation3]
        %v3134 = vld [vmem:[%s3133] ss:$2 sm:$0xff]
        %s3135 = scalar_lea.vmem %s2078, 71 [#allocation3]
        %v3136 = vld [vmem:[%s3135] ss:$2 sm:$0xff]
        %s3137 = scalar_lea.vmem %s2078, 135 [#allocation3]
        %v3138 = vld [vmem:[%s3137] ss:$2 sm:$0xff]
        %s3139 = scalar_lea.vmem %s2078, 199 [#allocation3]
        %v3140 = vld [vmem:[%s3139] ss:$2 sm:$0xff]
        %s3141 = scalar_lea.vmem %s2078, 263 [#allocation3]
        %v3142 = vld [vmem:[%s3141] ss:$2 sm:$0xff]
        %s3143 = scalar_lea.vmem %s2078, 327 [#allocation3]
        %v3144 = vld [vmem:[%s3143] ss:$2 sm:$0xff]
        %s3145 = scalar_lea.vmem %s2078, 391 [#allocation3]
        %v3146 = vld [vmem:[%s3145] ss:$2 sm:$0xff]
        %s3147 = scalar_lea.vmem %s2078, 455 [#allocation3]
        %v3148 = vld [vmem:[%s3147] ss:$2 sm:$0xff]
        %v3149 = vpack.c.bf16 %v3134, %v3134
        %v3150 = vpack.c.bf16 %v3136, %v3136
        %v3151 = vpack.c.bf16 %v3138, %v3138
        %v3152 = vpack.c.bf16 %v3140, %v3140
        %v3153 = vpack.c.bf16 %v3142, %v3142
        %v3154 = vpack.c.bf16 %v3144, %v3144
        %v3155 = vpack.c.bf16 %v3146, %v3146
        %v3156 = vpack.c.bf16 %v3148, %v3148
        %s3157 = scalar_lea.vmem %s2078, 8 [#allocation3]
        %v3158 = vld [vmem:[%s3157] ss:$2 sm:$0xff]
        %s3159 = scalar_lea.vmem %s2078, 72 [#allocation3]
        %v3160 = vld [vmem:[%s3159] ss:$2 sm:$0xff]
        %s3161 = scalar_lea.vmem %s2078, 136 [#allocation3]
        %v3162 = vld [vmem:[%s3161] ss:$2 sm:$0xff]
        %s3163 = scalar_lea.vmem %s2078, 200 [#allocation3]
        %v3164 = vld [vmem:[%s3163] ss:$2 sm:$0xff]
        %s3165 = scalar_lea.vmem %s2078, 264 [#allocation3]
        %v3166 = vld [vmem:[%s3165] ss:$2 sm:$0xff]
        %s3167 = scalar_lea.vmem %s2078, 328 [#allocation3]
        %v3168 = vld [vmem:[%s3167] ss:$2 sm:$0xff]
        %s3169 = scalar_lea.vmem %s2078, 392 [#allocation3]
        %v3170 = vld [vmem:[%s3169] ss:$2 sm:$0xff]
        %s3171 = scalar_lea.vmem %s2078, 456 [#allocation3]
        %v3172 = vld [vmem:[%s3171] ss:$2 sm:$0xff]
        %v3173 = vpack.c.bf16 %v3158, %v3158
        %v3174 = vpack.c.bf16 %v3160, %v3160
        %v3175 = vpack.c.bf16 %v3162, %v3162
        %v3176 = vpack.c.bf16 %v3164, %v3164
        %v3177 = vpack.c.bf16 %v3166, %v3166
        %v3178 = vpack.c.bf16 %v3168, %v3168
        %v3179 = vpack.c.bf16 %v3170, %v3170
        %v3180 = vpack.c.bf16 %v3172, %v3172
        %s3181 = scalar_lea.vmem %s2078, 9 [#allocation3]
        %v3182 = vld [vmem:[%s3181] ss:$2 sm:$0xff]
        %s3183 = scalar_lea.vmem %s2078, 73 [#allocation3]
        %v3184 = vld [vmem:[%s3183] ss:$2 sm:$0xff]
        %s3185 = scalar_lea.vmem %s2078, 137 [#allocation3]
        %v3186 = vld [vmem:[%s3185] ss:$2 sm:$0xff]
        %s3187 = scalar_lea.vmem %s2078, 201 [#allocation3]
        %v3188 = vld [vmem:[%s3187] ss:$2 sm:$0xff]
        %s3189 = scalar_lea.vmem %s2078, 265 [#allocation3]
        %v3190 = vld [vmem:[%s3189] ss:$2 sm:$0xff]
        %s3191 = scalar_lea.vmem %s2078, 329 [#allocation3]
        %v3192 = vld [vmem:[%s3191] ss:$2 sm:$0xff]
        %s3193 = scalar_lea.vmem %s2078, 393 [#allocation3]
        %v3194 = vld [vmem:[%s3193] ss:$2 sm:$0xff]
        %s3195 = scalar_lea.vmem %s2078, 457 [#allocation3]
        %v3196 = vld [vmem:[%s3195] ss:$2 sm:$0xff]
        %v3197 = vpack.c.bf16 %v3182, %v3182
        %v3198 = vpack.c.bf16 %v3184, %v3184
        %v3199 = vpack.c.bf16 %v3186, %v3186
        %v3200 = vpack.c.bf16 %v3188, %v3188
        %v3201 = vpack.c.bf16 %v3190, %v3190
        %v3202 = vpack.c.bf16 %v3192, %v3192
        %v3203 = vpack.c.bf16 %v3194, %v3194
        %v3204 = vpack.c.bf16 %v3196, %v3196
        %s3205 = scalar_lea.vmem [#allocation3], 64
        %s3206 = scalar_lea.vmem %s3205, 7 [#allocation3]
        %v3207 = vld [vmem:[%s3206] ss:$2 sm:$0xff]
        %s3208 = scalar_lea.vmem %s3205, 71 [#allocation3]
        %v3209 = vld [vmem:[%s3208] ss:$2 sm:$0xff]
        %s3210 = scalar_lea.vmem %s3205, 135 [#allocation3]
        %v3211 = vld [vmem:[%s3210] ss:$2 sm:$0xff]
        %s3212 = scalar_lea.vmem %s3205, 199 [#allocation3]
        %v3213 = vld [vmem:[%s3212] ss:$2 sm:$0xff]
        %s3214 = scalar_lea.vmem %s3205, 263 [#allocation3]
        %v3215 = vld [vmem:[%s3214] ss:$2 sm:$0xff]
        %s3216 = scalar_lea.vmem %s3205, 327 [#allocation3]
        %v3217 = vld [vmem:[%s3216] ss:$2 sm:$0xff]
        %s3218 = scalar_lea.vmem %s3205, 391 [#allocation3]
        %v3219 = vld [vmem:[%s3218] ss:$2 sm:$0xff]
        %s3220 = scalar_lea.vmem %s3205, 455 [#allocation3]
        %v3221 = vld [vmem:[%s3220] ss:$2 sm:$0xff]
        %v3222 = vpack.c.bf16 %v3207, %v3207
        %v3223 = vpack.c.bf16 %v3209, %v3209
        %v3224 = vpack.c.bf16 %v3211, %v3211
        %v3225 = vpack.c.bf16 %v3213, %v3213
        %v3226 = vpack.c.bf16 %v3215, %v3215
        %v3227 = vpack.c.bf16 %v3217, %v3217
        %v3228 = vpack.c.bf16 %v3219, %v3219
        %v3229 = vpack.c.bf16 %v3221, %v3221
        %s3230 = scalar_lea.vmem %s3205, 8 [#allocation3]
        %v3231 = vld [vmem:[%s3230] ss:$2 sm:$0xff]
        %s3232 = scalar_lea.vmem %s3205, 72 [#allocation3]
        %v3233 = vld [vmem:[%s3232] ss:$2 sm:$0xff]
        %s3234 = scalar_lea.vmem %s3205, 136 [#allocation3]
        %v3235 = vld [vmem:[%s3234] ss:$2 sm:$0xff]
        %s3236 = scalar_lea.vmem %s3205, 200 [#allocation3]
        %v3237 = vld [vmem:[%s3236] ss:$2 sm:$0xff]
        %s3238 = scalar_lea.vmem %s3205, 264 [#allocation3]
        %v3239 = vld [vmem:[%s3238] ss:$2 sm:$0xff]
        %s3240 = scalar_lea.vmem %s3205, 328 [#allocation3]
        %v3241 = vld [vmem:[%s3240] ss:$2 sm:$0xff]
        %s3242 = scalar_lea.vmem %s3205, 392 [#allocation3]
        %v3243 = vld [vmem:[%s3242] ss:$2 sm:$0xff]
        %s3244 = scalar_lea.vmem %s3205, 456 [#allocation3]
        %v3245 = vld [vmem:[%s3244] ss:$2 sm:$0xff]
        %v3246 = vpack.c.bf16 %v3231, %v3231
        %v3247 = vpack.c.bf16 %v3233, %v3233
        %v3248 = vpack.c.bf16 %v3235, %v3235
        %v3249 = vpack.c.bf16 %v3237, %v3237
        %v3250 = vpack.c.bf16 %v3239, %v3239
        %v3251 = vpack.c.bf16 %v3241, %v3241
        %v3252 = vpack.c.bf16 %v3243, %v3243
        %v3253 = vpack.c.bf16 %v3245, %v3245
        %s3254 = scalar_lea.vmem %s3205, 9 [#allocation3]
        %v3255 = vld [vmem:[%s3254] ss:$2 sm:$0xff]
        %s3256 = scalar_lea.vmem %s3205, 73 [#allocation3]
        %v3257 = vld [vmem:[%s3256] ss:$2 sm:$0xff]
        %s3258 = scalar_lea.vmem %s3205, 137 [#allocation3]
        %v3259 = vld [vmem:[%s3258] ss:$2 sm:$0xff]
        %s3260 = scalar_lea.vmem %s3205, 201 [#allocation3]
        %v3261 = vld [vmem:[%s3260] ss:$2 sm:$0xff]
        %s3262 = scalar_lea.vmem %s3205, 265 [#allocation3]
        %v3263 = vld [vmem:[%s3262] ss:$2 sm:$0xff]
        %s3264 = scalar_lea.vmem %s3205, 329 [#allocation3]
        %v3265 = vld [vmem:[%s3264] ss:$2 sm:$0xff]
        %s3266 = scalar_lea.vmem %s3205, 393 [#allocation3]
        %v3267 = vld [vmem:[%s3266] ss:$2 sm:$0xff]
        %s3268 = scalar_lea.vmem %s3205, 457 [#allocation3]
        %v3269 = vld [vmem:[%s3268] ss:$2 sm:$0xff]
        %v3270 = vpack.c.bf16 %v3255, %v3255
        %v3271 = vpack.c.bf16 %v3257, %v3257
        %v3272 = vpack.c.bf16 %v3259, %v3259
        %v3273 = vpack.c.bf16 %v3261, %v3261
        %v3274 = vpack.c.bf16 %v3263, %v3263
        %v3275 = vpack.c.bf16 %v3265, %v3265
        %v3276 = vpack.c.bf16 %v3267, %v3267
        %v3277 = vpack.c.bf16 %v3269, %v3269
        %v3350 = vunpack.c.l.b16 %v3077
        %v3351 = vunpack.c.l.b16 %v3101
        %v3352 = vunpack.c.l.b16 %v3125
        %v3353 = vunpack.c.l.b16 %v3149
        %v3354 = vunpack.c.l.b16 %v3173
        %v3355 = vunpack.c.l.b16 %v3197
        %v3356 = vunpack.c.l.b16 %v3222
        %v3357 = vunpack.c.l.b16 %v3246
        %v3358 = vunpack.c.l.b16 %v3270
        %v3359 = vunpack.c.l.b16 %v3078
        %v3360 = vunpack.c.l.b16 %v3102
        %v3361 = vunpack.c.l.b16 %v3126
        %v3362 = vunpack.c.l.b16 %v3150
        %v3363 = vunpack.c.l.b16 %v3174
        %v3364 = vunpack.c.l.b16 %v3198
        %v3365 = vunpack.c.l.b16 %v3223
        %v3366 = vunpack.c.l.b16 %v3247
        %v3367 = vunpack.c.l.b16 %v3271
        %v3368 = vunpack.c.l.b16 %v3079
        %v3369 = vunpack.c.l.b16 %v3103
        %v3370 = vunpack.c.l.b16 %v3127
        %v3371 = vunpack.c.l.b16 %v3151
        %v3372 = vunpack.c.l.b16 %v3175
        %v3373 = vunpack.c.l.b16 %v3199
        %v3374 = vunpack.c.l.b16 %v3224
        %v3375 = vunpack.c.l.b16 %v3248
        %v3376 = vunpack.c.l.b16 %v3272
        %v3377 = vunpack.c.l.b16 %v3080
        %v3378 = vunpack.c.l.b16 %v3104
        %v3379 = vunpack.c.l.b16 %v3128
        %v3380 = vunpack.c.l.b16 %v3152
        %v3381 = vunpack.c.l.b16 %v3176
        %v3382 = vunpack.c.l.b16 %v3200
        %v3383 = vunpack.c.l.b16 %v3225
        %v3384 = vunpack.c.l.b16 %v3249
        %v3385 = vunpack.c.l.b16 %v3273
        %v3386 = vunpack.c.l.b16 %v3081
        %v3387 = vunpack.c.l.b16 %v3105
        %v3388 = vunpack.c.l.b16 %v3129
        %v3389 = vunpack.c.l.b16 %v3153
        %v3390 = vunpack.c.l.b16 %v3177
        %v3391 = vunpack.c.l.b16 %v3201
        %v3392 = vunpack.c.l.b16 %v3226
        %v3393 = vunpack.c.l.b16 %v3250
        %v3394 = vunpack.c.l.b16 %v3274
        %v3395 = vunpack.c.l.b16 %v3082
        %v3396 = vunpack.c.l.b16 %v3106
        %v3397 = vunpack.c.l.b16 %v3130
        %v3398 = vunpack.c.l.b16 %v3154
        %v3399 = vunpack.c.l.b16 %v3178
        %v3400 = vunpack.c.l.b16 %v3202
        %v3401 = vunpack.c.l.b16 %v3227
        %v3402 = vunpack.c.l.b16 %v3251
        %v3403 = vunpack.c.l.b16 %v3275
        %v3404 = vunpack.c.l.b16 %v3083
        %v3405 = vunpack.c.l.b16 %v3107
        %v3406 = vunpack.c.l.b16 %v3131
        %v3407 = vunpack.c.l.b16 %v3155
        %v3408 = vunpack.c.l.b16 %v3179
        %v3409 = vunpack.c.l.b16 %v3203
        %v3410 = vunpack.c.l.b16 %v3228
        %v3411 = vunpack.c.l.b16 %v3252
        %v3412 = vunpack.c.l.b16 %v3276
        %v3413 = vunpack.c.l.b16 %v3084
        %v3414 = vunpack.c.l.b16 %v3108
        %v3415 = vunpack.c.l.b16 %v3132
        %v3416 = vunpack.c.l.b16 %v3156
        %v3417 = vunpack.c.l.b16 %v3180
        %v3418 = vunpack.c.l.b16 %v3204
        %v3419 = vunpack.c.l.b16 %v3229
        %v3420 = vunpack.c.l.b16 %v3253
        %v3421 = vunpack.c.l.b16 %v3277
        %v3422 = vpack.c.b16 %v3359, %v3350
        %v3423 = vpack.c.b16 %v3360, %v3351
        %v3424 = vpack.c.b16 %v3361, %v3352
        %v3425 = vpack.c.b16 %v3362, %v3353
        %v3426 = vpack.c.b16 %v3363, %v3354
        %v3427 = vpack.c.b16 %v3364, %v3355
        %v3428 = vpack.c.b16 %v3365, %v3356
        %v3429 = vpack.c.b16 %v3366, %v3357
        %v3430 = vpack.c.b16 %v3367, %v3358
        %v3431 = vpack.c.b16 %v3377, %v3368
        %v3432 = vpack.c.b16 %v3378, %v3369
        %v3433 = vpack.c.b16 %v3379, %v3370
        %v3434 = vpack.c.b16 %v3380, %v3371
        %v3435 = vpack.c.b16 %v3381, %v3372
        %v3436 = vpack.c.b16 %v3382, %v3373
        %v3437 = vpack.c.b16 %v3383, %v3374
        %v3438 = vpack.c.b16 %v3384, %v3375
        %v3439 = vpack.c.b16 %v3385, %v3376
        %v3440 = vpack.c.b16 %v3395, %v3386
        %v3441 = vpack.c.b16 %v3396, %v3387
        %v3442 = vpack.c.b16 %v3397, %v3388
        %v3443 = vpack.c.b16 %v3398, %v3389
        %v3444 = vpack.c.b16 %v3399, %v3390
        %v3445 = vpack.c.b16 %v3400, %v3391
        %v3446 = vpack.c.b16 %v3401, %v3392
        %v3447 = vpack.c.b16 %v3402, %v3393
        %v3448 = vpack.c.b16 %v3403, %v3394
        %v3449 = vpack.c.b16 %v3413, %v3404
        %v3450 = vpack.c.b16 %v3414, %v3405
        %v3451 = vpack.c.b16 %v3415, %v3406
        %v3452 = vpack.c.b16 %v3416, %v3407
        %v3453 = vpack.c.b16 %v3417, %v3408
        %v3454 = vpack.c.b16 %v3418, %v3409
        %v3455 = vpack.c.b16 %v3419, %v3410
        %v3456 = vpack.c.b16 %v3420, %v3411
        %v3457 = vpack.c.b16 %v3421, %v3412
        %v3638 = vunpack.c.l.b16 %v2901
        %v3639 = vunpack.c.l.b16 %v2902
        %v3640 = vunpack.c.l.b16 %v2903
        %v3641 = vunpack.c.l.b16 %v2904
        %v3642 = vunpack.c.l.b16 %v2905
        %v3643 = vunpack.c.l.b16 %v2906
        %v3644 = vunpack.c.l.b16 %v2907
        %v3645 = vunpack.c.l.b16 %v2908
        %v3646 = vunpack.c.l.b16 %v2909
        %v3647 = vunpack.c.l.b16 %v2910
        %v3648 = vunpack.c.l.b16 %v2911
        %v3649 = vunpack.c.l.b16 %v2912
        %v3650 = vunpack.c.l.b16 %v2913
        %v3651 = vunpack.c.l.b16 %v2914
        %v3652 = vunpack.c.l.b16 %v2915
        %v3653 = vunpack.c.l.b16 %v2916
        %v3654 = vunpack.c.l.b16 %v2917
        %v3655 = vunpack.c.l.b16 %v2918
        %v3656 = vunpack.c.l.b16 %v2919
        %v3657 = vunpack.c.l.b16 %v2920
        %v3658 = vunpack.c.l.b16 %v2921
        %v3659 = vunpack.c.l.b16 %v2922
        %v3660 = vunpack.c.l.b16 %v2923
        %v3661 = vunpack.c.l.b16 %v2924
        %v3662 = vunpack.c.l.b16 %v2925
        %v3663 = vunpack.c.l.b16 %v2926
        %v3664 = vunpack.c.l.b16 %v2927
        %v3665 = vunpack.c.l.b16 %v2928
        %v3666 = vunpack.c.l.b16 %v2929
        %v3667 = vunpack.c.l.b16 %v2930
        %v3668 = vunpack.c.l.b16 %v2931
        %v3669 = vunpack.c.l.b16 %v2932
        %v3670 = vunpack.c.l.b16 %v2933
        %v3671 = vunpack.c.l.b16 %v2934
        %v3672 = vunpack.c.l.b16 %v2935
        %v3673 = vunpack.c.l.b16 %v2936
        %v3674 = vunpack.c.l.b16 %v2937
        %v3675 = vunpack.c.l.b16 %v2938
        %v3676 = vunpack.c.l.b16 %v2939
        %v3677 = vunpack.c.l.b16 %v2940
        %v3678 = vunpack.c.l.b16 %v2941
        %v3679 = vunpack.c.l.b16 %v2942
        %v3680 = vunpack.c.l.b16 %v2943
        %v3681 = vunpack.c.l.b16 %v2944
        %v3682 = vunpack.c.l.b16 %v2945
        %v3683 = vunpack.c.l.b16 %v2946
        %v3684 = vunpack.c.l.b16 %v2947
        %v3685 = vunpack.c.l.b16 %v2948
        %v3686 = vunpack.c.l.b16 %v2949
        %v3687 = vunpack.c.l.b16 %v2950
        %v3688 = vunpack.c.l.b16 %v2951
        %v3689 = vunpack.c.l.b16 %v2952
        %v3690 = vunpack.c.l.b16 %v2953
        %v3691 = vunpack.c.l.b16 %v2954
        %v3692 = vunpack.c.l.b16 %v2955
        %v3693 = vunpack.c.l.b16 %v2956
        %v3694 = vunpack.c.l.b16 %v2957
        %v3695 = vunpack.c.l.b16 %v2958
        %v3696 = vunpack.c.l.b16 %v2959
        %v3697 = vunpack.c.l.b16 %v2960
        %v3698 = vunpack.c.l.b16 %v2961
        %v3699 = vunpack.c.l.b16 %v2962
        %v3700 = vunpack.c.l.b16 %v2963
        %v3701 = vunpack.c.l.b16 %v2964
        %v3702 = vunpack.c.l.b16 %v2965
        %v3703 = vunpack.c.l.b16 %v2966
        %v3704 = vunpack.c.l.b16 %v2967
        %v3705 = vunpack.c.l.b16 %v2968
        %v3706 = vunpack.c.l.b16 %v2969
        %v3707 = vunpack.c.l.b16 %v2970
        %v3708 = vunpack.c.l.b16 %v2971
        %v3709 = vunpack.c.l.b16 %v2972
        %v3710 = vunpack.c.l.b16 %v2973
        %v3711 = vunpack.c.l.b16 %v2974
        %v3712 = vunpack.c.l.b16 %v2975
        %v3713 = vunpack.c.l.b16 %v2976
        %v3714 = vunpack.c.l.b16 %v2977
        %v3715 = vunpack.c.l.b16 %v2978
        %v3716 = vunpack.c.l.b16 %v2979
        %v3717 = vunpack.c.l.b16 %v2980
        %v3718 = vunpack.c.l.b16 %v2981
        %v3719 = vunpack.c.l.b16 %v2982
        %v3720 = vunpack.c.l.b16 %v2983
        %v3721 = vunpack.c.l.b16 %v2984
        %v3722 = vunpack.c.l.b16 %v2985
        %v3723 = vunpack.c.l.b16 %v2986
        %v3724 = vunpack.c.l.b16 %v2987
        %v3725 = vunpack.c.l.b16 %v2988
        %v3726 = vunpack.c.l.b16 %v2989
        %v3727 = vunpack.c.l.b16 %v2990
        %v3728 = vunpack.c.l.b16 %v2991
        %v3729 = vunpack.c.l.b16 %v2992
        %v3730 = vunpack.c.l.b16 %v2993
        %v3731 = vunpack.c.l.b16 %v2994
        %v3732 = vunpack.c.l.b16 %v2995
        %v3733 = vunpack.c.l.b16 %v2996
        %v3734 = vunpack.c.l.b16 %v2997
        %v3735 = vunpack.c.l.b16 %v2998
        %v3736 = vunpack.c.l.b16 %v2999
        %v3737 = vunpack.c.l.b16 %v3000
        %v3738 = vunpack.c.l.b16 %v3001
        %v3739 = vunpack.c.l.b16 %v3002
        %v3740 = vunpack.c.l.b16 %v3003
        %v3741 = vunpack.c.l.b16 %v3004
        %v3742 = vunpack.c.l.b16 %v3005
        %v3743 = vunpack.c.l.b16 %v3006
        %v3744 = vunpack.c.l.b16 %v3007
        %v3745 = vunpack.c.l.b16 %v3008
        %v3746 = vunpack.c.l.b16 %v3009
        %v3747 = vunpack.c.l.b16 %v3010
        %v3748 = vunpack.c.l.b16 %v3011
        %v3749 = vunpack.c.l.b16 %v3012
        %v3750 = vunpack.c.l.b16 %v3013
        %v3751 = vunpack.c.l.b16 %v3014
        %v3752 = vunpack.c.l.b16 %v3015
        %v3753 = vunpack.c.l.b16 %v3016
        %v3754 = vunpack.c.l.b16 %v3017
        %v3755 = vunpack.c.l.b16 %v3018
        %v3756 = vunpack.c.l.b16 %v3019
        %v3757 = vunpack.c.l.b16 %v3020
        %v3758 = vunpack.c.l.b16 %v3021
        %v3759 = vunpack.c.l.b16 %v3022
        %v3760 = vunpack.c.l.b16 %v3023
        %v3761 = vunpack.c.l.b16 %v3024
        %v3762 = vunpack.c.l.b16 %v3025
        %v3763 = vunpack.c.l.b16 %v3026
        %v3764 = vunpack.c.l.b16 %v3027
        %v3765 = vunpack.c.l.b16 %v3028
        %v3766 = vunpack.c.l.b16 %v3029
        %v3767 = vunpack.c.l.b16 %v3030
        %v3768 = vunpack.c.l.b16 %v3031
        %v3769 = vunpack.c.l.b16 %v3032
        %v3770 = vunpack.c.l.b16 %v3033
        %v3771 = vunpack.c.l.b16 %v3034
        %v3772 = vunpack.c.l.b16 %v3035
        %v3773 = vunpack.c.l.b16 %v3036
        %v3774 = vunpack.c.l.b16 %v3037
        %v3775 = vunpack.c.l.b16 %v3038
        %v3776 = vunpack.c.l.b16 %v3039
        %v3777 = vunpack.c.l.b16 %v3040
        %v3778 = vunpack.c.l.b16 %v3041
        %v3779 = vunpack.c.l.b16 %v3042
        %v3780 = vunpack.c.l.b16 %v3043
        %v3781 = vunpack.c.l.b16 %v3044
        %v3782 = vpack.c.b16 %v3639, %v3638
        %v3783 = vpack.c.b16 %v3641, %v3640
        %v3784 = vpack.c.b16 %v3643, %v3642
        %v3785 = vpack.c.b16 %v3645, %v3644
        %v3786 = vpack.c.b16 %v3647, %v3646
        %v3787 = vpack.c.b16 %v3649, %v3648
        %v3788 = vpack.c.b16 %v3651, %v3650
        %v3789 = vpack.c.b16 %v3653, %v3652
        %v3790 = vpack.c.b16 %v3655, %v3654
        %v3791 = vpack.c.b16 %v3657, %v3656
        %v3792 = vpack.c.b16 %v3659, %v3658
        %v3793 = vpack.c.b16 %v3661, %v3660
        %v3794 = vpack.c.b16 %v3663, %v3662
        %v3795 = vpack.c.b16 %v3665, %v3664
        %v3796 = vpack.c.b16 %v3667, %v3666
        %v3797 = vpack.c.b16 %v3669, %v3668
        %v3798 = vpack.c.b16 %v3671, %v3670
        %v3799 = vpack.c.b16 %v3673, %v3672
        %v3800 = vpack.c.b16 %v3675, %v3674
        %v3801 = vpack.c.b16 %v3677, %v3676
        %v3802 = vpack.c.b16 %v3679, %v3678
        %v3803 = vpack.c.b16 %v3681, %v3680
        %v3804 = vpack.c.b16 %v3683, %v3682
        %v3805 = vpack.c.b16 %v3685, %v3684
        %v3806 = vpack.c.b16 %v3687, %v3686
        %v3807 = vpack.c.b16 %v3689, %v3688
        %v3808 = vpack.c.b16 %v3691, %v3690
        %v3809 = vpack.c.b16 %v3693, %v3692
        %v3810 = vpack.c.b16 %v3695, %v3694
        %v3811 = vpack.c.b16 %v3697, %v3696
        %v3812 = vpack.c.b16 %v3699, %v3698
        %v3813 = vpack.c.b16 %v3701, %v3700
        %v3814 = vpack.c.b16 %v3703, %v3702
        %v3815 = vpack.c.b16 %v3705, %v3704
        %v3816 = vpack.c.b16 %v3707, %v3706
        %v3817 = vpack.c.b16 %v3709, %v3708
        %v3818 = vpack.c.b16 %v3711, %v3710
        %v3819 = vpack.c.b16 %v3713, %v3712
        %v3820 = vpack.c.b16 %v3715, %v3714
        %v3821 = vpack.c.b16 %v3717, %v3716
        %v3822 = vpack.c.b16 %v3719, %v3718
        %v3823 = vpack.c.b16 %v3721, %v3720
        %v3824 = vpack.c.b16 %v3723, %v3722
        %v3825 = vpack.c.b16 %v3725, %v3724
        %v3826 = vpack.c.b16 %v3727, %v3726
        %v3827 = vpack.c.b16 %v3729, %v3728
        %v3828 = vpack.c.b16 %v3731, %v3730
        %v3829 = vpack.c.b16 %v3733, %v3732
        %v3830 = vpack.c.b16 %v3735, %v3734
        %v3831 = vpack.c.b16 %v3737, %v3736
        %v3832 = vpack.c.b16 %v3739, %v3738
        %v3833 = vpack.c.b16 %v3741, %v3740
        %v3834 = vpack.c.b16 %v3743, %v3742
        %v3835 = vpack.c.b16 %v3745, %v3744
        %v3836 = vpack.c.b16 %v3747, %v3746
        %v3837 = vpack.c.b16 %v3749, %v3748
        %v3838 = vpack.c.b16 %v3751, %v3750
        %v3839 = vpack.c.b16 %v3753, %v3752
        %v3840 = vpack.c.b16 %v3755, %v3754
        %v3841 = vpack.c.b16 %v3757, %v3756
        %v3842 = vpack.c.b16 %v3759, %v3758
        %v3843 = vpack.c.b16 %v3761, %v3760
        %v3844 = vpack.c.b16 %v3763, %v3762
        %v3845 = vpack.c.b16 %v3765, %v3764
        %v3846 = vpack.c.b16 %v3767, %v3766
        %v3847 = vpack.c.b16 %v3769, %v3768
        %v3848 = vpack.c.b16 %v3771, %v3770
        %v3849 = vpack.c.b16 %v3773, %v3772
        %v3850 = vpack.c.b16 %v3775, %v3774
        %v3851 = vpack.c.b16 %v3777, %v3776
        %v3852 = vpack.c.b16 %v3779, %v3778
        %v3853 = vpack.c.b16 %v3781, %v3780
        %3926 = vmatprep.subr.bf16.mxu0 0
        %3927 = vmatpush1.bf16.msra.mxu0 %v3782
        %3928 = vmatprep.subr.bf16.mxu0 0
        %3929 = vmatpush1.bf16.msra.mxu0 %v3783
        %3930 = vmatprep.subr.bf16.mxu0 0
        %3931 = vmatpush1.bf16.msra.mxu0 %v3784
        %3932 = vmatprep.subr.bf16.mxu0 0
        %3933 = vmatpush1.bf16.msra.mxu0 %v3785
        %3934 = vmatprep.subr.bf16.mxu0 0
        %3935 = vmatpush1.bf16.msra.mxu0 %v3786
        %3936 = vmatprep.subr.bf16.mxu0 0
        %3937 = vmatpush1.bf16.msra.mxu0 %v3787
        %3938 = vmatprep.subr.bf16.mxu0 0
        %3939 = vmatpush1.bf16.msra.mxu0 %v3788
        %3940 = vmatprep.subr.bf16.mxu0 0
        %3941 = vmatpush1.bf16.msra.mxu0 %v3789
        %3942 = vmatprep.subr.bf16.mxu0 0
        %3943 = vmatpush1.bf16.msra.mxu0 %v3790
        %3944 = vmatprep.subr.bf16.mxu0 0
        %3945 = vmatpush1.bf16.msra.mxu0 %v3791
        %3946 = vmatprep.subr.bf16.mxu0 0
        %3947 = vmatpush1.bf16.msra.mxu0 %v3792
        %3948 = vmatprep.subr.bf16.mxu0 0
        %3949 = vmatpush1.bf16.msra.mxu0 %v3793
        %3950 = vmatprep.subr.bf16.mxu0 0
        %3951 = vmatpush1.bf16.msra.mxu0 %v3794
        %3952 = vmatprep.subr.bf16.mxu0 0
        %3953 = vmatpush1.bf16.msra.mxu0 %v3795
        %3954 = vmatprep.subr.bf16.mxu0 0
        %3955 = vmatpush1.bf16.msra.mxu0 %v3796
        %3956 = vmatprep.subr.bf16.mxu0 0
        %3957 = vmatpush1.bf16.msra.mxu0 %v3797
        %3958 = vmatprep.mubr.bf16.mxu0 %v3423
        %3959 = vmatmul.mubr.bf16.gmra.mrb[0].mxu0 %v3422
        %v3960 = vpop.f32.mrb[0].mxu0
        %v3961 = vadd.f32 0.0, %v3960
        %v3962 = vpop.f32.mrb[0].mxu0
        %v3963 = vpop.f32.mrb[0].mxu0
        %v3964 = vadd.f32 0.0, %v3963
        %v3965 = vpop.f32.mrb[0].mxu0
        %3966 = vmatprep.mubr.bf16.mxu0 %v3432
        %3967 = vmatmul.mubr.bf16.gmra.mrb[0].mxu0 %v3431
        %v3968 = vpop.f32.mrb[0].mxu0
        %v3969 = vadd.f32 0.0, %v3968
        %v3970 = vpop.f32.mrb[0].mxu0
        %v3971 = vpop.f32.mrb[0].mxu0
        %v3972 = vadd.f32 0.0, %v3971
        %v3973 = vpop.f32.mrb[0].mxu0
        %3974 = vmatprep.mubr.bf16.mxu0 %v3441
        %3975 = vmatmul.mubr.bf16.gmra.mrb[0].mxu0 %v3440
        %v3976 = vpop.f32.mrb[0].mxu0
        %v3977 = vadd.f32 0.0, %v3976
        %v3978 = vpop.f32.mrb[0].mxu0
        %v3979 = vpop.f32.mrb[0].mxu0
        %v3980 = vadd.f32 0.0, %v3979
        %v3981 = vpop.f32.mrb[0].mxu0
        %3982 = vmatprep.mubr.bf16.mxu0 %v3450
        %3983 = vmatmul.mubr.bf16.gmra.mrb[0].mxu0 %v3449
        %v3984 = vpop.f32.mrb[0].mxu0
        %v3985 = vadd.f32 0.0, %v3984
        %v3986 = vpop.f32.mrb[0].mxu0
        %v3987 = vpop.f32.mrb[0].mxu0
        %v3988 = vadd.f32 0.0, %v3987
        %v3989 = vpop.f32.mrb[0].mxu0
        %3990 = vdwg.mxu0
        %3991 = vmatprep.subr.bf16.mxu0 0
        %3992 = vmatpush1.bf16.msra.mxu0 %v3798
        %3993 = vmatprep.subr.bf16.mxu0 0
        %3994 = vmatpush1.bf16.msra.mxu0 %v3799
        %3995 = vmatprep.subr.bf16.mxu0 0
        %3996 = vmatpush1.bf16.msra.mxu0 %v3800
        %3997 = vmatprep.subr.bf16.mxu0 0
        %3998 = vmatpush1.bf16.msra.mxu0 %v3801
        %3999 = vmatprep.subr.bf16.mxu0 0
        %4000 = vmatpush1.bf16.msra.mxu0 %v3802
        %4001 = vmatprep.subr.bf16.mxu0 0
        %4002 = vmatpush1.bf16.msra.mxu0 %v3803
        %4003 = vmatprep.subr.bf16.mxu0 0
        %4004 = vmatpush1.bf16.msra.mxu0 %v3804
        %4005 = vmatprep.subr.bf16.mxu0 0
        %4006 = vmatpush1.bf16.msra.mxu0 %v3805
        %4007 = vmatprep.subr.bf16.mxu0 0
        %4008 = vmatpush1.bf16.msra.mxu0 %v3806
        %4009 = vmatprep.subr.bf16.mxu0 0
        %4010 = vmatpush1.bf16.msra.mxu0 %v3807
        %4011 = vmatprep.subr.bf16.mxu0 0
        %4012 = vmatpush1.bf16.msra.mxu0 %v3808
        %4013 = vmatprep.subr.bf16.mxu0 0
        %4014 = vmatpush1.bf16.msra.mxu0 %v3809
        %4015 = vmatprep.subr.bf16.mxu0 0
        %4016 = vmatpush1.bf16.msra.mxu0 %v3810
        %4017 = vmatprep.subr.bf16.mxu0 0
        %4018 = vmatpush1.bf16.msra.mxu0 %v3811
        %4019 = vmatprep.subr.bf16.mxu0 0
        %4020 = vmatpush1.bf16.msra.mxu0 %v3812
        %4021 = vmatprep.subr.bf16.mxu0 0
        %4022 = vmatpush1.bf16.msra.mxu0 %v3813
        %4023 = vmatprep.mubr.bf16.mxu0 %v3425
        %4024 = vmatmul.mubr.bf16.gmra.mrb[0].mxu0 %v3424
        %v4025 = vpop.f32.mrb[0].mxu0
        %v4026 = vadd.f32 %v3961, %v4025
        %v4027 = vpop.f32.mrb[0].mxu0
        %v4028 = vpop.f32.mrb[0].mxu0
        %v4029 = vadd.f32 %v3964, %v4028
        %v4030 = vpop.f32.mrb[0].mxu0
        %4031 = vmatprep.mubr.bf16.mxu0 %v3434
        %4032 = vmatmul.mubr.bf16.gmra.mrb[0].mxu0 %v3433
        %v4033 = vpop.f32.mrb[0].mxu0
        %v4034 = vadd.f32 %v3969, %v4033
        %v4035 = vpop.f32.mrb[0].mxu0
        %v4036 = vpop.f32.mrb[0].mxu0
        %v4037 = vadd.f32 %v3972, %v4036
        %v4038 = vpop.f32.mrb[0].mxu0
        %4039 = vmatprep.mubr.bf16.mxu0 %v3443
        %4040 = vmatmul.mubr.bf16.gmra.mrb[0].mxu0 %v3442
        %v4041 = vpop.f32.mrb[0].mxu0
        %v4042 = vadd.f32 %v3977, %v4041
        %v4043 = vpop.f32.mrb[0].mxu0
        %v4044 = vpop.f32.mrb[0].mxu0
        %v4045 = vadd.f32 %v3980, %v4044
        %v4046 = vpop.f32.mrb[0].mxu0
        %4047 = vmatprep.mubr.bf16.mxu0 %v3452
        %4048 = vmatmul.mubr.bf16.gmra.mrb[0].mxu0 %v3451
        %v4049 = vpop.f32.mrb[0].mxu0
        %v4050 = vadd.f32 %v3985, %v4049
        %v4051 = vpop.f32.mrb[0].mxu0
        %v4052 = vpop.f32.mrb[0].mxu0
        %v4053 = vadd.f32 %v3988, %v4052
        %v4054 = vpop.f32.mrb[0].mxu0
        %4055 = vdwg.mxu0
        %4056 = vmatprep.subr.bf16.mxu0 0
        %4057 = vmatpush1.bf16.msra.mxu0 %v3814
        %4058 = vmatprep.subr.bf16.mxu0 0
        %4059 = vmatpush1.bf16.msra.mxu0 %v3815
        %4060 = vmatprep.subr.bf16.mxu0 0
        %4061 = vmatpush1.bf16.msra.mxu0 %v3816
        %4062 = vmatprep.subr.bf16.mxu0 0
        %4063 = vmatpush1.bf16.msra.mxu0 %v3817
        %4064 = vmatprep.subr.bf16.mxu0 0
        %4065 = vmatpush1.bf16.msra.mxu0 %v3818
        %4066 = vmatprep.subr.bf16.mxu0 0
        %4067 = vmatpush1.bf16.msra.mxu0 %v3819
        %4068 = vmatprep.subr.bf16.mxu0 0
        %4069 = vmatpush1.bf16.msra.mxu0 %v3820
        %4070 = vmatprep.subr.bf16.mxu0 0
        %4071 = vmatpush1.bf16.msra.mxu0 %v3821
        %4072 = vmatprep.subr.bf16.mxu0 0
        %4073 = vmatpush1.bf16.msra.mxu0 %v3822
        %4074 = vmatprep.subr.bf16.mxu0 0
        %4075 = vmatpush1.bf16.msra.mxu0 %v3823
        %4076 = vmatprep.subr.bf16.mxu0 0
        %4077 = vmatpush1.bf16.msra.mxu0 %v3824
        %4078 = vmatprep.subr.bf16.mxu0 0
        %4079 = vmatpush1.bf16.msra.mxu0 %v3825
        %4080 = vmatprep.subr.bf16.mxu0 0
        %4081 = vmatpush1.bf16.msra.mxu0 %v3826
        %4082 = vmatprep.subr.bf16.mxu0 0
        %4083 = vmatpush1.bf16.msra.mxu0 %v3827
        %4084 = vmatprep.subr.bf16.mxu0 0
        %4085 = vmatpush1.bf16.msra.mxu0 %v3828
        %4086 = vmatprep.subr.bf16.mxu0 0
        %4087 = vmatpush1.bf16.msra.mxu0 %v3829
        %4088 = vmatprep.mubr.bf16.mxu0 %v3427
        %4089 = vmatmul.mubr.bf16.gmra.mrb[0].mxu0 %v3426
        %v4090 = vpop.f32.mrb[0].mxu0
        %v4091 = vadd.f32 %v4026, %v4090
        %v4092 = vpop.f32.mrb[0].mxu0
        %v4093 = vpop.f32.mrb[0].mxu0
        %v4094 = vadd.f32 %v4029, %v4093
        %v4095 = vpop.f32.mrb[0].mxu0
        %4096 = vmatprep.mubr.bf16.mxu0 %v3436
        %4097 = vmatmul.mubr.bf16.gmra.mrb[0].mxu0 %v3435
        %v4098 = vpop.f32.mrb[0].mxu0
        %v4099 = vadd.f32 %v4034, %v4098
        %v4100 = vpop.f32.mrb[0].mxu0
        %v4101 = vpop.f32.mrb[0].mxu0
        %v4102 = vadd.f32 %v4037, %v4101
        %v4103 = vpop.f32.mrb[0].mxu0
        %4104 = vmatprep.mubr.bf16.mxu0 %v3445
        %4105 = vmatmul.mubr.bf16.gmra.mrb[0].mxu0 %v3444
        %v4106 = vpop.f32.mrb[0].mxu0
        %v4107 = vadd.f32 %v4042, %v4106
        %v4108 = vpop.f32.mrb[0].mxu0
        %v4109 = vpop.f32.mrb[0].mxu0
        %v4110 = vadd.f32 %v4045, %v4109
        %v4111 = vpop.f32.mrb[0].mxu0
        %4112 = vmatprep.mubr.bf16.mxu0 %v3454
        %4113 = vmatmul.mubr.bf16.gmra.mrb[0].mxu0 %v3453
        %v4114 = vpop.f32.mrb[0].mxu0
        %v4115 = vadd.f32 %v4050, %v4114
        %v4116 = vpop.f32.mrb[0].mxu0
        %v4117 = vpop.f32.mrb[0].mxu0
        %v4118 = vadd.f32 %v4053, %v4117
        %v4119 = vpop.f32.mrb[0].mxu0
        %4120 = vdwg.mxu0
        %4121 = vmatprep.subr.bf16.mxu0 0
        %4122 = vmatpush1.bf16.msra.mxu0 %v3830
        %4123 = vmatprep.subr.bf16.mxu0 0
        %4124 = vmatpush1.bf16.msra.mxu0 %v3831
        %4125 = vmatprep.subr.bf16.mxu0 0
        %4126 = vmatpush1.bf16.msra.mxu0 %v3832
        %4127 = vmatprep.subr.bf16.mxu0 0
        %4128 = vmatpush1.bf16.msra.mxu0 %v3833
        %4129 = vmatprep.subr.bf16.mxu0 0
        %4130 = vmatpush1.bf16.msra.mxu0 %v3834
        %4131 = vmatprep.subr.bf16.mxu0 0
        %4132 = vmatpush1.bf16.msra.mxu0 %v3835
        %4133 = vmatprep.subr.bf16.mxu0 0
        %4134 = vmatpush1.bf16.msra.mxu0 %v3836
        %4135 = vmatprep.subr.bf16.mxu0 0
        %4136 = vmatpush1.bf16.msra.mxu0 %v3837
        %4137 = vmatprep.subr.bf16.mxu0 0
        %4138 = vmatpush1.bf16.msra.mxu0 %v3838
        %4139 = vmatprep.subr.bf16.mxu0 0
        %4140 = vmatpush1.bf16.msra.mxu0 %v3839
        %4141 = vmatprep.subr.bf16.mxu0 0
        %4142 = vmatpush1.bf16.msra.mxu0 %v3840
        %4143 = vmatprep.subr.bf16.mxu0 0
        %4144 = vmatpush1.bf16.msra.mxu0 %v3841
        %4145 = vmatprep.subr.bf16.mxu0 0
        %4146 = vmatpush1.bf16.msra.mxu0 %v3842
        %4147 = vmatprep.subr.bf16.mxu0 0
        %4148 = vmatpush1.bf16.msra.mxu0 %v3843
        %4149 = vmatprep.subr.bf16.mxu0 0
        %4150 = vmatpush1.bf16.msra.mxu0 %v3844
        %4151 = vmatprep.subr.bf16.mxu0 0
        %4152 = vmatpush1.bf16.msra.mxu0 %v3845
        %4153 = vmatprep.mubr.bf16.mxu0 %v3429
        %4154 = vmatmul.mubr.bf16.gmra.mrb[0].mxu0 %v3428
        %v4155 = vpop.f32.mrb[0].mxu0
        %v4156 = vadd.f32 %v4091, %v4155
        %v4157 = vpop.f32.mrb[0].mxu0
        %v4158 = vpop.f32.mrb[0].mxu0
        %v4159 = vadd.f32 %v4094, %v4158
        %v4160 = vpop.f32.mrb[0].mxu0
        %4161 = vmatprep.mubr.bf16.mxu0 %v3438
        %4162 = vmatmul.mubr.bf16.gmra.mrb[0].mxu0 %v3437
        %v4163 = vpop.f32.mrb[0].mxu0
        %v4164 = vadd.f32 %v4099, %v4163
        %v4165 = vpop.f32.mrb[0].mxu0
        %v4166 = vpop.f32.mrb[0].mxu0
        %v4167 = vadd.f32 %v4102, %v4166
        %v4168 = vpop.f32.mrb[0].mxu0
        %4169 = vmatprep.mubr.bf16.mxu0 %v3447
        %4170 = vmatmul.mubr.bf16.gmra.mrb[0].mxu0 %v3446
        %v4171 = vpop.f32.mrb[0].mxu0
        %v4172 = vadd.f32 %v4107, %v4171
        %v4173 = vpop.f32.mrb[0].mxu0
        %v4174 = vpop.f32.mrb[0].mxu0
        %v4175 = vadd.f32 %v4110, %v4174
        %v4176 = vpop.f32.mrb[0].mxu0
        %4177 = vmatprep.mubr.bf16.mxu0 %v3456
        %4178 = vmatmul.mubr.bf16.gmra.mrb[0].mxu0 %v3455
        %v4179 = vpop.f32.mrb[0].mxu0
        %v4180 = vadd.f32 %v4115, %v4179
        %v4181 = vpop.f32.mrb[0].mxu0
        %v4182 = vpop.f32.mrb[0].mxu0
        %v4183 = vadd.f32 %v4118, %v4182
        %v4184 = vpop.f32.mrb[0].mxu0
        %4185 = vdwg.mxu0
        %4186 = vmatprep.subr.bf16.mxu0 0
        %4187 = vmatpush1.bf16.msra.mxu0 %v3846
        %4188 = vmatprep.subr.bf16.mxu0 0
        %4189 = vmatpush1.bf16.msra.mxu0 %v3847
        %4190 = vmatprep.subr.bf16.mxu0 0
        %4191 = vmatpush1.bf16.msra.mxu0 %v3848
        %4192 = vmatprep.subr.bf16.mxu0 0
        %4193 = vmatpush1.bf16.msra.mxu0 %v3849
        %4194 = vmatprep.subr.bf16.mxu0 0
        %4195 = vmatpush1.bf16.msra.mxu0 %v3850
        %4196 = vmatprep.subr.bf16.mxu0 0
        %4197 = vmatpush1.bf16.msra.mxu0 %v3851
        %4198 = vmatprep.subr.bf16.mxu0 0
        %4199 = vmatpush1.bf16.msra.mxu0 %v3852
        %4200 = vmatprep.subr.bf16.mxu0 0
        %4201 = vmatpush1.bf16.msra.mxu0 %v3853
        %4202 = vmatprep.subr.bf16.mxu0 0
        %4203 = vmatpush1.bf16.msra.mxu0 0
        %4204 = vmatprep.subr.bf16.mxu0 0
        %4205 = vmatpush1.bf16.msra.mxu0 0
        %4206 = vmatprep.subr.bf16.mxu0 0
        %4207 = vmatpush1.bf16.msra.mxu0 0
        %4208 = vmatprep.subr.bf16.mxu0 0
        %4209 = vmatpush1.bf16.msra.mxu0 0
        %4210 = vmatprep.subr.bf16.mxu0 0
        %4211 = vmatpush1.bf16.msra.mxu0 0
        %4212 = vmatprep.subr.bf16.mxu0 0
        %4213 = vmatpush1.bf16.msra.mxu0 0
        %4214 = vmatprep.subr.bf16.mxu0 0
        %4215 = vmatpush1.bf16.msra.mxu0 0
        %4216 = vmatprep.subr.bf16.mxu0 0
        %4217 = vmatpush1.bf16.msra.mxu0 0
        %4218 = vmatprep.mubr.bf16.mxu0 0
        %4219 = vmatmul.mubr.bf16.gmra.mrb[0].mxu0 %v3430
        %v4220 = vpop.f32.mrb[0].mxu0
        %v4221 = vadd.f32 %v4156, %v4220
        %v4222 = vpop.f32.mrb[0].mxu0
        %v4223 = vpop.f32.mrb[0].mxu0
        %v4224 = vadd.f32 %v4159, %v4223
        %v4225 = vpop.f32.mrb[0].mxu0
        %4226 = vmatprep.mubr.bf16.mxu0 0
        %4227 = vmatmul.mubr.bf16.gmra.mrb[0].mxu0 %v3439
        %v4228 = vpop.f32.mrb[0].mxu0
        %v4229 = vadd.f32 %v4164, %v4228
        %v4230 = vpop.f32.mrb[0].mxu0
        %v4231 = vpop.f32.mrb[0].mxu0
        %v4232 = vadd.f32 %v4167, %v4231
        %v4233 = vpop.f32.mrb[0].mxu0
        %4234 = vmatprep.mubr.bf16.mxu0 0
        %4235 = vmatmul.mubr.bf16.gmra.mrb[0].mxu0 %v3448
        %v4236 = vpop.f32.mrb[0].mxu0
        %v4237 = vadd.f32 %v4172, %v4236
        %v4238 = vpop.f32.mrb[0].mxu0
        %v4239 = vpop.f32.mrb[0].mxu0
        %v4240 = vadd.f32 %v4175, %v4239
        %v4241 = vpop.f32.mrb[0].mxu0
        %4242 = vmatprep.mubr.bf16.mxu0 0
        %4243 = vmatmul.mubr.bf16.gmra.mrb[0].mxu0 %v3457
        %v4244 = vpop.f32.mrb[0].mxu0
        %v4245 = vadd.f32 %v4180, %v4244
        %v4246 = vpop.f32.mrb[0].mxu0
        %v4247 = vpop.f32.mrb[0].mxu0
        %v4248 = vadd.f32 %v4183, %v4247
        %v4249 = vpop.f32.mrb[0].mxu0
        %4250 = vdwg.mxu0
        %v4251 = vld [vmem:[%s8] sm:$0x1]
        %v4253 = vlaneseq
        %v4254 = vshrl.u32 %v4253, 7
        %v4255 = vsub.s32 0, %v4254
        %v4256 = vrot.slane %v4251, %v4255
        %v4258 = vadd.f32 %v4221, %v4256
        %v4259 = vadd.f32 %v4224, %v4256
        %v4260 = vadd.f32 %v4229, %v4256
        %v4261 = vadd.f32 %v4232, %v4256
        %v4262 = vadd.f32 %v4237, %v4256
        %v4263 = vadd.f32 %v4240, %v4256
        %v4264 = vadd.f32 %v4245, %v4256
        %v4265 = vadd.f32 %v4248, %v4256
        %s4266 = scalar_lea.vmem %s682, 8 [#allocation2]
        %v4267 = vld [vmem:[%s4266] ss:$2 sm:$0xff]
        %s4268 = scalar_lea.vmem %s682, 72 [#allocation2]
        %v4269 = vld [vmem:[%s4268] ss:$2 sm:$0xff]
        %s4270 = scalar_lea.vmem %s682, 136 [#allocation2]
        %v4271 = vld [vmem:[%s4270] ss:$2 sm:$0xff]
        %s4272 = scalar_lea.vmem %s682, 200 [#allocation2]
        %v4273 = vld [vmem:[%s4272] ss:$2 sm:$0xff]
        %s4274 = scalar_lea.vmem %s682, 264 [#allocation2]
        %v4275 = vld [vmem:[%s4274] ss:$2 sm:$0xff]
        %s4276 = scalar_lea.vmem %s682, 328 [#allocation2]
        %v4277 = vld [vmem:[%s4276] ss:$2 sm:$0xff]
        %s4278 = scalar_lea.vmem %s682, 392 [#allocation2]
        %v4279 = vld [vmem:[%s4278] ss:$2 sm:$0xff]
        %s4280 = scalar_lea.vmem %s682, 456 [#allocation2]
        %v4281 = vld [vmem:[%s4280] ss:$2 sm:$0xff]
        %v4282 = vpack.c.bf16 %v4269, %v4267
        %v4283 = vpack.c.bf16 %v4273, %v4271
        %v4284 = vpack.c.bf16 %v4277, %v4275
        %v4285 = vpack.c.bf16 %v4281, %v4279
        %v4302 = vunpack.c.l.b16 %v3045
        %v4303 = vunpack.c.l.b16 %v3046
        %v4304 = vunpack.c.l.b16 %v3047
        %v4305 = vunpack.c.l.b16 %v3048
        %v4306 = vunpack.c.l.b16 %v3049
        %v4307 = vunpack.c.l.b16 %v3050
        %v4308 = vunpack.c.l.b16 %v3051
        %v4309 = vunpack.c.l.b16 %v3052
        %v4310 = vunpack.c.l.b16 %v3053
        %v4311 = vunpack.c.l.b16 %v3054
        %v4312 = vunpack.c.l.b16 %v3055
        %v4313 = vunpack.c.l.b16 %v3056
        %v4314 = vunpack.c.l.b16 %v3057
        %v4315 = vunpack.c.l.b16 %v3058
        %v4316 = vunpack.c.l.b16 %v3059
        %v4317 = vunpack.c.l.b16 %v3060
        %v4318 = vpack.c.b16 %v4303, %v4302
        %v4319 = vpack.c.b16 %v4305, %v4304
        %v4320 = vpack.c.b16 %v4307, %v4306
        %v4321 = vpack.c.b16 %v4309, %v4308
        %v4322 = vpack.c.b16 %v4311, %v4310
        %v4323 = vpack.c.b16 %v4313, %v4312
        %v4324 = vpack.c.b16 %v4315, %v4314
        %v4325 = vpack.c.b16 %v4317, %v4316
        %4334 = vmatprep.subr.bf16.mxu0 0
        %4335 = vmatpush1.bf16.msra.mxu0 %v4318
        %4336 = vmatprep.subr.bf16.mxu0 0
        %4337 = vmatpush1.bf16.msra.mxu0 %v4319
        %4338 = vmatprep.subr.bf16.mxu0 0
        %4339 = vmatpush1.bf16.msra.mxu0 %v4320
        %4340 = vmatprep.subr.bf16.mxu0 0
        %4341 = vmatpush1.bf16.msra.mxu0 %v4321
        %4342 = vmatprep.subr.bf16.mxu0 0
        %4343 = vmatpush1.bf16.msra.mxu0 %v4322
        %4344 = vmatprep.subr.bf16.mxu0 0
        %4345 = vmatpush1.bf16.msra.mxu0 %v4323
        %4346 = vmatprep.subr.bf16.mxu0 0
        %4347 = vmatpush1.bf16.msra.mxu0 %v4324
        %4348 = vmatprep.subr.bf16.mxu0 0
        %4349 = vmatpush1.bf16.msra.mxu0 %v4325
        %4350 = vmatprep.subr.bf16.mxu0 0
        %4351 = vmatpush1.bf16.msra.mxu0 0
        %4352 = vmatprep.subr.bf16.mxu0 0
        %4353 = vmatpush1.bf16.msra.mxu0 0
        %4354 = vmatprep.subr.bf16.mxu0 0
        %4355 = vmatpush1.bf16.msra.mxu0 0
        %4356 = vmatprep.subr.bf16.mxu0 0
        %4357 = vmatpush1.bf16.msra.mxu0 0
        %4358 = vmatprep.subr.bf16.mxu0 0
        %4359 = vmatpush1.bf16.msra.mxu0 0
        %4360 = vmatprep.subr.bf16.mxu0 0
        %4361 = vmatpush1.bf16.msra.mxu0 0
        %4362 = vmatprep.subr.bf16.mxu0 0
        %4363 = vmatpush1.bf16.msra.mxu0 0
        %4364 = vmatprep.subr.bf16.mxu0 0
        %4365 = vmatpush1.bf16.msra.mxu0 0
        %4366 = vmatprep.mubr.bf16.mxu0 0
        %4367 = vmatmul.mubr.bf16.gmra.mrb[0].mxu0 %v4282
        %v4368 = vpop.f32.mrb[0].mxu0
        %v4369 = vadd.f32 0.0, %v4368
        %v4370 = vpop.f32.mrb[0].mxu0
        %v4371 = vpop.f32.mrb[0].mxu0
        %v4372 = vadd.f32 0.0, %v4371
        %v4373 = vpop.f32.mrb[0].mxu0
        %4374 = vmatprep.mubr.bf16.mxu0 0
        %4375 = vmatmul.mubr.bf16.gmra.mrb[0].mxu0 %v4283
        %v4376 = vpop.f32.mrb[0].mxu0
        %v4377 = vadd.f32 0.0, %v4376
        %v4378 = vpop.f32.mrb[0].mxu0
        %v4379 = vpop.f32.mrb[0].mxu0
        %v4380 = vadd.f32 0.0, %v4379
        %v4381 = vpop.f32.mrb[0].mxu0
        %4382 = vmatprep.mubr.bf16.mxu0 0
        %4383 = vmatmul.mubr.bf16.gmra.mrb[0].mxu0 %v4284
        %v4384 = vpop.f32.mrb[0].mxu0
        %v4385 = vadd.f32 0.0, %v4384
        %v4386 = vpop.f32.mrb[0].mxu0
        %v4387 = vpop.f32.mrb[0].mxu0
        %v4388 = vadd.f32 0.0, %v4387
        %v4389 = vpop.f32.mrb[0].mxu0
        %4390 = vmatprep.mubr.bf16.mxu0 0
        %4391 = vmatmul.mubr.bf16.gmra.mrb[0].mxu0 %v4285
        %v4392 = vpop.f32.mrb[0].mxu0
        %v4393 = vadd.f32 0.0, %v4392
        %v4394 = vpop.f32.mrb[0].mxu0
        %v4395 = vpop.f32.mrb[0].mxu0
        %v4396 = vadd.f32 0.0, %v4395
        %v4397 = vpop.f32.mrb[0].mxu0
        %4398 = vdwg.mxu0
        %v4399 = vld [vmem:[%s10] sm:$0x1]
        %v4401 = vlaneseq
        %v4402 = vshrl.u32 %v4401, 7
        %v4403 = vsub.s32 0, %v4402
        %v4404 = vrot.slane %v4399, %v4403
        %v4406 = vadd.f32 %v4369, %v4404
        %v4407 = vadd.f32 %v4372, %v4404
        %v4408 = vadd.f32 %v4377, %v4404
        %v4409 = vadd.f32 %v4380, %v4404
        %v4410 = vadd.f32 %v4385, %v4404
        %v4411 = vadd.f32 %v4388, %v4404
        %v4412 = vadd.f32 %v4393, %v4404
        %v4413 = vadd.f32 %v4396, %v4404
        %v4414 = vadd.f32 %v4258, %v4406
        %v4415 = vadd.f32 %v4259, %v4407
        %v4416 = vadd.f32 %v4260, %v4408
        %v4417 = vadd.f32 %v4261, %v4409
        %v4418 = vadd.f32 %v4262, %v4410
        %v4419 = vadd.f32 %v4263, %v4411
        %v4420 = vadd.f32 %v4264, %v4412
        %v4421 = vadd.f32 %v4265, %v4413
        %4422 = vst [vmem:[%s448] sm:$0xff] %v4414
        %4423 = vst [vmem:[%s448 + $0x8] sm:$0xff] %v4415
        %4424 = vst [vmem:[%s448 + $0x10] sm:$0xff] %v4416
        %4425 = vst [vmem:[%s448 + $0x18] sm:$0xff] %v4417
        %4426 = vst [vmem:[%s448 + $0x20] sm:$0xff] %v4418
        %4427 = vst [vmem:[%s448 + $0x28] sm:$0xff] %v4419
        %4428 = vst [vmem:[%s448 + $0x30] sm:$0xff] %v4420
        %4429 = vst [vmem:[%s448 + $0x38] sm:$0xff] %v4421
        %s4430 = sand.u32 %s274, 1
        %s4431 = scalar_lea.sflag [#allocation6], %s4430
        %s4432 = sand.u32 %s274, 1
        %s4433 = smul.addr %s4432, 64
        %s4434 = scalar_lea.vmem [#allocation12], %s4433
        // Predicated region
        $region81: #{tpu_custom_call.1} parent=63 // pred_check
          %p4435 = pneg %p284
        $region82: #{tpu_custom_call.1} parent=63 // pred_check_branch
          %4437 = sbr.rel (%p4435) target = $region84
        $region83: #{tpu_custom_call.1} parent=63 // pred_region
          %s4439 = ssub.s32 1024, 1024
          %4440 = vsyncadd %s4431, %s4439
          %s4441 = smul.addr %s30, 8
          %s4442 = smul.addr %s4441, 128
          %s4443 = scalar_lea.hbm %s11, %s4442
          %s4444 = sshll.u32 %s4434, 4
          %s4445 = int_to_ptr.vmem [resolvable:$true] %s4444
          %4450 = dma.vmem_to_hbm [thread:$0]  %s4445, 1024, %s4443, %s4431, 128, 128, 8
        $region84: #{tpu_custom_call.1} parent=63 // pred_fallthru
          _
      $region64: #{tpu_custom_call.1} parent=5 // pred_fallthru
        _
      %p4451 = scmp.le.s32.totalorder 2, %s25
      // Predicated region
      $region85: #{tpu_custom_call.1} parent=5 // pred_check
        %p4452 = pneg %p4451
      $region86: #{tpu_custom_call.1} parent=5 // pred_check_branch
        %4454 = sbr.rel (%p4452) target = $region88
      $region87: #{tpu_custom_call.1} parent=5 // pred_region
        %s4455 = ssub.s32 %s25, 2
        // Predicated region
        $region89: #{tpu_custom_call.1} parent=87 // pred_check
          %p4456 = pneg %p290
        $region90: #{tpu_custom_call.1} parent=87 // pred_check_branch
          %4458 = sbr.rel (%p4456) target = $region92
        $region91: #{tpu_custom_call.1} parent=87 // pred_region
          %s4459 = sand.u32 %s275, 1
          %s4460 = scalar_lea.sflag [#allocation6], %s4459
          %s4461 = sand.u32 %s275, 1
          %s4462 = smul.addr %s4461, 64
          %s4463 = scalar_lea.vmem [#allocation12], %s4462
          %4464 = dma.done %s4460, 1024
        $region92: #{tpu_custom_call.1} parent=87 // pred_fallthru
          _
      $region88: #{tpu_custom_call.1} parent=5 // pred_fallthru
        _
    $region6: #{tpu_custom_call.1} parent=1 // loop_footer
      %s29 = sadd.s32 1, %s25
    $region7: #{tpu_custom_call.1} parent=1 // loop_footer_branch
      %24 = sbr.rel target = $region3
    $region8: #{tpu_custom_call.1} parent=1 // loop_exit
      _
    %4465 = vsyncpa [#allocation5], 1
    %s4466 = scalar_lea.sflag [#allocation5], 1
    %4467 = vsyncpa %s4466, 1
    %4468 = vsyncpa [#allocation8], 1
    %4469 = vsyncpa [#allocation11], 1
    %4470 = vsyncpa [#allocation6], 1
    %s4471 = scalar_lea.sflag [#allocation6], 1
    %4472 = vsyncpa %s4471, 1

</llo_original>
